<compile_context>
chip_gen: v7x
topology: tpu7x:2x2x1
jax: 0.10.0
libtpu: 0.0.40
codegen_flags: <defaults>
</compile_context>

<pallas_src>
import functools

import jax
import jax.numpy as jnp
from jax.experimental import pallas as pl
from jax.experimental.pallas import tpu as pltpu

EPS = 1e-8  # asteroid GlobLN epsilon


# ---------------------------------------------------------------------------
# In-kernel helpers
# ---------------------------------------------------------------------------
def _globln(x, gamma, beta, inv_n):
    """Single-pass global layer norm over a (C, T) tile.

    `x` must be zero in any padded lane region; `inv_n` is 1/(C * true_T).
    gamma/beta are (C, 1).
    """
    s = jnp.sum(x)
    ss = jnp.sum(x * x)
    mu = s * inv_n
    var = ss * inv_n - mu * mu
    scale = jax.lax.rsqrt(var + EPS) * gamma          # (C, 1)
    return (x - mu) * scale + beta


# ---------------------------------------------------------------------------
# The fused kernel: bottleneck -> n_blocks Conv1DBlocks (one repeat per grid
# step along axis 1) -> mask_net.  grid = (B, n_repeats).
# ---------------------------------------------------------------------------
def tdconvnet_kernel(
    # inputs -----------------------------------------------------------------
    x_ref,                                   # (1, in_chan, Tp)  mixture block
    ln0_g_ref, ln0_b_ref, w_bn_ref, b_bn_ref,   # bottleneck gLN + 1x1 conv
    w_in_ref, b_in_ref, g1_ref, be1_ref,        # (1, X, ...) per-repeat stacks
    wd_ref, bd_ref, g2_ref, be2_ref,
    w_rs_ref, b_rs_ref,                         # stacked res+skip 1x1 conv
    wm_ref, bm_ref,                             # mask_net 1x1 conv
    a1_ref, a2_ref, am_ref,                     # SMEM: PReLU alphas
    # outputs ----------------------------------------------------------------
    mask_ref,                                   # (1, n_src*out_chan, Tp)
    # scratch ----------------------------------------------------------------
    out_sc, skip_sc,                            # VMEM (bn, Tp), (skip, Tp)
    *, n_blocks, n_repeats, bn_chan, n_frames):
    r = pl.program_id(1)

    Tp = x_ref.shape[-1]
    in_chan = x_ref.shape[1]
    hid = w_in_ref.shape[2]
    T = n_frames
    padded = Tp != T                       # static python bool

    lane = jax.lax.broadcasted_iota(jnp.int32, (1, Tp), 1)
    valid = lane < T                       # only used when padded

    # ---- bottleneck (first repeat only): GlobLN(in_chan) -> 1x1 conv -------
    @pl.when(r == 0)
    def _bottleneck():
        x = x_ref[0]                                          # (in_chan, Tp)
        xn = _globln(x, ln0_g_ref[...], ln0_b_ref[...], 1.0 / (in_chan * T))
        out_sc[...] = (
            jnp.dot(w_bn_ref[...], xn, preferred_element_type=jnp.float32)
            + b_bn_ref[...])
        skip_sc[...] = jnp.zeros_like(skip_sc)

    inv_hid = 1.0 / (hid * T)

    # ---- n_blocks Conv1DBlocks of this repeat, statically unrolled ---------
    for j in range(n_blocks):
        d = 2 ** j                                            # static dilation
        a1 = a1_ref[r * n_blocks + j]                         # SMEM scalars
        a2 = a2_ref[r * n_blocks + j]

        x = out_sc[...]                                       # (bn, Tp)

        # 1x1 conv (bn -> hid) + PReLU
        y = (jnp.dot(w_in_ref[0, j], x, preferred_element_type=jnp.float32)
             + b_in_ref[0, j])
        y = jnp.where(y >= 0, y, a1 * y)
        if padded:
            y = jnp.where(valid, y, 0.0)                      # clean stats
        # gLN; keep padded frames zero so the depthwise right tap reads zeros
        y = _globln(y, g1_ref[0, j], be1_ref[0, j], inv_hid)
        if padded:
            y = jnp.where(valid, y, 0.0)

        # depthwise conv: kernel 3, dilation d, padding d (same-length output)
        wd = wd_ref[0, j]                                     # (hid, 3)
        left = jnp.where(lane >= d, pltpu.roll(y, d % Tp, axis=1), 0.0)
        right = jnp.where(lane < Tp - d,
                          pltpu.roll(y, (Tp - d) % Tp, axis=1), 0.0)
        z = (wd[:, 0:1] * left + wd[:, 1:2] * y + wd[:, 2:3] * right
             + bd_ref[0, j])

        # PReLU -> gLN
        z = jnp.where(z >= 0, z, a2 * z)
        if padded:
            z = jnp.where(valid, z, 0.0)
        z = _globln(z, g2_ref[0, j], be2_ref[0, j], inv_hid)

        # merged residual + skip 1x1 convs: one MXU matmul, then slice
        rs = (jnp.dot(w_rs_ref[0, j], z, preferred_element_type=jnp.float32)
              + b_rs_ref[0, j])                               # (bn+skip, Tp)
        out_sc[...] = x + rs[:bn_chan]
        skip_sc[...] = skip_sc[...] + rs[bn_chan:]

    # ---- mask_net (last repeat only): PReLU -> 1x1 conv -> ReLU ------------
    @pl.when(r == n_repeats - 1)
    def _mask_net():
        s = skip_sc[...]
        s = jnp.where(s >= 0, s, am_ref[0] * s)
        score = (jnp.dot(wm_ref[...], s, preferred_element_type=jnp.float32)
                 + bm_ref[...])
        mask_ref[0] = jnp.maximum(score, 0.0)


# ---------------------------------------------------------------------------
# Parameter packing (stack per-block weights for the fused kernel)
# ---------------------------------------------------------------------------
def pack_params(params, cfg):
    R, X = cfg["n_repeats"], cfg["n_blocks"]
    bl = params["blocks"]

    def stk(key):
        a = jnp.stack([p[key] for p in bl])
        return a.reshape((R, X) + bl[0][key].shape)

    packed = {k: stk(k) for k in
              ("w_in", "b_in", "g1", "be1", "wd", "bd", "g2", "be2")}
    w_rs = jnp.stack(
        [jnp.concatenate([p["w_res"], p["w_skip"]], axis=0) for p in bl])
    b_rs = jnp.stack(
        [jnp.concatenate([p["b_res"], p["b_skip"]], axis=0) for p in bl])
    packed["w_rs"] = w_rs.reshape((R, X) + w_rs.shape[1:])
    packed["b_rs"] = b_rs.reshape((R, X) + b_rs.shape[1:])
    packed["a1"] = jnp.stack([p["a1"] for p in bl]).reshape(R * X)
    packed["a2"] = jnp.stack([p["a2"] for p in bl]).reshape(R * X)
    return packed


# ---------------------------------------------------------------------------
# Forward wrapper (single pallas_call)
# ---------------------------------------------------------------------------
def tdconvnet_forward(mixture_w, params, cfg):
    assert cfg["skip_chan"] > 0, "only the skip-connection variant is fused"
    B, in_chan, T = mixture_w.shape
    Tp = ((T + 127) // 128) * 128            # lane-dense time axis
    x = mixture_w
    if Tp != T:
        x = jnp.pad(mixture_w, ((0, 0), (0, 0), (0, Tp - T)))

    R, X = cfg["n_repeats"], cfg["n_blocks"]
    bn, skip = cfg["bn_chan"], cfg["skip_chan"]
    oc = cfg["n_src"] * cfg["out_chan"]

    g0, b0, w0, bb0 = params["bottleneck"]
    am, wm, bm = params["mask"]
    pk = pack_params(params, cfg)

    def const_spec(a):                       # whole array, same every step
        nd = a.ndim
        return pl.BlockSpec(a.shape, lambda b, r, _nd=nd: (0,) * _nd)

    def repeat_spec(a):                      # (R, X, ...) -> one repeat slab
        nd = a.ndim
        return pl.BlockSpec((1,) + a.shape[1:],
                            lambda b, r, _nd=nd: (r,) + (0,) * (_nd - 1))

    smem_spec = pl.BlockSpec(memory_space=pltpu.MemorySpace.SMEM)

    vmem_inputs = [g0, b0, w0, bb0,
                   pk["w_in"], pk["b_in"], pk["g1"], pk["be1"],
                   pk["wd"], pk["bd"], pk["g2"], pk["be2"],
                   pk["w_rs"], pk["b_rs"],
                   wm, bm]
    vmem_specs = ([const_spec(g0), const_spec(b0), const_spec(w0),
                   const_spec(bb0)]
                  + [repeat_spec(pk[k]) for k in
                     ("w_in", "b_in", "g1", "be1",
                      "wd", "bd", "g2", "be2", "w_rs", "b_rs")]
                  + [const_spec(wm), const_spec(bm)])

    kern = functools.partial(tdconvnet_kernel,
                             n_blocks=X, n_repeats=R,
                             bn_chan=bn, n_frames=T)

    score = pl.pallas_call(
        kern,
        grid=(B, R),
        in_specs=[pl.BlockSpec((1, in_chan, Tp), lambda b, r: (b, 0, 0))]
                 + vmem_specs
                 + [smem_spec, smem_spec, smem_spec],
        out_specs=pl.BlockSpec((1, oc, Tp), lambda b, r: (b, 0, 0)),
        out_shape=jax.ShapeDtypeStruct((B, oc, Tp), jnp.float32),
        scratch_shapes=[pltpu.VMEM((bn, Tp), jnp.float32),
                        pltpu.VMEM((skip, Tp), jnp.float32)],
        compiler_params=pltpu.CompilerParams(
            dimension_semantics=("parallel", "arbitrary"),
            vmem_limit_bytes=48 * 1024 * 1024),
    )(x, *vmem_inputs, pk["a1"], pk["a2"], jnp.reshape(am, (1,)))

    return score[..., :T].reshape(B, cfg["n_src"], cfg["out_chan"], T)


# ---------------------------------------------------------------------------
# Pure-JAX reference (independent conv / reduction implementation)
# ---------------------------------------------------------------------------
def ref_forward(x, params, cfg):
    def gln(v, g, b):
        mu = jnp.mean(v, axis=(1, 2), keepdims=True)
        var = jnp.mean((v - mu) ** 2, axis=(1, 2), keepdims=True)
        return (v - mu) * jax.lax.rsqrt(var + EPS) * g[None] + b[None]

    def pconv(w, b, v):                                     # 1x1 conv
        return jnp.einsum("oi,bit->bot", w, v) + b[None]

    g0, b0, w0, bb0 = params["bottleneck"]
    out = pconv(w0, bb0, gln(x, g0, b0))
    skip_acc = 0.0
    blk = 0
    for _r in range(cfg["n_repeats"]):
        for xi in range(cfg["n_blocks"]):
            d = 2 ** xi
            p = params["blocks"][blk]
            blk += 1
            y = pconv(p["w_in"], p["b_in"], out)
            y = jnp.where(y >= 0, y, p["a1"] * y)
            y = gln(y, p["g1"], p["be1"])
            wd = p["wd"][:, None, :]                        # (hid, 1, K)
            z = jax.lax.conv_general_dilated(
                y, wd, window_strides=(1,), padding=[(d, d)],
                rhs_dilation=(d,), dimension_numbers=("NCH", "OIH", "NCH"),
                feature_group_count=y.shape[1]) + p["bd"][None]
            z = jnp.where(z >= 0, z, p["a2"] * z)
            z = gln(z, p["g2"], p["be2"])
            out = out + pconv(p["w_res"], p["b_res"], z)
            skip_acc = skip_acc + pconv(p["w_skip"], p["b_skip"], z)
    am, wm, bm = params["mask"]
    s = jnp.where(skip_acc >= 0, skip_acc, am * skip_acc)
    score = pconv(wm, bm, s)
    B, _, T = x.shape
    return jnp.maximum(score.reshape(B, cfg["n_src"], cfg["out_chan"], T), 0.0)


# ---------------------------------------------------------------------------
# Deterministic synthetic parameter init (shapes follow the module __init__)
# ---------------------------------------------------------------------------
def init_params(key, cfg):
    keys = iter(jax.random.split(key, 1024))

    def nrm(shape, scale=0.1):
        return scale * jax.random.normal(next(keys), shape, dtype=jnp.float32)

    def conv(o, i):                                         # 1x1 conv w + b
        return nrm((o, i)), nrm((o, 1))

    def gln_p(c):                                           # gamma, beta
        return 1.0 + nrm((c, 1)), nrm((c, 1))

    params = {}
    g0, b0 = gln_p(cfg["in_chan"])
    w0, bb0 = conv(cfg["bn_chan"], cfg["in_chan"])
    params["bottleneck"] = (g0, b0, w0, bb0)

    blocks = []
    for _ in range(cfg["n_repeats"] * cfg["n_blocks"]):
        p = {}
        p["w_in"], p["b_in"] = conv(cfg["hid_chan"], cfg["bn_chan"])
        p["a1"] = jnp.asarray(0.25, jnp.float32) + nrm((), 0.05)  # PReLU scalar
        p["g1"], p["be1"] = gln_p(cfg["hid_chan"])
        p["wd"] = nrm((cfg["hid_chan"], cfg["K"]))          # depthwise (hid, K)
        p["bd"] = nrm((cfg["hid_chan"], 1))
        p["a2"] = jnp.asarray(0.25, jnp.float32) + nrm((), 0.05)
        p["g2"], p["be2"] = gln_p(cfg["hid_chan"])
        p["w_res"], p["b_res"] = conv(cfg["bn_chan"], cfg["hid_chan"])
        p["w_skip"], p["b_skip"] = conv(cfg["skip_chan"], cfg["hid_chan"])
        blocks.append(p)
    params["blocks"] = blocks

    am = jnp.asarray(0.25, jnp.float32)
    wm, bm = conv(cfg["n_src"] * cfg["out_chan"], cfg["skip_chan"])
    params["mask"] = (am, wm, bm)
    return params


# ---------------------------------------------------------------------------
if __name__ == "__main__":
    cfg = dict(B=2, in_chan=16, n_src=2, out_chan=16,
               n_blocks=2, n_repeats=2,
               bn_chan=16, hid_chan=32, skip_chan=16, K=3)

    root = jax.random.PRNGKey(0)
    k_param, k_x1, k_x2 = jax.random.split(root, 3)
    params = init_params(k_param, cfg)

    # 1) lane-dense case: T is a multiple of 128 (no padding/masking path)
    T1 = 128
    x1 = jax.random.normal(k_x1, (cfg["B"], cfg["in_chan"], T1), jnp.float32)
    est1 = jax.block_until_ready(tdconvnet_forward(x1, params, cfg))
    assert est1.shape == (cfg["B"], cfg["n_src"], cfg["out_chan"], T1)
    ref1 = jax.block_until_ready(ref_forward(x1, params, cfg))
    assert jnp.allclose(est1, ref1, atol=1e-3, rtol=1e-3), (
        "Pallas output mismatch vs JAX reference (T=128)")

    # 2) unaligned case: T=96 is padded to 128 inside the wrapper; GlobLN
    #    statistics and depthwise taps are masked over the padded frames.
    T2 = 96
    x2 = jax.random.normal(k_x2, (cfg["B"], cfg["in_chan"], T2), jnp.float32)
    est2 = jax.block_until_ready(tdconvnet_forward(x2, params, cfg))
    assert est2.shape == (cfg["B"], cfg["n_src"], cfg["out_chan"], T2)
    ref2 = jax.block_until_ready(ref_forward(x2, params, cfg))
    assert jnp.allclose(est2, ref2, atol=1e-3, rtol=1e-3), (
        "Pallas output mismatch vs JAX reference (T=96, padded)")

    print("KERNEL_OK")
</pallas_src>

<mosaic_0001>
module attributes {stable_mosaic.version = 11 : i64} {
  func.func @tdconvnet_kernel(%arg0: i32, %arg1: i32, %arg2: memref<1x16x128xf32, #tpu.memory_space<vmem>>, %arg3: memref<16x1xf32, #tpu.memory_space<vmem>>, %arg4: memref<16x1xf32, #tpu.memory_space<vmem>>, %arg5: memref<16x16xf32, #tpu.memory_space<vmem>>, %arg6: memref<16x1xf32, #tpu.memory_space<vmem>>, %arg7: memref<1x2x32x16xf32, #tpu.memory_space<vmem>>, %arg8: memref<1x2x32x1xf32, #tpu.memory_space<vmem>>, %arg9: memref<1x2x32x1xf32, #tpu.memory_space<vmem>>, %arg10: memref<1x2x32x1xf32, #tpu.memory_space<vmem>>, %arg11: memref<1x2x32x3xf32, #tpu.memory_space<vmem>>, %arg12: memref<1x2x32x1xf32, #tpu.memory_space<vmem>>, %arg13: memref<1x2x32x1xf32, #tpu.memory_space<vmem>>, %arg14: memref<1x2x32x1xf32, #tpu.memory_space<vmem>>, %arg15: memref<1x2x32x32xf32, #tpu.memory_space<vmem>>, %arg16: memref<1x2x32x1xf32, #tpu.memory_space<vmem>>, %arg17: memref<32x16xf32, #tpu.memory_space<vmem>>, %arg18: memref<32x1xf32, #tpu.memory_space<vmem>>, %arg19: memref<4xf32, #tpu.memory_space<smem>>, %arg20: memref<4xf32, #tpu.memory_space<smem>>, %arg21: memref<1xf32, #tpu.memory_space<smem>>, %arg22: memref<1x32x128xf32, #tpu.memory_space<vmem>>, %arg23: memref<16x128xf32, #tpu.memory_space<vmem>>, %arg24: memref<16x128xf32, #tpu.memory_space<vmem>>) attributes {dimension_semantics = [#tpu.dimension_semantics<parallel>, #tpu.dimension_semantics<arbitrary>], iteration_bounds = array<i64: 2, 2>, scalar_prefetch = 0 : i64, scratch_operands = 2 : i64, tpu.core_type = #tpu.core_type<tc>, window_params = [{transform_indices = @transform_0, window_bounds = array<i64: 1, 16, 128>}, {pipeline_mode = #tpu.pipeline_mode<synchronous>, transform_indices = @transform_1, window_bounds = array<i64: 16, 1>}, {pipeline_mode = #tpu.pipeline_mode<synchronous>, transform_indices = @transform_2, window_bounds = array<i64: 16, 1>}, {pipeline_mode = #tpu.pipeline_mode<synchronous>, transform_indices = @transform_3, window_bounds = array<i64: 16, 16>}, {pipeline_mode = #tpu.pipeline_mode<synchronous>, transform_indices = @transform_4, window_bounds = array<i64: 16, 1>}, {transform_indices = @transform_5, window_bounds = array<i64: 1, 2, 32, 16>}, {transform_indices = @transform_6, window_bounds = array<i64: 1, 2, 32, 1>}, {transform_indices = @transform_7, window_bounds = array<i64: 1, 2, 32, 1>}, {transform_indices = @transform_8, window_bounds = array<i64: 1, 2, 32, 1>}, {transform_indices = @transform_9, window_bounds = array<i64: 1, 2, 32, 3>}, {transform_indices = @transform_10, window_bounds = array<i64: 1, 2, 32, 1>}, {transform_indices = @transform_11, window_bounds = array<i64: 1, 2, 32, 1>}, {transform_indices = @transform_12, window_bounds = array<i64: 1, 2, 32, 1>}, {transform_indices = @transform_13, window_bounds = array<i64: 1, 2, 32, 32>}, {transform_indices = @transform_14, window_bounds = array<i64: 1, 2, 32, 1>}, {pipeline_mode = #tpu.pipeline_mode<synchronous>, transform_indices = @transform_15, window_bounds = array<i64: 32, 16>}, {pipeline_mode = #tpu.pipeline_mode<synchronous>, transform_indices = @transform_16, window_bounds = array<i64: 32, 1>}, {transform_indices = @transform_17, window_bounds = array<i64: 4>}, {transform_indices = @transform_18, window_bounds = array<i64: 4>}, {transform_indices = @transform_19, window_bounds = array<i64: 1>}, {transform_indices = @transform_20, window_bounds = array<i64: 1, 32, 128>}]} {
    %0 = tpu.iota {dimensions = array<i32: 1>} : vector<1x128xi32>
    %c0_i32 = arith.constant 0 : i32
    %1 = arith.cmpi eq, %arg1, %c0_i32 : i32
    %2 = arith.extui %1 : i1 to i32
    %c0_i32_0 = arith.constant 0 : i32
    %3 = arith.cmpi ne, %2, %c0_i32_0 : i32
    scf.if %3 {
      %c0_140 = arith.constant 0 : index
      %c0_141 = arith.constant 0 : index
      %c0_142 = arith.constant 0 : index
      %257 = vector.load %arg2[%c0_140, %c0_141, %c0_142] : memref<1x16x128xf32, #tpu.memory_space<vmem>>, vector<1x16x128xf32>
      %258 = vector.shape_cast %257 : vector<1x16x128xf32> to vector<16x128xf32>
      %c0_143 = arith.constant 0 : index
      %c0_144 = arith.constant 0 : index
      %259 = vector.load %arg3[%c0_143, %c0_144] : memref<16x1xf32, #tpu.memory_space<vmem>>, vector<16x1xf32>
      %c0_145 = arith.constant 0 : index
      %c0_146 = arith.constant 0 : index
      %260 = vector.load %arg4[%c0_145, %c0_146] : memref<16x1xf32, #tpu.memory_space<vmem>>, vector<16x1xf32>
      %261 = vector.shape_cast %258 : vector<16x128xf32> to vector<1x16x128xf32>
      %cst_147 = arith.constant dense<0.000000e+00> : vector<1xf32>
      %262 = vector.multi_reduction <add>, %261, %cst_147 [1, 2] : vector<1x16x128xf32> to vector<1xf32>
      %263 = vector.shape_cast %262 : vector<1xf32> to vector<1x1x1xf32>
      %264 = vector.extract %263[0, 0, 0] : f32 from vector<1x1x1xf32>
      %265 = arith.mulf %258, %258 : vector<16x128xf32>
      %266 = vector.shape_cast %265 : vector<16x128xf32> to vector<1x16x128xf32>
      %cst_148 = arith.constant dense<0.000000e+00> : vector<1xf32>
      %267 = vector.multi_reduction <add>, %266, %cst_148 [1, 2] : vector<1x16x128xf32> to vector<1xf32>
      %268 = vector.shape_cast %267 : vector<1xf32> to vector<1x1x1xf32>
      %269 = vector.extract %268[0, 0, 0] : f32 from vector<1x1x1xf32>
      %cst_149 = arith.constant 4.8828125E-4 : f32
      %270 = arith.mulf %264, %cst_149 : f32
      %cst_150 = arith.constant 4.8828125E-4 : f32
      %271 = arith.mulf %269, %cst_150 : f32
      %272 = arith.mulf %270, %270 : f32
      %273 = arith.subf %271, %272 : f32
      %cst_151 = arith.constant 9.99999993E-9 : f32
      %274 = arith.addf %273, %cst_151 : f32
      %275 = math.rsqrt %274 : f32
      %276 = vector.broadcast %275 : f32 to vector<16x1xf32>
      %277 = arith.mulf %276, %259 : vector<16x1xf32>
      %278 = vector.broadcast %270 : f32 to vector<16x128xf32>
      %279 = arith.subf %258, %278 : vector<16x128xf32>
      %280 = vector.broadcast %277 : vector<16x1xf32> to vector<16x128xf32>
      %281 = arith.mulf %279, %280 : vector<16x128xf32>
      %282 = vector.broadcast %260 : vector<16x1xf32> to vector<16x128xf32>
      %283 = arith.addf %281, %282 : vector<16x128xf32>
      %c0_152 = arith.constant 0 : index
      %c0_153 = arith.constant 0 : index
      %284 = vector.load %arg5[%c0_152, %c0_153] : memref<16x16xf32, #tpu.memory_space<vmem>>, vector<16x16xf32>
      %cst_154 = arith.constant dense<0.000000e+00> : vector<16x128xf32>
      %285 = tpu.matmul %284, %283, %cst_154 {dimension_numbers = #tpu.dot_dimension_numbers<[1], [0], [0], [1], [0, 0, 1, 1], [], []>} : vector<16x16xf32>, vector<16x128xf32>, vector<16x128xf32> -> vector<16x128xf32>
      %c0_155 = arith.constant 0 : index
      %c0_156 = arith.constant 0 : index
      %286 = vector.load %arg6[%c0_155, %c0_156] : memref<16x1xf32, #tpu.memory_space<vmem>>, vector<16x1xf32>
      %287 = vector.broadcast %286 : vector<16x1xf32> to vector<16x128xf32>
      %288 = arith.addf %285, %287 : vector<16x128xf32>
      %c0_157 = arith.constant 0 : index
      %c0_158 = arith.constant 0 : index
      %289 = vector.load %arg23[%c0_157, %c0_158] : memref<16x128xf32, #tpu.memory_space<vmem>>, vector<16x128xf32>
      tpu.vector_store %arg23[%c0_157, %c0_158], %288 {strides = array<i32>} : memref<16x128xf32, #tpu.memory_space<vmem>>, vector<16x128xf32>,
      %cst_159 = arith.constant 0.000000e+00 : f32
      %290 = vector.broadcast %cst_159 : f32 to vector<16x128xf32>
      %c0_160 = arith.constant 0 : index
      %c0_161 = arith.constant 0 : index
      %291 = vector.load %arg24[%c0_160, %c0_161] : memref<16x128xf32, #tpu.memory_space<vmem>>, vector<16x128xf32>
      tpu.vector_store %arg24[%c0_160, %c0_161], %290 {strides = array<i32>} : memref<16x128xf32, #tpu.memory_space<vmem>>, vector<16x128xf32>,
    } else {
    }
    %c2_i32 = arith.constant 2 : i32
    %4 = arith.muli %arg1, %c2_i32 : i32
    %c0_i32_1 = arith.constant 0 : i32
    %5 = arith.addi %4, %c0_i32_1 : i32
    %6 = arith.index_cast %5 : i32 to index
    %7 = memref.load %arg19[%6] : memref<4xf32, #tpu.memory_space<smem>>
    %c2_i32_2 = arith.constant 2 : i32
    %8 = arith.muli %arg1, %c2_i32_2 : i32
    %c0_i32_3 = arith.constant 0 : i32
    %9 = arith.addi %8, %c0_i32_3 : i32
    %10 = arith.index_cast %9 : i32 to index
    %11 = memref.load %arg20[%10] : memref<4xf32, #tpu.memory_space<smem>>
    %c0 = arith.constant 0 : index
    %c0_4 = arith.constant 0 : index
    %12 = vector.load %arg23[%c0, %c0_4] : memref<16x128xf32, #tpu.memory_space<vmem>>, vector<16x128xf32>
    %c0_5 = arith.constant 0 : index
    %c0_6 = arith.constant 0 : index
    %c0_7 = arith.constant 0 : index
    %c0_8 = arith.constant 0 : index
    %13 = vector.load %arg7[%c0_5, %c0_6, %c0_7, %c0_8] : memref<1x2x32x16xf32, #tpu.memory_space<vmem>>, vector<1x1x32x16xf32>
    %14 = vector.shape_cast %13 : vector<1x1x32x16xf32> to vector<32x16xf32>
    %cst = arith.constant dense<0.000000e+00> : vector<32x128xf32>
    %15 = tpu.matmul %14, %12, %cst {dimension_numbers = #tpu.dot_dimension_numbers<[1], [0], [0], [1], [0, 0, 1, 1], [], []>} : vector<32x16xf32>, vector<16x128xf32>, vector<32x128xf32> -> vector<32x128xf32>
    %c0_9 = arith.constant 0 : index
    %c0_10 = arith.constant 0 : index
    %c0_11 = arith.constant 0 : index
    %c0_12 = arith.constant 0 : index
    %16 = vector.load %arg8[%c0_9, %c0_10, %c0_11, %c0_12] : memref<1x2x32x1xf32, #tpu.memory_space<vmem>>, vector<1x1x32x1xf32>
    %17 = vector.shape_cast %16 : vector<1x1x32x1xf32> to vector<32x1xf32>
    %18 = vector.broadcast %17 : vector<32x1xf32> to vector<32x128xf32>
    %19 = arith.addf %15, %18 : vector<32x128xf32>
    %cst_13 = arith.constant 0.000000e+00 : f32
    %20 = vector.broadcast %cst_13 : f32 to vector<32x128xf32>
    %21 = arith.cmpf oge, %19, %20 : vector<32x128xf32>
    %22 = vector.broadcast %7 : f32 to vector<32x128xf32>
    %23 = arith.mulf %22, %19 : vector<32x128xf32>
    %24 = arith.select %21, %19, %23 : vector<32x128xi1>, vector<32x128xf32>
    %c0_14 = arith.constant 0 : index
    %c0_15 = arith.constant 0 : index
    %c0_16 = arith.constant 0 : index
    %c0_17 = arith.constant 0 : index
    %25 = vector.load %arg9[%c0_14, %c0_15, %c0_16, %c0_17] : memref<1x2x32x1xf32, #tpu.memory_space<vmem>>, vector<1x1x32x1xf32>
    %26 = vector.shape_cast %25 : vector<1x1x32x1xf32> to vector<32x1xf32>
    %c0_18 = arith.constant 0 : index
    %c0_19 = arith.constant 0 : index
    %c0_20 = arith.constant 0 : index
    %c0_21 = arith.constant 0 : index
    %27 = vector.load %arg10[%c0_18, %c0_19, %c0_20, %c0_21] : memref<1x2x32x1xf32, #tpu.memory_space<vmem>>, vector<1x1x32x1xf32>
    %28 = vector.shape_cast %27 : vector<1x1x32x1xf32> to vector<32x1xf32>
    %29 = vector.shape_cast %24 : vector<32x128xf32> to vector<1x32x128xf32>
    %cst_22 = arith.constant dense<0.000000e+00> : vector<1xf32>
    %30 = vector.multi_reduction <add>, %29, %cst_22 [1, 2] : vector<1x32x128xf32> to vector<1xf32>
    %31 = vector.shape_cast %30 : vector<1xf32> to vector<1x1x1xf32>
    %32 = vector.extract %31[0, 0, 0] : f32 from vector<1x1x1xf32>
    %33 = arith.mulf %24, %24 : vector<32x128xf32>
    %34 = vector.shape_cast %33 : vector<32x128xf32> to vector<1x32x128xf32>
    %cst_23 = arith.constant dense<0.000000e+00> : vector<1xf32>
    %35 = vector.multi_reduction <add>, %34, %cst_23 [1, 2] : vector<1x32x128xf32> to vector<1xf32>
    %36 = vector.shape_cast %35 : vector<1xf32> to vector<1x1x1xf32>
    %37 = vector.extract %36[0, 0, 0] : f32 from vector<1x1x1xf32>
    %cst_24 = arith.constant 2.44140625E-4 : f32
    %38 = arith.mulf %32, %cst_24 : f32
    %cst_25 = arith.constant 2.44140625E-4 : f32
    %39 = arith.mulf %37, %cst_25 : f32
    %40 = arith.mulf %38, %38 : f32
    %41 = arith.subf %39, %40 : f32
    %cst_26 = arith.constant 9.99999993E-9 : f32
    %42 = arith.addf %41, %cst_26 : f32
    %43 = math.rsqrt %42 : f32
    %44 = vector.broadcast %43 : f32 to vector<32x1xf32>
    %45 = arith.mulf %44, %26 : vector<32x1xf32>
    %46 = vector.broadcast %38 : f32 to vector<32x128xf32>
    %47 = arith.subf %24, %46 : vector<32x128xf32>
    %48 = vector.broadcast %45 : vector<32x1xf32> to vector<32x128xf32>
    %49 = arith.mulf %47, %48 : vector<32x128xf32>
    %50 = vector.broadcast %28 : vector<32x1xf32> to vector<32x128xf32>
    %51 = arith.addf %49, %50 : vector<32x128xf32>
    %c0_27 = arith.constant 0 : index
    %c0_28 = arith.constant 0 : index
    %c0_29 = arith.constant 0 : index
    %c0_30 = arith.constant 0 : index
    %52 = vector.load %arg11[%c0_27, %c0_28, %c0_29, %c0_30] : memref<1x2x32x3xf32, #tpu.memory_space<vmem>>, vector<1x1x32x3xf32>
    %53 = vector.shape_cast %52 : vector<1x1x32x3xf32> to vector<32x3xf32>
    %c1_i32 = arith.constant 1 : i32
    %54 = vector.broadcast %c1_i32 : i32 to vector<1x128xi32>
    %55 = arith.cmpi sge, %0, %54 : vector<1x128xi32>
    %c1_i32_31 = arith.constant 1 : i32
    %56 = tpu.dynamic_rotate %51 by %c1_i32_31 dim 1 : vector<32x128xf32>, i32 -> vector<32x128xf32>
    %cst_32 = arith.constant 0.000000e+00 : f32
    %57 = vector.shape_cast %55 : vector<1x128xi1> to vector<1x128xi1>
    %58 = vector.broadcast %57 : vector<1x128xi1> to vector<32x128xi1>
    %59 = vector.broadcast %cst_32 : f32 to vector<32x128xf32>
    %60 = arith.select %58, %56, %59 : vector<32x128xi1>, vector<32x128xf32>
    %c127_i32 = arith.constant 127 : i32
    %61 = vector.broadcast %c127_i32 : i32 to vector<1x128xi32>
    %62 = arith.cmpi slt, %0, %61 : vector<1x128xi32>
    %c127_i32_33 = arith.constant 127 : i32
    %63 = tpu.dynamic_rotate %51 by %c127_i32_33 dim 1 : vector<32x128xf32>, i32 -> vector<32x128xf32>
    %cst_34 = arith.constant 0.000000e+00 : f32
    %64 = vector.shape_cast %62 : vector<1x128xi1> to vector<1x128xi1>
    %65 = vector.broadcast %64 : vector<1x128xi1> to vector<32x128xi1>
    %66 = vector.broadcast %cst_34 : f32 to vector<32x128xf32>
    %67 = arith.select %65, %63, %66 : vector<32x128xi1>, vector<32x128xf32>
    %68 = vector.extract_strided_slice %53 {offsets = [0, 0], sizes = [32, 1], strides = [1, 1]} : vector<32x3xf32> to vector<32x1xf32>
    %69 = vector.broadcast %68 : vector<32x1xf32> to vector<32x128xf32>
    %70 = arith.mulf %69, %60 : vector<32x128xf32>
    %71 = vector.extract_strided_slice %53 {offsets = [0, 1], sizes = [32, 1], strides = [1, 1]} : vector<32x3xf32> to vector<32x1xf32>
    %72 = vector.broadcast %71 : vector<32x1xf32> to vector<32x128xf32>
    %73 = arith.mulf %72, %51 : vector<32x128xf32>
    %74 = arith.addf %70, %73 : vector<32x128xf32>
    %75 = vector.extract_strided_slice %53 {offsets = [0, 2], sizes = [32, 1], strides = [1, 1]} : vector<32x3xf32> to vector<32x1xf32>
    %76 = vector.broadcast %75 : vector<32x1xf32> to vector<32x128xf32>
    %77 = arith.mulf %76, %67 : vector<32x128xf32>
    %78 = arith.addf %74, %77 : vector<32x128xf32>
    %c0_35 = arith.constant 0 : index
    %c0_36 = arith.constant 0 : index
    %c0_37 = arith.constant 0 : index
    %c0_38 = arith.constant 0 : index
    %79 = vector.load %arg12[%c0_35, %c0_36, %c0_37, %c0_38] : memref<1x2x32x1xf32, #tpu.memory_space<vmem>>, vector<1x1x32x1xf32>
    %80 = vector.shape_cast %79 : vector<1x1x32x1xf32> to vector<32x1xf32>
    %81 = vector.broadcast %80 : vector<32x1xf32> to vector<32x128xf32>
    %82 = arith.addf %78, %81 : vector<32x128xf32>
    %cst_39 = arith.constant 0.000000e+00 : f32
    %83 = vector.broadcast %cst_39 : f32 to vector<32x128xf32>
    %84 = arith.cmpf oge, %82, %83 : vector<32x128xf32>
    %85 = vector.broadcast %11 : f32 to vector<32x128xf32>
    %86 = arith.mulf %85, %82 : vector<32x128xf32>
    %87 = arith.select %84, %82, %86 : vector<32x128xi1>, vector<32x128xf32>
    %c0_40 = arith.constant 0 : index
    %c0_41 = arith.constant 0 : index
    %c0_42 = arith.constant 0 : index
    %c0_43 = arith.constant 0 : index
    %88 = vector.load %arg13[%c0_40, %c0_41, %c0_42, %c0_43] : memref<1x2x32x1xf32, #tpu.memory_space<vmem>>, vector<1x1x32x1xf32>
    %89 = vector.shape_cast %88 : vector<1x1x32x1xf32> to vector<32x1xf32>
    %c0_44 = arith.constant 0 : index
    %c0_45 = arith.constant 0 : index
    %c0_46 = arith.constant 0 : index
    %c0_47 = arith.constant 0 : index
    %90 = vector.load %arg14[%c0_44, %c0_45, %c0_46, %c0_47] : memref<1x2x32x1xf32, #tpu.memory_space<vmem>>, vector<1x1x32x1xf32>
    %91 = vector.shape_cast %90 : vector<1x1x32x1xf32> to vector<32x1xf32>
    %92 = vector.shape_cast %87 : vector<32x128xf32> to vector<1x32x128xf32>
    %cst_48 = arith.constant dense<0.000000e+00> : vector<1xf32>
    %93 = vector.multi_reduction <add>, %92, %cst_48 [1, 2] : vector<1x32x128xf32> to vector<1xf32>
    %94 = vector.shape_cast %93 : vector<1xf32> to vector<1x1x1xf32>
    %95 = vector.extract %94[0, 0, 0] : f32 from vector<1x1x1xf32>
    %96 = arith.mulf %87, %87 : vector<32x128xf32>
    %97 = vector.shape_cast %96 : vector<32x128xf32> to vector<1x32x128xf32>
    %cst_49 = arith.constant dense<0.000000e+00> : vector<1xf32>
    %98 = vector.multi_reduction <add>, %97, %cst_49 [1, 2] : vector<1x32x128xf32> to vector<1xf32>
    %99 = vector.shape_cast %98 : vector<1xf32> to vector<1x1x1xf32>
    %100 = vector.extract %99[0, 0, 0] : f32 from vector<1x1x1xf32>
    %cst_50 = arith.constant 2.44140625E-4 : f32
    %101 = arith.mulf %95, %cst_50 : f32
    %cst_51 = arith.constant 2.44140625E-4 : f32
    %102 = arith.mulf %100, %cst_51 : f32
    %103 = arith.mulf %101, %101 : f32
    %104 = arith.subf %102, %103 : f32
    %cst_52 = arith.constant 9.99999993E-9 : f32
    %105 = arith.addf %104, %cst_52 : f32
    %106 = math.rsqrt %105 : f32
    %107 = vector.broadcast %106 : f32 to vector<32x1xf32>
    %108 = arith.mulf %107, %89 : vector<32x1xf32>
    %109 = vector.broadcast %101 : f32 to vector<32x128xf32>
    %110 = arith.subf %87, %109 : vector<32x128xf32>
    %111 = vector.broadcast %108 : vector<32x1xf32> to vector<32x128xf32>
    %112 = arith.mulf %110, %111 : vector<32x128xf32>
    %113 = vector.broadcast %91 : vector<32x1xf32> to vector<32x128xf32>
    %114 = arith.addf %112, %113 : vector<32x128xf32>
    %c0_53 = arith.constant 0 : index
    %c0_54 = arith.constant 0 : index
    %c0_55 = arith.constant 0 : index
    %c0_56 = arith.constant 0 : index
    %115 = vector.load %arg15[%c0_53, %c0_54, %c0_55, %c0_56] : memref<1x2x32x32xf32, #tpu.memory_space<vmem>>, vector<1x1x32x32xf32>
    %116 = vector.shape_cast %115 : vector<1x1x32x32xf32> to vector<32x32xf32>
    %cst_57 = arith.constant dense<0.000000e+00> : vector<32x128xf32>
    %117 = tpu.matmul %116, %114, %cst_57 {dimension_numbers = #tpu.dot_dimension_numbers<[1], [0], [0], [1], [0, 0, 1, 1], [], []>} : vector<32x32xf32>, vector<32x128xf32>, vector<32x128xf32> -> vector<32x128xf32>
    %c0_58 = arith.constant 0 : index
    %c0_59 = arith.constant 0 : index
    %c0_60 = arith.constant 0 : index
    %c0_61 = arith.constant 0 : index
    %118 = vector.load %arg16[%c0_58, %c0_59, %c0_60, %c0_61] : memref<1x2x32x1xf32, #tpu.memory_space<vmem>>, vector<1x1x32x1xf32>
    %119 = vector.shape_cast %118 : vector<1x1x32x1xf32> to vector<32x1xf32>
    %120 = vector.broadcast %119 : vector<32x1xf32> to vector<32x128xf32>
    %121 = arith.addf %117, %120 : vector<32x128xf32>
    %122 = vector.extract_strided_slice %121 {offsets = [0, 0], sizes = [16, 128], strides = [1, 1]} : vector<32x128xf32> to vector<16x128xf32>
    %123 = arith.addf %12, %122 : vector<16x128xf32>
    %c0_62 = arith.constant 0 : index
    %c0_63 = arith.constant 0 : index
    %124 = vector.load %arg23[%c0_62, %c0_63] : memref<16x128xf32, #tpu.memory_space<vmem>>, vector<16x128xf32>
    tpu.vector_store %arg23[%c0_62, %c0_63], %123 {strides = array<i32>} : memref<16x128xf32, #tpu.memory_space<vmem>>, vector<16x128xf32>,
    %c0_64 = arith.constant 0 : index
    %c0_65 = arith.constant 0 : index
    %125 = vector.load %arg24[%c0_64, %c0_65] : memref<16x128xf32, #tpu.memory_space<vmem>>, vector<16x128xf32>
    %126 = vector.extract_strided_slice %121 {offsets = [16, 0], sizes = [16, 128], strides = [1, 1]} : vector<32x128xf32> to vector<16x128xf32>
    %127 = arith.addf %125, %126 : vector<16x128xf32>
    %c0_66 = arith.constant 0 : index
    %c0_67 = arith.constant 0 : index
    %128 = vector.load %arg24[%c0_66, %c0_67] : memref<16x128xf32, #tpu.memory_space<vmem>>, vector<16x128xf32>
    tpu.vector_store %arg24[%c0_66, %c0_67], %127 {strides = array<i32>} : memref<16x128xf32, #tpu.memory_space<vmem>>, vector<16x128xf32>,
    %c2_i32_68 = arith.constant 2 : i32
    %129 = arith.muli %arg1, %c2_i32_68 : i32
    %c1_i32_69 = arith.constant 1 : i32
    %130 = arith.addi %129, %c1_i32_69 : i32
    %131 = arith.index_cast %130 : i32 to index
    %132 = memref.load %arg19[%131] : memref<4xf32, #tpu.memory_space<smem>>
    %c2_i32_70 = arith.constant 2 : i32
    %133 = arith.muli %arg1, %c2_i32_70 : i32
    %c1_i32_71 = arith.constant 1 : i32
    %134 = arith.addi %133, %c1_i32_71 : i32
    %135 = arith.index_cast %134 : i32 to index
    %136 = memref.load %arg20[%135] : memref<4xf32, #tpu.memory_space<smem>>
    %c0_72 = arith.constant 0 : index
    %c0_73 = arith.constant 0 : index
    %137 = vector.load %arg23[%c0_72, %c0_73] : memref<16x128xf32, #tpu.memory_space<vmem>>, vector<16x128xf32>
    %c0_74 = arith.constant 0 : index
    %c1 = arith.constant 1 : index
    %c0_75 = arith.constant 0 : index
    %c0_76 = arith.constant 0 : index
    %138 = vector.load %arg7[%c0_74, %c1, %c0_75, %c0_76] : memref<1x2x32x16xf32, #tpu.memory_space<vmem>>, vector<1x1x32x16xf32>
    %139 = vector.shape_cast %138 : vector<1x1x32x16xf32> to vector<32x16xf32>
    %cst_77 = arith.constant dense<0.000000e+00> : vector<32x128xf32>
    %140 = tpu.matmul %139, %137, %cst_77 {dimension_numbers = #tpu.dot_dimension_numbers<[1], [0], [0], [1], [0, 0, 1, 1], [], []>} : vector<32x16xf32>, vector<16x128xf32>, vector<32x128xf32> -> vector<32x128xf32>
    %c0_78 = arith.constant 0 : index
    %c1_79 = arith.constant 1 : index
    %c0_80 = arith.constant 0 : index
    %c0_81 = arith.constant 0 : index
    %141 = vector.load %arg8[%c0_78, %c1_79, %c0_80, %c0_81] : memref<1x2x32x1xf32, #tpu.memory_space<vmem>>, vector<1x1x32x1xf32>
    %142 = vector.shape_cast %141 : vector<1x1x32x1xf32> to vector<32x1xf32>
    %143 = vector.broadcast %142 : vector<32x1xf32> to vector<32x128xf32>
    %144 = arith.addf %140, %143 : vector<32x128xf32>
    %cst_82 = arith.constant 0.000000e+00 : f32
    %145 = vector.broadcast %cst_82 : f32 to vector<32x128xf32>
    %146 = arith.cmpf oge, %144, %145 : vector<32x128xf32>
    %147 = vector.broadcast %132 : f32 to vector<32x128xf32>
    %148 = arith.mulf %147, %144 : vector<32x128xf32>
    %149 = arith.select %146, %144, %148 : vector<32x128xi1>, vector<32x128xf32>
    %c0_83 = arith.constant 0 : index
    %c1_84 = arith.constant 1 : index
    %c0_85 = arith.constant 0 : index
    %c0_86 = arith.constant 0 : index
    %150 = vector.load %arg9[%c0_83, %c1_84, %c0_85, %c0_86] : memref<1x2x32x1xf32, #tpu.memory_space<vmem>>, vector<1x1x32x1xf32>
    %151 = vector.shape_cast %150 : vector<1x1x32x1xf32> to vector<32x1xf32>
    %c0_87 = arith.constant 0 : index
    %c1_88 = arith.constant 1 : index
    %c0_89 = arith.constant 0 : index
    %c0_90 = arith.constant 0 : index
    %152 = vector.load %arg10[%c0_87, %c1_88, %c0_89, %c0_90] : memref<1x2x32x1xf32, #tpu.memory_space<vmem>>, vector<1x1x32x1xf32>
    %153 = vector.shape_cast %152 : vector<1x1x32x1xf32> to vector<32x1xf32>
    %154 = vector.shape_cast %149 : vector<32x128xf32> to vector<1x32x128xf32>
    %cst_91 = arith.constant dense<0.000000e+00> : vector<1xf32>
    %155 = vector.multi_reduction <add>, %154, %cst_91 [1, 2] : vector<1x32x128xf32> to vector<1xf32>
    %156 = vector.shape_cast %155 : vector<1xf32> to vector<1x1x1xf32>
    %157 = vector.extract %156[0, 0, 0] : f32 from vector<1x1x1xf32>
    %158 = arith.mulf %149, %149 : vector<32x128xf32>
    %159 = vector.shape_cast %158 : vector<32x128xf32> to vector<1x32x128xf32>
    %cst_92 = arith.constant dense<0.000000e+00> : vector<1xf32>
    %160 = vector.multi_reduction <add>, %159, %cst_92 [1, 2] : vector<1x32x128xf32> to vector<1xf32>
    %161 = vector.shape_cast %160 : vector<1xf32> to vector<1x1x1xf32>
    %162 = vector.extract %161[0, 0, 0] : f32 from vector<1x1x1xf32>
    %cst_93 = arith.constant 2.44140625E-4 : f32
    %163 = arith.mulf %157, %cst_93 : f32
    %cst_94 = arith.constant 2.44140625E-4 : f32
    %164 = arith.mulf %162, %cst_94 : f32
    %165 = arith.mulf %163, %163 : f32
    %166 = arith.subf %164, %165 : f32
    %cst_95 = arith.constant 9.99999993E-9 : f32
    %167 = arith.addf %166, %cst_95 : f32
    %168 = math.rsqrt %167 : f32
    %169 = vector.broadcast %168 : f32 to vector<32x1xf32>
    %170 = arith.mulf %169, %151 : vector<32x1xf32>
    %171 = vector.broadcast %163 : f32 to vector<32x128xf32>
    %172 = arith.subf %149, %171 : vector<32x128xf32>
    %173 = vector.broadcast %170 : vector<32x1xf32> to vector<32x128xf32>
    %174 = arith.mulf %172, %173 : vector<32x128xf32>
    %175 = vector.broadcast %153 : vector<32x1xf32> to vector<32x128xf32>
    %176 = arith.addf %174, %175 : vector<32x128xf32>
    %c0_96 = arith.constant 0 : index
    %c1_97 = arith.constant 1 : index
    %c0_98 = arith.constant 0 : index
    %c0_99 = arith.constant 0 : index
    %177 = vector.load %arg11[%c0_96, %c1_97, %c0_98, %c0_99] : memref<1x2x32x3xf32, #tpu.memory_space<vmem>>, vector<1x1x32x3xf32>
    %178 = vector.shape_cast %177 : vector<1x1x32x3xf32> to vector<32x3xf32>
    %c2_i32_100 = arith.constant 2 : i32
    %179 = vector.broadcast %c2_i32_100 : i32 to vector<1x128xi32>
    %180 = arith.cmpi sge, %0, %179 : vector<1x128xi32>
    %c2_i32_101 = arith.constant 2 : i32
    %181 = tpu.dynamic_rotate %176 by %c2_i32_101 dim 1 : vector<32x128xf32>, i32 -> vector<32x128xf32>
    %cst_102 = arith.constant 0.000000e+00 : f32
    %182 = vector.shape_cast %180 : vector<1x128xi1> to vector<1x128xi1>
    %183 = vector.broadcast %182 : vector<1x128xi1> to vector<32x128xi1>
    %184 = vector.broadcast %cst_102 : f32 to vector<32x128xf32>
    %185 = arith.select %183, %181, %184 : vector<32x128xi1>, vector<32x128xf32>
    %c126_i32 = arith.constant 126 : i32
    %186 = vector.broadcast %c126_i32 : i32 to vector<1x128xi32>
    %187 = arith.cmpi slt, %0, %186 : vector<1x128xi32>
    %c126_i32_103 = arith.constant 126 : i32
    %188 = tpu.dynamic_rotate %176 by %c126_i32_103 dim 1 : vector<32x128xf32>, i32 -> vector<32x128xf32>
    %cst_104 = arith.constant 0.000000e+00 : f32
    %189 = vector.shape_cast %187 : vector<1x128xi1> to vector<1x128xi1>
    %190 = vector.broadcast %189 : vector<1x128xi1> to vector<32x128xi1>
    %191 = vector.broadcast %cst_104 : f32 to vector<32x128xf32>
    %192 = arith.select %190, %188, %191 : vector<32x128xi1>, vector<32x128xf32>
    %193 = vector.extract_strided_slice %178 {offsets = [0, 0], sizes = [32, 1], strides = [1, 1]} : vector<32x3xf32> to vector<32x1xf32>
    %194 = vector.broadcast %193 : vector<32x1xf32> to vector<32x128xf32>
    %195 = arith.mulf %194, %185 : vector<32x128xf32>
    %196 = vector.extract_strided_slice %178 {offsets = [0, 1], sizes = [32, 1], strides = [1, 1]} : vector<32x3xf32> to vector<32x1xf32>
    %197 = vector.broadcast %196 : vector<32x1xf32> to vector<32x128xf32>
    %198 = arith.mulf %197, %176 : vector<32x128xf32>
    %199 = arith.addf %195, %198 : vector<32x128xf32>
    %200 = vector.extract_strided_slice %178 {offsets = [0, 2], sizes = [32, 1], strides = [1, 1]} : vector<32x3xf32> to vector<32x1xf32>
    %201 = vector.broadcast %200 : vector<32x1xf32> to vector<32x128xf32>
    %202 = arith.mulf %201, %192 : vector<32x128xf32>
    %203 = arith.addf %199, %202 : vector<32x128xf32>
    %c0_105 = arith.constant 0 : index
    %c1_106 = arith.constant 1 : index
    %c0_107 = arith.constant 0 : index
    %c0_108 = arith.constant 0 : index
    %204 = vector.load %arg12[%c0_105, %c1_106, %c0_107, %c0_108] : memref<1x2x32x1xf32, #tpu.memory_space<vmem>>, vector<1x1x32x1xf32>
    %205 = vector.shape_cast %204 : vector<1x1x32x1xf32> to vector<32x1xf32>
    %206 = vector.broadcast %205 : vector<32x1xf32> to vector<32x128xf32>
    %207 = arith.addf %203, %206 : vector<32x128xf32>
    %cst_109 = arith.constant 0.000000e+00 : f32
    %208 = vector.broadcast %cst_109 : f32 to vector<32x128xf32>
    %209 = arith.cmpf oge, %207, %208 : vector<32x128xf32>
    %210 = vector.broadcast %136 : f32 to vector<32x128xf32>
    %211 = arith.mulf %210, %207 : vector<32x128xf32>
    %212 = arith.select %209, %207, %211 : vector<32x128xi1>, vector<32x128xf32>
    %c0_110 = arith.constant 0 : index
    %c1_111 = arith.constant 1 : index
    %c0_112 = arith.constant 0 : index
    %c0_113 = arith.constant 0 : index
    %213 = vector.load %arg13[%c0_110, %c1_111, %c0_112, %c0_113] : memref<1x2x32x1xf32, #tpu.memory_space<vmem>>, vector<1x1x32x1xf32>
    %214 = vector.shape_cast %213 : vector<1x1x32x1xf32> to vector<32x1xf32>
    %c0_114 = arith.constant 0 : index
    %c1_115 = arith.constant 1 : index
    %c0_116 = arith.constant 0 : index
    %c0_117 = arith.constant 0 : index
    %215 = vector.load %arg14[%c0_114, %c1_115, %c0_116, %c0_117] : memref<1x2x32x1xf32, #tpu.memory_space<vmem>>, vector<1x1x32x1xf32>
    %216 = vector.shape_cast %215 : vector<1x1x32x1xf32> to vector<32x1xf32>
    %217 = vector.shape_cast %212 : vector<32x128xf32> to vector<1x32x128xf32>
    %cst_118 = arith.constant dense<0.000000e+00> : vector<1xf32>
    %218 = vector.multi_reduction <add>, %217, %cst_118 [1, 2] : vector<1x32x128xf32> to vector<1xf32>
    %219 = vector.shape_cast %218 : vector<1xf32> to vector<1x1x1xf32>
    %220 = vector.extract %219[0, 0, 0] : f32 from vector<1x1x1xf32>
    %221 = arith.mulf %212, %212 : vector<32x128xf32>
    %222 = vector.shape_cast %221 : vector<32x128xf32> to vector<1x32x128xf32>
    %cst_119 = arith.constant dense<0.000000e+00> : vector<1xf32>
    %223 = vector.multi_reduction <add>, %222, %cst_119 [1, 2] : vector<1x32x128xf32> to vector<1xf32>
    %224 = vector.shape_cast %223 : vector<1xf32> to vector<1x1x1xf32>
    %225 = vector.extract %224[0, 0, 0] : f32 from vector<1x1x1xf32>
    %cst_120 = arith.constant 2.44140625E-4 : f32
    %226 = arith.mulf %220, %cst_120 : f32
    %cst_121 = arith.constant 2.44140625E-4 : f32
    %227 = arith.mulf %225, %cst_121 : f32
    %228 = arith.mulf %226, %226 : f32
    %229 = arith.subf %227, %228 : f32
    %cst_122 = arith.constant 9.99999993E-9 : f32
    %230 = arith.addf %229, %cst_122 : f32
    %231 = math.rsqrt %230 : f32
    %232 = vector.broadcast %231 : f32 to vector<32x1xf32>
    %233 = arith.mulf %232, %214 : vector<32x1xf32>
    %234 = vector.broadcast %226 : f32 to vector<32x128xf32>
    %235 = arith.subf %212, %234 : vector<32x128xf32>
    %236 = vector.broadcast %233 : vector<32x1xf32> to vector<32x128xf32>
    %237 = arith.mulf %235, %236 : vector<32x128xf32>
    %238 = vector.broadcast %216 : vector<32x1xf32> to vector<32x128xf32>
    %239 = arith.addf %237, %238 : vector<32x128xf32>
    %c0_123 = arith.constant 0 : index
    %c1_124 = arith.constant 1 : index
    %c0_125 = arith.constant 0 : index
    %c0_126 = arith.constant 0 : index
    %240 = vector.load %arg15[%c0_123, %c1_124, %c0_125, %c0_126] : memref<1x2x32x32xf32, #tpu.memory_space<vmem>>, vector<1x1x32x32xf32>
    %241 = vector.shape_cast %240 : vector<1x1x32x32xf32> to vector<32x32xf32>
    %cst_127 = arith.constant dense<0.000000e+00> : vector<32x128xf32>
    %242 = tpu.matmul %241, %239, %cst_127 {dimension_numbers = #tpu.dot_dimension_numbers<[1], [0], [0], [1], [0, 0, 1, 1], [], []>} : vector<32x32xf32>, vector<32x128xf32>, vector<32x128xf32> -> vector<32x128xf32>
    %c0_128 = arith.constant 0 : index
    %c1_129 = arith.constant 1 : index
    %c0_130 = arith.constant 0 : index
    %c0_131 = arith.constant 0 : index
    %243 = vector.load %arg16[%c0_128, %c1_129, %c0_130, %c0_131] : memref<1x2x32x1xf32, #tpu.memory_space<vmem>>, vector<1x1x32x1xf32>
    %244 = vector.shape_cast %243 : vector<1x1x32x1xf32> to vector<32x1xf32>
    %245 = vector.broadcast %244 : vector<32x1xf32> to vector<32x128xf32>
    %246 = arith.addf %242, %245 : vector<32x128xf32>
    %247 = vector.extract_strided_slice %246 {offsets = [0, 0], sizes = [16, 128], strides = [1, 1]} : vector<32x128xf32> to vector<16x128xf32>
    %248 = arith.addf %137, %247 : vector<16x128xf32>
    %c0_132 = arith.constant 0 : index
    %c0_133 = arith.constant 0 : index
    %249 = vector.load %arg23[%c0_132, %c0_133] : memref<16x128xf32, #tpu.memory_space<vmem>>, vector<16x128xf32>
    tpu.vector_store %arg23[%c0_132, %c0_133], %248 {strides = array<i32>} : memref<16x128xf32, #tpu.memory_space<vmem>>, vector<16x128xf32>,
    %c0_134 = arith.constant 0 : index
    %c0_135 = arith.constant 0 : index
    %250 = vector.load %arg24[%c0_134, %c0_135] : memref<16x128xf32, #tpu.memory_space<vmem>>, vector<16x128xf32>
    %251 = vector.extract_strided_slice %246 {offsets = [16, 0], sizes = [16, 128], strides = [1, 1]} : vector<32x128xf32> to vector<16x128xf32>
    %252 = arith.addf %250, %251 : vector<16x128xf32>
    %c0_136 = arith.constant 0 : index
    %c0_137 = arith.constant 0 : index
    %253 = vector.load %arg24[%c0_136, %c0_137] : memref<16x128xf32, #tpu.memory_space<vmem>>, vector<16x128xf32>
    tpu.vector_store %arg24[%c0_136, %c0_137], %252 {strides = array<i32>} : memref<16x128xf32, #tpu.memory_space<vmem>>, vector<16x128xf32>,
    %c1_i32_138 = arith.constant 1 : i32
    %254 = arith.cmpi eq, %arg1, %c1_i32_138 : i32
    %255 = arith.extui %254 : i1 to i32
    %c0_i32_139 = arith.constant 0 : i32
    %256 = arith.cmpi ne, %255, %c0_i32_139 : i32
    scf.if %256 {
      %c0_140 = arith.constant 0 : index
      %c0_141 = arith.constant 0 : index
      %257 = vector.load %arg24[%c0_140, %c0_141] : memref<16x128xf32, #tpu.memory_space<vmem>>, vector<16x128xf32>
      %cst_142 = arith.constant 0.000000e+00 : f32
      %258 = vector.broadcast %cst_142 : f32 to vector<16x128xf32>
      %259 = arith.cmpf oge, %257, %258 : vector<16x128xf32>
      %c0_143 = arith.constant 0 : index
      %260 = memref.load %arg21[%c0_143] : memref<1xf32, #tpu.memory_space<smem>>
      %261 = vector.broadcast %260 : f32 to vector<16x128xf32>
      %262 = arith.mulf %261, %257 : vector<16x128xf32>
      %263 = arith.select %259, %257, %262 : vector<16x128xi1>, vector<16x128xf32>
      %c0_144 = arith.constant 0 : index
      %c0_145 = arith.constant 0 : index
      %264 = vector.load %arg17[%c0_144, %c0_145] : memref<32x16xf32, #tpu.memory_space<vmem>>, vector<32x16xf32>
      %cst_146 = arith.constant dense<0.000000e+00> : vector<32x128xf32>
      %265 = tpu.matmul %264, %263, %cst_146 {dimension_numbers = #tpu.dot_dimension_numbers<[1], [0], [0], [1], [0, 0, 1, 1], [], []>} : vector<32x16xf32>, vector<16x128xf32>, vector<32x128xf32> -> vector<32x128xf32>
      %c0_147 = arith.constant 0 : index
      %c0_148 = arith.constant 0 : index
      %266 = vector.load %arg18[%c0_147, %c0_148] : memref<32x1xf32, #tpu.memory_space<vmem>>, vector<32x1xf32>
      %267 = vector.broadcast %266 : vector<32x1xf32> to vector<32x128xf32>
      %268 = arith.addf %265, %267 : vector<32x128xf32>
      %cst_149 = arith.constant 0.000000e+00 : f32
      %269 = vector.broadcast %cst_149 : f32 to vector<32x128xf32>
      %270 = arith.maximumf %268, %269 : vector<32x128xf32>
      %c0_150 = arith.constant 0 : index
      %c0_151 = arith.constant 0 : index
      %c0_152 = arith.constant 0 : index
      %271 = vector.load %arg22[%c0_150, %c0_151, %c0_152] : memref<1x32x128xf32, #tpu.memory_space<vmem>>, vector<1x32x128xf32>
      %272 = vector.shape_cast %271 : vector<1x32x128xf32> to vector<32x128xf32>
      %273 = vector.shape_cast %270 : vector<32x128xf32> to vector<1x32x128xf32>
      tpu.vector_store %arg22[%c0_150, %c0_151, %c0_152], %273 {strides = array<i32>} : memref<1x32x128xf32, #tpu.memory_space<vmem>>, vector<1x32x128xf32>,
    } else {
    }
    return
  }
  func.func @transform_0(%arg0: i32, %arg1: i32) -> (i32, i32, i32) {
    %c0_i32 = arith.constant 0 : i32
    %c0_i32_0 = arith.constant 0 : i32
    %c0_i32_1 = arith.constant 0 : i32
    return %arg0, %c0_i32, %c0_i32_0 : i32, i32, i32
  }
  func.func @transform_1(%arg0: i32, %arg1: i32) -> (i32, i32) {
    %c0_i32 = arith.constant 0 : i32
    %c0_i32_0 = arith.constant 0 : i32
    %c0_i32_1 = arith.constant 0 : i32
    return %c0_i32, %c0_i32_0 : i32, i32
  }
  func.func @transform_2(%arg0: i32, %arg1: i32) -> (i32, i32) {
    %c0_i32 = arith.constant 0 : i32
    %c0_i32_0 = arith.constant 0 : i32
    %c0_i32_1 = arith.constant 0 : i32
    return %c0_i32, %c0_i32_0 : i32, i32
  }
  func.func @transform_3(%arg0: i32, %arg1: i32) -> (i32, i32) {
    %c0_i32 = arith.constant 0 : i32
    %c0_i32_0 = arith.constant 0 : i32
    %c0_i32_1 = arith.constant 0 : i32
    return %c0_i32, %c0_i32_0 : i32, i32
  }
  func.func @transform_4(%arg0: i32, %arg1: i32) -> (i32, i32) {
    %c0_i32 = arith.constant 0 : i32
    %c0_i32_0 = arith.constant 0 : i32
    %c0_i32_1 = arith.constant 0 : i32
    return %c0_i32, %c0_i32_0 : i32, i32
  }
  func.func @transform_5(%arg0: i32, %arg1: i32) -> (i32, i32, i32, i32) {
    %c0_i32 = arith.constant 0 : i32
    %c0_i32_0 = arith.constant 0 : i32
    %c0_i32_1 = arith.constant 0 : i32
    %c0_i32_2 = arith.constant 0 : i32
    return %arg1, %c0_i32, %c0_i32_0, %c0_i32_1 : i32, i32, i32, i32
  }
  func.func @transform_6(%arg0: i32, %arg1: i32) -> (i32, i32, i32, i32) {
    %c0_i32 = arith.constant 0 : i32
    %c0_i32_0 = arith.constant 0 : i32
    %c0_i32_1 = arith.constant 0 : i32
    %c0_i32_2 = arith.constant 0 : i32
    return %arg1, %c0_i32, %c0_i32_0, %c0_i32_1 : i32, i32, i32, i32
  }
  func.func @transform_7(%arg0: i32, %arg1: i32) -> (i32, i32, i32, i32) {
    %c0_i32 = arith.constant 0 : i32
    %c0_i32_0 = arith.constant 0 : i32
    %c0_i32_1 = arith.constant 0 : i32
    %c0_i32_2 = arith.constant 0 : i32
    return %arg1, %c0_i32, %c0_i32_0, %c0_i32_1 : i32, i32, i32, i32
  }
  func.func @transform_8(%arg0: i32, %arg1: i32) -> (i32, i32, i32, i32) {
    %c0_i32 = arith.constant 0 : i32
    %c0_i32_0 = arith.constant 0 : i32
    %c0_i32_1 = arith.constant 0 : i32
    %c0_i32_2 = arith.constant 0 : i32
    return %arg1, %c0_i32, %c0_i32_0, %c0_i32_1 : i32, i32, i32, i32
  }
  func.func @transform_9(%arg0: i32, %arg1: i32) -> (i32, i32, i32, i32) {
    %c0_i32 = arith.constant 0 : i32
    %c0_i32_0 = arith.constant 0 : i32
    %c0_i32_1 = arith.constant 0 : i32
    %c0_i32_2 = arith.constant 0 : i32
    return %arg1, %c0_i32, %c0_i32_0, %c0_i32_1 : i32, i32, i32, i32
  }
  func.func @transform_10(%arg0: i32, %arg1: i32) -> (i32, i32, i32, i32) {
    %c0_i32 = arith.constant 0 : i32
    %c0_i32_0 = arith.constant 0 : i32
    %c0_i32_1 = arith.constant 0 : i32
    %c0_i32_2 = arith.constant 0 : i32
    return %arg1, %c0_i32, %c0_i32_0, %c0_i32_1 : i32, i32, i32, i32
  }
  func.func @transform_11(%arg0: i32, %arg1: i32) -> (i32, i32, i32, i32) {
    %c0_i32 = arith.constant 0 : i32
    %c0_i32_0 = arith.constant 0 : i32
    %c0_i32_1 = arith.constant 0 : i32
    %c0_i32_2 = arith.constant 0 : i32
    return %arg1, %c0_i32, %c0_i32_0, %c0_i32_1 : i32, i32, i32, i32
  }
  func.func @transform_12(%arg0: i32, %arg1: i32) -> (i32, i32, i32, i32) {
    %c0_i32 = arith.constant 0 : i32
    %c0_i32_0 = arith.constant 0 : i32
    %c0_i32_1 = arith.constant 0 : i32
    %c0_i32_2 = arith.constant 0 : i32
    return %arg1, %c0_i32, %c0_i32_0, %c0_i32_1 : i32, i32, i32, i32
  }
  func.func @transform_13(%arg0: i32, %arg1: i32) -> (i32, i32, i32, i32) {
    %c0_i32 = arith.constant 0 : i32
    %c0_i32_0 = arith.constant 0 : i32
    %c0_i32_1 = arith.constant 0 : i32
    %c0_i32_2 = arith.constant 0 : i32
    return %arg1, %c0_i32, %c0_i32_0, %c0_i32_1 : i32, i32, i32, i32
  }
  func.func @transform_14(%arg0: i32, %arg1: i32) -> (i32, i32, i32, i32) {
    %c0_i32 = arith.constant 0 : i32
    %c0_i32_0 = arith.constant 0 : i32
    %c0_i32_1 = arith.constant 0 : i32
    %c0_i32_2 = arith.constant 0 : i32
    return %arg1, %c0_i32, %c0_i32_0, %c0_i32_1 : i32, i32, i32, i32
  }
  func.func @transform_15(%arg0: i32, %arg1: i32) -> (i32, i32) {
    %c0_i32 = arith.constant 0 : i32
    %c0_i32_0 = arith.constant 0 : i32
    %c0_i32_1 = arith.constant 0 : i32
    return %c0_i32, %c0_i32_0 : i32, i32
  }
  func.func @transform_16(%arg0: i32, %arg1: i32) -> (i32, i32) {
    %c0_i32 = arith.constant 0 : i32
    %c0_i32_0 = arith.constant 0 : i32
    %c0_i32_1 = arith.constant 0 : i32
    return %c0_i32, %c0_i32_0 : i32, i32
  }
  func.func @transform_17(%arg0: i32, %arg1: i32) -> i32 {
    %c0_i32 = arith.constant 0 : i32
    %c0_i32_0 = arith.constant 0 : i32
    return %c0_i32 : i32
  }
  func.func @transform_18(%arg0: i32, %arg1: i32) -> i32 {
    %c0_i32 = arith.constant 0 : i32
    %c0_i32_0 = arith.constant 0 : i32
    return %c0_i32 : i32
  }
  func.func @transform_19(%arg0: i32, %arg1: i32) -> i32 {
    %c0_i32 = arith.constant 0 : i32
    %c0_i32_0 = arith.constant 0 : i32
    return %c0_i32 : i32
  }
  func.func @transform_20(%arg0: i32, %arg1: i32) -> (i32, i32, i32) {
    %c0_i32 = arith.constant 0 : i32
    %c0_i32_0 = arith.constant 0 : i32
    %c0_i32_1 = arith.constant 0 : i32
    return %arg0, %c0_i32, %c0_i32_0 : i32, i32, i32
  }
}

</mosaic_0001>

<llo_original>
// kernel: tpu_custom_call.1
$region0: #{tpu_custom_call.1}
  #allocation0 [shape = 'u32[]', space=smem, size = 0x4, offset = 0x4, fixed_abs, tag = 'smem constant byte address 0x4 - core index']
  #allocation1 [shape = 'u32[144,128]{1,0:T(1,128)}', space=vmem, size = 0x12000, scoped, tag = 'internal scratch']
  #allocation2 [shape = 'f32[16,128]{1,0:T(8,128)}', space=vmem, size = 0x2000, scoped, tag = 'scratch operand']
  #allocation3 [shape = 'f32[16,128]{1,0:T(8,128)}', space=vmem, size = 0x2000, scoped, tag = 'scratch operand']
  #allocation4 [shape = 'f32[1]{0:T(128)S(6)}', space=smem, size = 0x200, scoped, tag = 'scoped memory for tpu_custom_call.1']
  %s0 = inlined_call_operand.vmem [shape: f32[2,16,128], index: 0, kind: input, shape index: {}]
  %s1 = inlined_call_operand.vmem [shape: f32[16,1], index: 1, kind: input, shape index: {}]
  %s2 = inlined_call_operand.vmem [shape: f32[16,1], index: 2, kind: input, shape index: {}]
  %s3 = inlined_call_operand.vmem [shape: f32[16,16], index: 3, kind: input, shape index: {}]
  %s4 = inlined_call_operand.vmem [shape: f32[16,1], index: 4, kind: input, shape index: {}]
  %s5 = inlined_call_operand.vmem [shape: f32[2,2,32,16], index: 5, kind: input, shape index: {}]
  %s6 = inlined_call_operand.vmem [shape: f32[2,2,32,1], index: 6, kind: input, shape index: {}]
  %s7 = inlined_call_operand.vmem [shape: f32[2,2,32,1], index: 7, kind: input, shape index: {}]
  %s8 = inlined_call_operand.vmem [shape: f32[2,2,32,1], index: 8, kind: input, shape index: {}]
  %s9 = inlined_call_operand.vmem [shape: f32[2,2,32,3], index: 9, kind: input, shape index: {}]
  %s10 = inlined_call_operand.vmem [shape: f32[2,2,32,1], index: 10, kind: input, shape index: {}]
  %s11 = inlined_call_operand.vmem [shape: f32[2,2,32,1], index: 11, kind: input, shape index: {}]
  %s12 = inlined_call_operand.vmem [shape: f32[2,2,32,1], index: 12, kind: input, shape index: {}]
  %s13 = inlined_call_operand.vmem [shape: f32[2,2,32,32], index: 13, kind: input, shape index: {}]
  %s14 = inlined_call_operand.vmem [shape: f32[2,2,32,1], index: 14, kind: input, shape index: {}]
  %s15 = inlined_call_operand.vmem [shape: f32[32,16], index: 15, kind: input, shape index: {}]
  %s16 = inlined_call_operand.vmem [shape: f32[32,1], index: 16, kind: input, shape index: {}]
  %s17 = inlined_call_operand.vmem [shape: f32[4], index: 17, kind: input, shape index: {}]
  %s18 = inlined_call_operand.vmem [shape: f32[4], index: 18, kind: input, shape index: {}]
  %s19 = inlined_call_operand.<no memory space> [shape: f32[1], index: 19, kind: input, shape index: {}]
  %s20 = inlined_call_operand.hbm [shape: f32[2,32,128], index: 20, kind: output, shape index: {}]
  %s21 = sld [smem:[#allocation0]]
  $region129: #{tpu_custom_call.1} parent=0
    _
  %s23 = ssub.s32 1, %s21
  %s24 = scalar_select 0, %s23, %s21
  %25 = sst [smem:[#allocation4]] %s19
  $region1: #{tpu_custom_call.1} parent=0
    #allocation5 [shape = 'u8[512]{0}', space=smem, size = 0x200, scoped, tag = 'input window, operand 17, single buffered']
    #allocation6 [shape = 's32[2]{0}', space=sflag, size = 0x8, scoped, tag = 'scoped memory for tpu_custom_call.1']
    #allocation7 [shape = 's32[2]{0}', space=sflag, size = 0x8, scoped, tag = 'scoped memory for tpu_custom_call.1']
    #allocation8 [shape = 'u8[512]{0}', space=smem, size = 0x200, scoped, tag = 'input window, operand 18, single buffered']
    #allocation9 [shape = 's32[1]{0}', space=sflag, size = 0x4, scoped, tag = 'scoped memory for tpu_custom_call.1']
    #allocation10 [shape = 'u8[32768]{0}', space=vmem, size = 0x8000, scoped, tag = 'output window, operand 0']
    %26 = vsyncpa [#allocation7], 0
    %27 = vsyncpa [#allocation9], 0
    %28 = vsyncpa [#allocation6], 0
    %s29 = scalar_lea.sflag [#allocation6], 1
    %30 = vsyncpa %s29, 0
    loop: start=0, step=1, limit=6
    $region2: #{tpu_custom_call.1} parent=1 // loop_pre_header
      _
    $region3: #{tpu_custom_call.1} parent=1 // loop_header
      %s32 = sphi 0, %s36
      %p33 = scmp.ge.s32.totalorder %s32, 6
      %s39 = sphi 0, %s51
      %s40 = sphi 0, %s47
      %s41 = sphi 0, %s39
      %s42 = sphi 0, %s40
      %s43 = sphi 0, %s41
      %s44 = sphi 0, %s42
      %s54 = sphi 0, %s56
      %s57 = sphi 0, %s54
      %s58 = sphi 0, %s57
      %s74 = sphi 0, %s58
      %s78 = sphi 0, %s78
      %s80 = sphi 0, %s78
      %s81 = sphi 0, %s80
      %s95 = sphi 0, %s81
      %s99 = sphi 0, %s99
      %s101 = sphi 0, %s99
      %s102 = sphi 0, %s101
      %s116 = sphi 0, %s102
      %s120 = sphi 0, %s120
      %s122 = sphi 0, %s120
      %s123 = sphi 0, %s122
      %s137 = sphi 0, %s123
      %s141 = sphi 0, %s141
      %s143 = sphi 0, %s141
      %s144 = sphi 0, %s143
      %s158 = sphi 0, %s144
      %s164 = sphi 0, %s166
      %s167 = sphi 0, %s164
      %s168 = sphi 0, %s167
      %s184 = sphi 0, %s168
      %s190 = sphi 0, %s192
      %s193 = sphi 0, %s190
      %s194 = sphi 0, %s193
      %s210 = sphi 0, %s194
      %s216 = sphi 0, %s218
      %s219 = sphi 0, %s216
      %s220 = sphi 0, %s219
      %s236 = sphi 0, %s220
      %s242 = sphi 0, %s244
      %s245 = sphi 0, %s242
      %s246 = sphi 0, %s245
      %s262 = sphi 0, %s246
      %s268 = sphi 0, %s270
      %s271 = sphi 0, %s268
      %s272 = sphi 0, %s271
      %s288 = sphi 0, %s272
      %s294 = sphi 0, %s296
      %s297 = sphi 0, %s294
      %s298 = sphi 0, %s297
      %s314 = sphi 0, %s298
      %s320 = sphi 0, %s322
      %s323 = sphi 0, %s320
      %s324 = sphi 0, %s323
      %s340 = sphi 0, %s324
      %s346 = sphi 0, %s348
      %s349 = sphi 0, %s346
      %s350 = sphi 0, %s349
      %s366 = sphi 0, %s350
      %s372 = sphi 0, %s374
      %s375 = sphi 0, %s372
      %s376 = sphi 0, %s375
      %s392 = sphi 0, %s376
      %s398 = sphi 0, %s400
      %s401 = sphi 0, %s398
      %s402 = sphi 0, %s401
      %s418 = sphi 0, %s402
      %s422 = sphi 0, %s422
      %s424 = sphi 0, %s422
      %s425 = sphi 0, %s424
      %s439 = sphi 0, %s425
      %s443 = sphi 0, %s443
      %s445 = sphi 0, %s443
      %s446 = sphi 0, %s445
      %s460 = sphi 0, %s446
      %s464 = sphi 0, %s464
      %s466 = sphi 0, %s464
      %s467 = sphi 0, %s466
      %s481 = sphi 0, %s467
      %s485 = sphi 0, %s485
      %s487 = sphi 0, %s485
      %s488 = sphi 0, %s487
      %s502 = sphi 0, %s488
      %s506 = sphi 0, %s506
      %s508 = sphi 0, %s506
      %s509 = sphi 0, %s508
      %s523 = sphi 0, %s509
      %s529 = sphi 0, %s531
      %s532 = sphi 0, %s529
      %s533 = sphi 0, %s532
      %s549 = sphi 0, %s533
    $region4: #{tpu_custom_call.1} parent=1 // loop_header_branch
      %35 = sbr.rel (%p33) target = $region8
    $region5: #{tpu_custom_call.1} parent=1 // loop_body
      %s37 = ssub.s32 %s32, 1
      %s38 = ssub.s32 %s32, 2
      %s45 = sadd.s32 1, %s40
      %p46 = scmp.ge.s32.totalorder %s45, 2
      %s47 = scalar_select %p46, 0, %s45
      %s48 = sadd.s32 1, %s39
      %s49 = scalar_select %p46, %s48, %s39
      %p50 = scmp.ge.s32.totalorder %s49, 2
      %s51 = scalar_select %p50, 0, %s49
      %s52 = ssub.s32 %s39, %s51
      %p53 = scmp.eq.s32.totalorder %s52, 0
      %s55 = sadd.s32 %s54, 1
      %s56 = scalar_select %p53, %s54, %s55
      %p59 = pneg %p53
      %p60 = scmp.eq.s32.totalorder %s32, 3
      %p61 = por %p59, %p60
      %p62 = scmp.ne.s32.totalorder %s54, %s57
      %p63 = scmp.eq.s32.totalorder %s32, 0
      %p64 = por %p62, %p63
      %p65 = scmp.ne.s32.totalorder %s54, %s57
      %p66 = scmp.eq.s32.totalorder %s37, 3
      %p67 = por %p65, %p66
      %p68 = scmp.ne.s32.totalorder %s57, %s58
      %p69 = scmp.eq.s32.totalorder %s37, 0
      %p70 = por %p68, %p69
      %p71 = scmp.ne.s32.totalorder %s57, %s58
      %p72 = scmp.eq.s32.totalorder %s38, 3
      %p73 = por %p71, %p72
      %p75 = scmp.ne.s32.totalorder %s58, %s74
      %p76 = scmp.eq.s32.totalorder %s38, 0
      %p77 = por %p75, %p76
      %s79 = sadd.s32 %s78, 1
      %p82 = scmp.eq.s32.totalorder %s32, 3
      %p83 = scmp.ne.s32.totalorder %s78, %s80
      %p84 = scmp.eq.s32.totalorder %s32, 0
      %p85 = por %p83, %p84
      %p86 = scmp.ne.s32.totalorder %s78, %s80
      %p87 = scmp.eq.s32.totalorder %s37, 3
      %p88 = por %p86, %p87
      %p89 = scmp.ne.s32.totalorder %s80, %s81
      %p90 = scmp.eq.s32.totalorder %s37, 0
      %p91 = por %p89, %p90
      %p92 = scmp.ne.s32.totalorder %s80, %s81
      %p93 = scmp.eq.s32.totalorder %s38, 3
      %p94 = por %p92, %p93
      %p96 = scmp.ne.s32.totalorder %s81, %s95
      %p97 = scmp.eq.s32.totalorder %s38, 0
      %p98 = por %p96, %p97
      %s100 = sadd.s32 %s99, 1
      %p103 = scmp.eq.s32.totalorder %s32, 3
      %p104 = scmp.ne.s32.totalorder %s99, %s101
      %p105 = scmp.eq.s32.totalorder %s32, 0
      %p106 = por %p104, %p105
      %p107 = scmp.ne.s32.totalorder %s99, %s101
      %p108 = scmp.eq.s32.totalorder %s37, 3
      %p109 = por %p107, %p108
      %p110 = scmp.ne.s32.totalorder %s101, %s102
      %p111 = scmp.eq.s32.totalorder %s37, 0
      %p112 = por %p110, %p111
      %p113 = scmp.ne.s32.totalorder %s101, %s102
      %p114 = scmp.eq.s32.totalorder %s38, 3
      %p115 = por %p113, %p114
      %p117 = scmp.ne.s32.totalorder %s102, %s116
      %p118 = scmp.eq.s32.totalorder %s38, 0
      %p119 = por %p117, %p118
      %s121 = sadd.s32 %s120, 1
      %p124 = scmp.eq.s32.totalorder %s32, 3
      %p125 = scmp.ne.s32.totalorder %s120, %s122
      %p126 = scmp.eq.s32.totalorder %s32, 0
      %p127 = por %p125, %p126
      %p128 = scmp.ne.s32.totalorder %s120, %s122
      %p129 = scmp.eq.s32.totalorder %s37, 3
      %p130 = por %p128, %p129
      %p131 = scmp.ne.s32.totalorder %s122, %s123
      %p132 = scmp.eq.s32.totalorder %s37, 0
      %p133 = por %p131, %p132
      %p134 = scmp.ne.s32.totalorder %s122, %s123
      %p135 = scmp.eq.s32.totalorder %s38, 3
      %p136 = por %p134, %p135
      %p138 = scmp.ne.s32.totalorder %s123, %s137
      %p139 = scmp.eq.s32.totalorder %s38, 0
      %p140 = por %p138, %p139
      %s142 = sadd.s32 %s141, 1
      %p145 = scmp.eq.s32.totalorder %s32, 3
      %p146 = scmp.ne.s32.totalorder %s141, %s143
      %p147 = scmp.eq.s32.totalorder %s32, 0
      %p148 = por %p146, %p147
      %p149 = scmp.ne.s32.totalorder %s141, %s143
      %p150 = scmp.eq.s32.totalorder %s37, 3
      %p151 = por %p149, %p150
      %p152 = scmp.ne.s32.totalorder %s143, %s144
      %p153 = scmp.eq.s32.totalorder %s37, 0
      %p154 = por %p152, %p153
      %p155 = scmp.ne.s32.totalorder %s143, %s144
      %p156 = scmp.eq.s32.totalorder %s38, 3
      %p157 = por %p155, %p156
      %p159 = scmp.ne.s32.totalorder %s144, %s158
      %p160 = scmp.eq.s32.totalorder %s38, 0
      %p161 = por %p159, %p160
      %s162 = ssub.s32 %s40, %s47
      %p163 = scmp.eq.s32.totalorder %s162, 0
      %s165 = sadd.s32 %s164, 1
      %s166 = scalar_select %p163, %s164, %s165
      %p169 = pneg %p163
      %p170 = scmp.eq.s32.totalorder %s32, 3
      %p171 = por %p169, %p170
      %p172 = scmp.ne.s32.totalorder %s164, %s167
      %p173 = scmp.eq.s32.totalorder %s32, 0
      %p174 = por %p172, %p173
      %p175 = scmp.ne.s32.totalorder %s164, %s167
      %p176 = scmp.eq.s32.totalorder %s37, 3
      %p177 = por %p175, %p176
      %p178 = scmp.ne.s32.totalorder %s167, %s168
      %p179 = scmp.eq.s32.totalorder %s37, 0
      %p180 = por %p178, %p179
      %p181 = scmp.ne.s32.totalorder %s167, %s168
      %p182 = scmp.eq.s32.totalorder %s38, 3
      %p183 = por %p181, %p182
      %p185 = scmp.ne.s32.totalorder %s168, %s184
      %p186 = scmp.eq.s32.totalorder %s38, 0
      %p187 = por %p185, %p186
      %s188 = ssub.s32 %s40, %s47
      %p189 = scmp.eq.s32.totalorder %s188, 0
      %s191 = sadd.s32 %s190, 1
      %s192 = scalar_select %p189, %s190, %s191
      %p195 = pneg %p189
      %p196 = scmp.eq.s32.totalorder %s32, 3
      %p197 = por %p195, %p196
      %p198 = scmp.ne.s32.totalorder %s190, %s193
      %p199 = scmp.eq.s32.totalorder %s32, 0
      %p200 = por %p198, %p199
      %p201 = scmp.ne.s32.totalorder %s190, %s193
      %p202 = scmp.eq.s32.totalorder %s37, 3
      %p203 = por %p201, %p202
      %p204 = scmp.ne.s32.totalorder %s193, %s194
      %p205 = scmp.eq.s32.totalorder %s37, 0
      %p206 = por %p204, %p205
      %p207 = scmp.ne.s32.totalorder %s193, %s194
      %p208 = scmp.eq.s32.totalorder %s38, 3
      %p209 = por %p207, %p208
      %p211 = scmp.ne.s32.totalorder %s194, %s210
      %p212 = scmp.eq.s32.totalorder %s38, 0
      %p213 = por %p211, %p212
      %s214 = ssub.s32 %s40, %s47
      %p215 = scmp.eq.s32.totalorder %s214, 0
      %s217 = sadd.s32 %s216, 1
      %s218 = scalar_select %p215, %s216, %s217
      %p221 = pneg %p215
      %p222 = scmp.eq.s32.totalorder %s32, 3
      %p223 = por %p221, %p222
      %p224 = scmp.ne.s32.totalorder %s216, %s219
      %p225 = scmp.eq.s32.totalorder %s32, 0
      %p226 = por %p224, %p225
      %p227 = scmp.ne.s32.totalorder %s216, %s219
      %p228 = scmp.eq.s32.totalorder %s37, 3
      %p229 = por %p227, %p228
      %p230 = scmp.ne.s32.totalorder %s219, %s220
      %p231 = scmp.eq.s32.totalorder %s37, 0
      %p232 = por %p230, %p231
      %p233 = scmp.ne.s32.totalorder %s219, %s220
      %p234 = scmp.eq.s32.totalorder %s38, 3
      %p235 = por %p233, %p234
      %p237 = scmp.ne.s32.totalorder %s220, %s236
      %p238 = scmp.eq.s32.totalorder %s38, 0
      %p239 = por %p237, %p238
      %s240 = ssub.s32 %s40, %s47
      %p241 = scmp.eq.s32.totalorder %s240, 0
      %s243 = sadd.s32 %s242, 1
      %s244 = scalar_select %p241, %s242, %s243
      %p247 = pneg %p241
      %p248 = scmp.eq.s32.totalorder %s32, 3
      %p249 = por %p247, %p248
      %p250 = scmp.ne.s32.totalorder %s242, %s245
      %p251 = scmp.eq.s32.totalorder %s32, 0
      %p252 = por %p250, %p251
      %p253 = scmp.ne.s32.totalorder %s242, %s245
      %p254 = scmp.eq.s32.totalorder %s37, 3
      %p255 = por %p253, %p254
      %p256 = scmp.ne.s32.totalorder %s245, %s246
      %p257 = scmp.eq.s32.totalorder %s37, 0
      %p258 = por %p256, %p257
      %p259 = scmp.ne.s32.totalorder %s245, %s246
      %p260 = scmp.eq.s32.totalorder %s38, 3
      %p261 = por %p259, %p260
      %p263 = scmp.ne.s32.totalorder %s246, %s262
      %p264 = scmp.eq.s32.totalorder %s38, 0
      %p265 = por %p263, %p264
      %s266 = ssub.s32 %s40, %s47
      %p267 = scmp.eq.s32.totalorder %s266, 0
      %s269 = sadd.s32 %s268, 1
      %s270 = scalar_select %p267, %s268, %s269
      %p273 = pneg %p267
      %p274 = scmp.eq.s32.totalorder %s32, 3
      %p275 = por %p273, %p274
      %p276 = scmp.ne.s32.totalorder %s268, %s271
      %p277 = scmp.eq.s32.totalorder %s32, 0
      %p278 = por %p276, %p277
      %p279 = scmp.ne.s32.totalorder %s268, %s271
      %p280 = scmp.eq.s32.totalorder %s37, 3
      %p281 = por %p279, %p280
      %p282 = scmp.ne.s32.totalorder %s271, %s272
      %p283 = scmp.eq.s32.totalorder %s37, 0
      %p284 = por %p282, %p283
      %p285 = scmp.ne.s32.totalorder %s271, %s272
      %p286 = scmp.eq.s32.totalorder %s38, 3
      %p287 = por %p285, %p286
      %p289 = scmp.ne.s32.totalorder %s272, %s288
      %p290 = scmp.eq.s32.totalorder %s38, 0
      %p291 = por %p289, %p290
      %s292 = ssub.s32 %s40, %s47
      %p293 = scmp.eq.s32.totalorder %s292, 0
      %s295 = sadd.s32 %s294, 1
      %s296 = scalar_select %p293, %s294, %s295
      %p299 = pneg %p293
      %p300 = scmp.eq.s32.totalorder %s32, 3
      %p301 = por %p299, %p300
      %p302 = scmp.ne.s32.totalorder %s294, %s297
      %p303 = scmp.eq.s32.totalorder %s32, 0
      %p304 = por %p302, %p303
      %p305 = scmp.ne.s32.totalorder %s294, %s297
      %p306 = scmp.eq.s32.totalorder %s37, 3
      %p307 = por %p305, %p306
      %p308 = scmp.ne.s32.totalorder %s297, %s298
      %p309 = scmp.eq.s32.totalorder %s37, 0
      %p310 = por %p308, %p309
      %p311 = scmp.ne.s32.totalorder %s297, %s298
      %p312 = scmp.eq.s32.totalorder %s38, 3
      %p313 = por %p311, %p312
      %p315 = scmp.ne.s32.totalorder %s298, %s314
      %p316 = scmp.eq.s32.totalorder %s38, 0
      %p317 = por %p315, %p316
      %s318 = ssub.s32 %s40, %s47
      %p319 = scmp.eq.s32.totalorder %s318, 0
      %s321 = sadd.s32 %s320, 1
      %s322 = scalar_select %p319, %s320, %s321
      %p325 = pneg %p319
      %p326 = scmp.eq.s32.totalorder %s32, 3
      %p327 = por %p325, %p326
      %p328 = scmp.ne.s32.totalorder %s320, %s323
      %p329 = scmp.eq.s32.totalorder %s32, 0
      %p330 = por %p328, %p329
      %p331 = scmp.ne.s32.totalorder %s320, %s323
      %p332 = scmp.eq.s32.totalorder %s37, 3
      %p333 = por %p331, %p332
      %p334 = scmp.ne.s32.totalorder %s323, %s324
      %p335 = scmp.eq.s32.totalorder %s37, 0
      %p336 = por %p334, %p335
      %p337 = scmp.ne.s32.totalorder %s323, %s324
      %p338 = scmp.eq.s32.totalorder %s38, 3
      %p339 = por %p337, %p338
      %p341 = scmp.ne.s32.totalorder %s324, %s340
      %p342 = scmp.eq.s32.totalorder %s38, 0
      %p343 = por %p341, %p342
      %s344 = ssub.s32 %s40, %s47
      %p345 = scmp.eq.s32.totalorder %s344, 0
      %s347 = sadd.s32 %s346, 1
      %s348 = scalar_select %p345, %s346, %s347
      %p351 = pneg %p345
      %p352 = scmp.eq.s32.totalorder %s32, 3
      %p353 = por %p351, %p352
      %p354 = scmp.ne.s32.totalorder %s346, %s349
      %p355 = scmp.eq.s32.totalorder %s32, 0
      %p356 = por %p354, %p355
      %p357 = scmp.ne.s32.totalorder %s346, %s349
      %p358 = scmp.eq.s32.totalorder %s37, 3
      %p359 = por %p357, %p358
      %p360 = scmp.ne.s32.totalorder %s349, %s350
      %p361 = scmp.eq.s32.totalorder %s37, 0
      %p362 = por %p360, %p361
      %p363 = scmp.ne.s32.totalorder %s349, %s350
      %p364 = scmp.eq.s32.totalorder %s38, 3
      %p365 = por %p363, %p364
      %p367 = scmp.ne.s32.totalorder %s350, %s366
      %p368 = scmp.eq.s32.totalorder %s38, 0
      %p369 = por %p367, %p368
      %s370 = ssub.s32 %s40, %s47
      %p371 = scmp.eq.s32.totalorder %s370, 0
      %s373 = sadd.s32 %s372, 1
      %s374 = scalar_select %p371, %s372, %s373
      %p377 = pneg %p371
      %p378 = scmp.eq.s32.totalorder %s32, 3
      %p379 = por %p377, %p378
      %p380 = scmp.ne.s32.totalorder %s372, %s375
      %p381 = scmp.eq.s32.totalorder %s32, 0
      %p382 = por %p380, %p381
      %p383 = scmp.ne.s32.totalorder %s372, %s375
      %p384 = scmp.eq.s32.totalorder %s37, 3
      %p385 = por %p383, %p384
      %p386 = scmp.ne.s32.totalorder %s375, %s376
      %p387 = scmp.eq.s32.totalorder %s37, 0
      %p388 = por %p386, %p387
      %p389 = scmp.ne.s32.totalorder %s375, %s376
      %p390 = scmp.eq.s32.totalorder %s38, 3
      %p391 = por %p389, %p390
      %p393 = scmp.ne.s32.totalorder %s376, %s392
      %p394 = scmp.eq.s32.totalorder %s38, 0
      %p395 = por %p393, %p394
      %s396 = ssub.s32 %s40, %s47
      %p397 = scmp.eq.s32.totalorder %s396, 0
      %s399 = sadd.s32 %s398, 1
      %s400 = scalar_select %p397, %s398, %s399
      %p403 = pneg %p397
      %p404 = scmp.eq.s32.totalorder %s32, 3
      %p405 = por %p403, %p404
      %p406 = scmp.ne.s32.totalorder %s398, %s401
      %p407 = scmp.eq.s32.totalorder %s32, 0
      %p408 = por %p406, %p407
      %p409 = scmp.ne.s32.totalorder %s398, %s401
      %p410 = scmp.eq.s32.totalorder %s37, 3
      %p411 = por %p409, %p410
      %p412 = scmp.ne.s32.totalorder %s401, %s402
      %p413 = scmp.eq.s32.totalorder %s37, 0
      %p414 = por %p412, %p413
      %p415 = scmp.ne.s32.totalorder %s401, %s402
      %p416 = scmp.eq.s32.totalorder %s38, 3
      %p417 = por %p415, %p416
      %p419 = scmp.ne.s32.totalorder %s402, %s418
      %p420 = scmp.eq.s32.totalorder %s38, 0
      %p421 = por %p419, %p420
      %s423 = sadd.s32 %s422, 1
      %p426 = scmp.eq.s32.totalorder %s32, 3
      %p427 = scmp.ne.s32.totalorder %s422, %s424
      %p428 = scmp.eq.s32.totalorder %s32, 0
      %p429 = por %p427, %p428
      %p430 = scmp.ne.s32.totalorder %s422, %s424
      %p431 = scmp.eq.s32.totalorder %s37, 3
      %p432 = por %p430, %p431
      %p433 = scmp.ne.s32.totalorder %s424, %s425
      %p434 = scmp.eq.s32.totalorder %s37, 0
      %p435 = por %p433, %p434
      %p436 = scmp.ne.s32.totalorder %s424, %s425
      %p437 = scmp.eq.s32.totalorder %s38, 3
      %p438 = por %p436, %p437
      %p440 = scmp.ne.s32.totalorder %s425, %s439
      %p441 = scmp.eq.s32.totalorder %s38, 0
      %p442 = por %p440, %p441
      %s444 = sadd.s32 %s443, 1
      %p447 = scmp.eq.s32.totalorder %s32, 3
      %p448 = scmp.ne.s32.totalorder %s443, %s445
      %p449 = scmp.eq.s32.totalorder %s32, 0
      %p450 = por %p448, %p449
      %p451 = scmp.ne.s32.totalorder %s443, %s445
      %p452 = scmp.eq.s32.totalorder %s37, 3
      %p453 = por %p451, %p452
      %p454 = scmp.ne.s32.totalorder %s445, %s446
      %p455 = scmp.eq.s32.totalorder %s37, 0
      %p456 = por %p454, %p455
      %p457 = scmp.ne.s32.totalorder %s445, %s446
      %p458 = scmp.eq.s32.totalorder %s38, 3
      %p459 = por %p457, %p458
      %p461 = scmp.ne.s32.totalorder %s446, %s460
      %p462 = scmp.eq.s32.totalorder %s38, 0
      %p463 = por %p461, %p462
      %s465 = sadd.s32 %s464, 1
      %p468 = scmp.eq.s32.totalorder %s32, 3
      %p469 = scmp.ne.s32.totalorder %s464, %s466
      %p470 = scmp.eq.s32.totalorder %s32, 0
      %p471 = por %p469, %p470
      %p472 = scmp.ne.s32.totalorder %s464, %s466
      %p473 = scmp.eq.s32.totalorder %s37, 3
      %p474 = por %p472, %p473
      %p475 = scmp.ne.s32.totalorder %s466, %s467
      %p476 = scmp.eq.s32.totalorder %s37, 0
      %p477 = por %p475, %p476
      %p478 = scmp.ne.s32.totalorder %s466, %s467
      %p479 = scmp.eq.s32.totalorder %s38, 3
      %p480 = por %p478, %p479
      %p482 = scmp.ne.s32.totalorder %s467, %s481
      %p483 = scmp.eq.s32.totalorder %s38, 0
      %p484 = por %p482, %p483
      %s486 = sadd.s32 %s485, 1
      %p489 = scmp.eq.s32.totalorder %s32, 3
      %p490 = scmp.ne.s32.totalorder %s485, %s487
      %p491 = scmp.eq.s32.totalorder %s32, 0
      %p492 = por %p490, %p491
      %p493 = scmp.ne.s32.totalorder %s485, %s487
      %p494 = scmp.eq.s32.totalorder %s37, 3
      %p495 = por %p493, %p494
      %p496 = scmp.ne.s32.totalorder %s487, %s488
      %p497 = scmp.eq.s32.totalorder %s37, 0
      %p498 = por %p496, %p497
      %p499 = scmp.ne.s32.totalorder %s487, %s488
      %p500 = scmp.eq.s32.totalorder %s38, 3
      %p501 = por %p499, %p500
      %p503 = scmp.ne.s32.totalorder %s488, %s502
      %p504 = scmp.eq.s32.totalorder %s38, 0
      %p505 = por %p503, %p504
      %s507 = sadd.s32 %s506, 1
      %p510 = scmp.eq.s32.totalorder %s32, 3
      %p511 = scmp.ne.s32.totalorder %s506, %s508
      %p512 = scmp.eq.s32.totalorder %s32, 0
      %p513 = por %p511, %p512
      %p514 = scmp.ne.s32.totalorder %s506, %s508
      %p515 = scmp.eq.s32.totalorder %s37, 3
      %p516 = por %p514, %p515
      %p517 = scmp.ne.s32.totalorder %s508, %s509
      %p518 = scmp.eq.s32.totalorder %s37, 0
      %p519 = por %p517, %p518
      %p520 = scmp.ne.s32.totalorder %s508, %s509
      %p521 = scmp.eq.s32.totalorder %s38, 3
      %p522 = por %p520, %p521
      %p524 = scmp.ne.s32.totalorder %s509, %s523
      %p525 = scmp.eq.s32.totalorder %s38, 0
      %p526 = por %p524, %p525
      %s527 = ssub.s32 %s39, %s51
      %p528 = scmp.eq.s32.totalorder %s527, 0
      %s530 = sadd.s32 %s529, 1
      %s531 = scalar_select %p528, %s529, %s530
      %p534 = pneg %p528
      %p535 = scmp.eq.s32.totalorder %s32, 3
      %p536 = por %p534, %p535
      %p537 = scmp.ne.s32.totalorder %s529, %s532
      %p538 = scmp.eq.s32.totalorder %s32, 0
      %p539 = por %p537, %p538
      %p540 = scmp.ne.s32.totalorder %s529, %s532
      %p541 = scmp.eq.s32.totalorder %s37, 3
      %p542 = por %p540, %p541
      %p543 = scmp.ne.s32.totalorder %s532, %s533
      %p544 = scmp.eq.s32.totalorder %s37, 0
      %p545 = por %p543, %p544
      %p546 = scmp.ne.s32.totalorder %s532, %s533
      %p547 = scmp.eq.s32.totalorder %s38, 3
      %p548 = por %p546, %p547
      %p550 = scmp.ne.s32.totalorder %s533, %s549
      %p551 = scmp.eq.s32.totalorder %s38, 0
      %p552 = por %p550, %p551
      %p553 = scmp.le.s32.totalorder 1, %s32
      %p554 = scmp.lt.s32.totalorder %s32, 5
      %p555 = pnand %p553, %p554
      %p556 = pneg %p555
      // Predicated region
      $region9: #{tpu_custom_call.1} parent=5 // pred_check
        _
      $region10: #{tpu_custom_call.1} parent=5 // pred_check_branch
        %558 = sbr.rel (%p555) target = $region12
      $region11: #{tpu_custom_call.1} parent=5 // pred_region
        %s559 = ssub.s32 %s32, 1
        // Predicated region
        $region13: #{tpu_custom_call.1} parent=11 // pred_check
          %p560 = pneg %p91
        $region14: #{tpu_custom_call.1} parent=11 // pred_check_branch
          %562 = sbr.rel (%p560) target = $region16
        $region15: #{tpu_custom_call.1} parent=11 // pred_region
          _
        $region16: #{tpu_custom_call.1} parent=11 // pred_fallthru
          _
        // Predicated region
        $region17: #{tpu_custom_call.1} parent=11 // pred_check
          %p563 = pneg %p112
        $region18: #{tpu_custom_call.1} parent=11 // pred_check_branch
          %565 = sbr.rel (%p563) target = $region20
        $region19: #{tpu_custom_call.1} parent=11 // pred_region
          _
        $region20: #{tpu_custom_call.1} parent=11 // pred_fallthru
          _
        // Predicated region
        $region21: #{tpu_custom_call.1} parent=11 // pred_check
          %p566 = pneg %p133
        $region22: #{tpu_custom_call.1} parent=11 // pred_check_branch
          %568 = sbr.rel (%p566) target = $region24
        $region23: #{tpu_custom_call.1} parent=11 // pred_region
          _
        $region24: #{tpu_custom_call.1} parent=11 // pred_fallthru
          _
        // Predicated region
        $region25: #{tpu_custom_call.1} parent=11 // pred_check
          %p569 = pneg %p154
        $region26: #{tpu_custom_call.1} parent=11 // pred_check_branch
          %571 = sbr.rel (%p569) target = $region28
        $region27: #{tpu_custom_call.1} parent=11 // pred_region
          _
        $region28: #{tpu_custom_call.1} parent=11 // pred_fallthru
          _
        // Predicated region
        $region29: #{tpu_custom_call.1} parent=11 // pred_check
          %p572 = pneg %p435
        $region30: #{tpu_custom_call.1} parent=11 // pred_check_branch
          %574 = sbr.rel (%p572) target = $region32
        $region31: #{tpu_custom_call.1} parent=11 // pred_region
          _
        $region32: #{tpu_custom_call.1} parent=11 // pred_fallthru
          _
        // Predicated region
        $region33: #{tpu_custom_call.1} parent=11 // pred_check
          %p575 = pneg %p456
        $region34: #{tpu_custom_call.1} parent=11 // pred_check_branch
          %577 = sbr.rel (%p575) target = $region36
        $region35: #{tpu_custom_call.1} parent=11 // pred_region
          _
        $region36: #{tpu_custom_call.1} parent=11 // pred_fallthru
          _
        // Predicated region
        $region37: #{tpu_custom_call.1} parent=11 // pred_check
          %p578 = pneg %p477
        $region38: #{tpu_custom_call.1} parent=11 // pred_check_branch
          %580 = sbr.rel (%p578) target = $region40
        $region39: #{tpu_custom_call.1} parent=11 // pred_region
          %s582 = ssub.s32 16, 16
          %583 = vsyncadd [#allocation7], %s582
          %s585 = sshll.u32 %s17, 4
          %s586 = int_to_ptr.vmem [resolvable:$true] %s585
          %588 = dma.vmem_to_smem %s586, 16, [#allocation5], [#allocation7]
        $region40: #{tpu_custom_call.1} parent=11 // pred_fallthru
          _
        // Predicated region
        $region41: #{tpu_custom_call.1} parent=11 // pred_check
          %p589 = pneg %p498
        $region42: #{tpu_custom_call.1} parent=11 // pred_check_branch
          %591 = sbr.rel (%p589) target = $region44
        $region43: #{tpu_custom_call.1} parent=11 // pred_region
          %s593 = ssub.s32 16, 16
          %594 = vsyncadd [#allocation9], %s593
          %s596 = sshll.u32 %s18, 4
          %s597 = int_to_ptr.vmem [resolvable:$true] %s596
          %599 = dma.vmem_to_smem %s597, 16, [#allocation8], [#allocation9]
        $region44: #{tpu_custom_call.1} parent=11 // pred_fallthru
          _
        // Predicated region
        $region45: #{tpu_custom_call.1} parent=11 // pred_check
          %p600 = pneg %p519
        $region46: #{tpu_custom_call.1} parent=11 // pred_check_branch
          %602 = sbr.rel (%p600) target = $region48
        $region47: #{tpu_custom_call.1} parent=11 // pred_region
          _
        $region48: #{tpu_custom_call.1} parent=11 // pred_fallthru
          _
      $region12: #{tpu_custom_call.1} parent=5 // pred_fallthru
        _
      %p603 = scmp.lt.s32.totalorder %s32, 4
      // Predicated region
      $region49: #{tpu_custom_call.1} parent=5 // pred_check
        %p604 = pneg %p603
      $region50: #{tpu_custom_call.1} parent=5 // pred_check_branch
        %606 = sbr.rel (%p604) target = $region52
      $region51: #{tpu_custom_call.1} parent=5 // pred_region
        // Predicated region
        $region53: #{tpu_custom_call.1} parent=51 // pred_check
          %p607 = pneg %p64
        $region54: #{tpu_custom_call.1} parent=51 // pred_check_branch
          %609 = sbr.rel (%p607) target = $region56
        $region55: #{tpu_custom_call.1} parent=51 // pred_region
          %p610 = scmp.lt.s32.totalorder %s39, 1
          %s611 = scalar_select %p610, %s39, 1
          %s612 = smul.addr %s611, 2
          %s613 = smul.addr %s612, 8
          %s614 = scalar_lea.vmem %s0, %s613
        $region56: #{tpu_custom_call.1} parent=51 // pred_fallthru
          _
        // Predicated region
        $region57: #{tpu_custom_call.1} parent=51 // pred_check
          %p615 = pneg %p174
        $region58: #{tpu_custom_call.1} parent=51 // pred_check_branch
          %617 = sbr.rel (%p615) target = $region60
        $region59: #{tpu_custom_call.1} parent=51 // pred_region
          %p618 = scmp.lt.s32.totalorder %s40, 1
          %s619 = scalar_select %p618, %s40, 1
          %s620 = smul.addr %s619, 8
          %s621 = smul.addr %s620, 8
          %s622 = scalar_lea.vmem %s5, %s621
        $region60: #{tpu_custom_call.1} parent=51 // pred_fallthru
          _
        // Predicated region
        $region61: #{tpu_custom_call.1} parent=51 // pred_check
          %p623 = pneg %p200
        $region62: #{tpu_custom_call.1} parent=51 // pred_check_branch
          %625 = sbr.rel (%p623) target = $region64
        $region63: #{tpu_custom_call.1} parent=51 // pred_region
          %p626 = scmp.lt.s32.totalorder %s40, 1
          %s627 = scalar_select %p626, %s40, 1
          %s628 = smul.addr %s627, 8
          %s629 = smul.addr %s628, 8
          %s630 = scalar_lea.vmem %s6, %s629
        $region64: #{tpu_custom_call.1} parent=51 // pred_fallthru
          _
        // Predicated region
        $region65: #{tpu_custom_call.1} parent=51 // pred_check
          %p631 = pneg %p226
        $region66: #{tpu_custom_call.1} parent=51 // pred_check_branch
          %633 = sbr.rel (%p631) target = $region68
        $region67: #{tpu_custom_call.1} parent=51 // pred_region
          %p634 = scmp.lt.s32.totalorder %s40, 1
          %s635 = scalar_select %p634, %s40, 1
          %s636 = smul.addr %s635, 8
          %s637 = smul.addr %s636, 8
          %s638 = scalar_lea.vmem %s7, %s637
        $region68: #{tpu_custom_call.1} parent=51 // pred_fallthru
          _
        // Predicated region
        $region69: #{tpu_custom_call.1} parent=51 // pred_check
          %p639 = pneg %p252
        $region70: #{tpu_custom_call.1} parent=51 // pred_check_branch
          %641 = sbr.rel (%p639) target = $region72
        $region71: #{tpu_custom_call.1} parent=51 // pred_region
          %p642 = scmp.lt.s32.totalorder %s40, 1
          %s643 = scalar_select %p642, %s40, 1
          %s644 = smul.addr %s643, 8
          %s645 = smul.addr %s644, 8
          %s646 = scalar_lea.vmem %s8, %s645
        $region72: #{tpu_custom_call.1} parent=51 // pred_fallthru
          _
        // Predicated region
        $region73: #{tpu_custom_call.1} parent=51 // pred_check
          %p647 = pneg %p278
        $region74: #{tpu_custom_call.1} parent=51 // pred_check_branch
          %649 = sbr.rel (%p647) target = $region76
        $region75: #{tpu_custom_call.1} parent=51 // pred_region
          %p650 = scmp.lt.s32.totalorder %s40, 1
          %s651 = scalar_select %p650, %s40, 1
          %s652 = smul.addr %s651, 8
          %s653 = smul.addr %s652, 8
          %s654 = scalar_lea.vmem %s9, %s653
        $region76: #{tpu_custom_call.1} parent=51 // pred_fallthru
          _
        // Predicated region
        $region77: #{tpu_custom_call.1} parent=51 // pred_check
          %p655 = pneg %p304
        $region78: #{tpu_custom_call.1} parent=51 // pred_check_branch
          %657 = sbr.rel (%p655) target = $region80
        $region79: #{tpu_custom_call.1} parent=51 // pred_region
          %p658 = scmp.lt.s32.totalorder %s40, 1
          %s659 = scalar_select %p658, %s40, 1
          %s660 = smul.addr %s659, 8
          %s661 = smul.addr %s660, 8
          %s662 = scalar_lea.vmem %s10, %s661
        $region80: #{tpu_custom_call.1} parent=51 // pred_fallthru
          _
        // Predicated region
        $region81: #{tpu_custom_call.1} parent=51 // pred_check
          %p663 = pneg %p330
        $region82: #{tpu_custom_call.1} parent=51 // pred_check_branch
          %665 = sbr.rel (%p663) target = $region84
        $region83: #{tpu_custom_call.1} parent=51 // pred_region
          %p666 = scmp.lt.s32.totalorder %s40, 1
          %s667 = scalar_select %p666, %s40, 1
          %s668 = smul.addr %s667, 8
          %s669 = smul.addr %s668, 8
          %s670 = scalar_lea.vmem %s11, %s669
        $region84: #{tpu_custom_call.1} parent=51 // pred_fallthru
          _
        // Predicated region
        $region85: #{tpu_custom_call.1} parent=51 // pred_check
          %p671 = pneg %p356
        $region86: #{tpu_custom_call.1} parent=51 // pred_check_branch
          %673 = sbr.rel (%p671) target = $region88
        $region87: #{tpu_custom_call.1} parent=51 // pred_region
          %p674 = scmp.lt.s32.totalorder %s40, 1
          %s675 = scalar_select %p674, %s40, 1
          %s676 = smul.addr %s675, 8
          %s677 = smul.addr %s676, 8
          %s678 = scalar_lea.vmem %s12, %s677
        $region88: #{tpu_custom_call.1} parent=51 // pred_fallthru
          _
        // Predicated region
        $region89: #{tpu_custom_call.1} parent=51 // pred_check
          %p679 = pneg %p382
        $region90: #{tpu_custom_call.1} parent=51 // pred_check_branch
          %681 = sbr.rel (%p679) target = $region92
        $region91: #{tpu_custom_call.1} parent=51 // pred_region
          %p682 = scmp.lt.s32.totalorder %s40, 1
          %s683 = scalar_select %p682, %s40, 1
          %s684 = smul.addr %s683, 8
          %s685 = smul.addr %s684, 8
          %s686 = scalar_lea.vmem %s13, %s685
        $region92: #{tpu_custom_call.1} parent=51 // pred_fallthru
          _
        // Predicated region
        $region93: #{tpu_custom_call.1} parent=51 // pred_check
          %p687 = pneg %p408
        $region94: #{tpu_custom_call.1} parent=51 // pred_check_branch
          %689 = sbr.rel (%p687) target = $region96
        $region95: #{tpu_custom_call.1} parent=51 // pred_region
          %p690 = scmp.lt.s32.totalorder %s40, 1
          %s691 = scalar_select %p690, %s40, 1
          %s692 = smul.addr %s691, 8
          %s693 = smul.addr %s692, 8
          %s694 = scalar_lea.vmem %s14, %s693
        $region96: #{tpu_custom_call.1} parent=51 // pred_fallthru
          _
      $region52: #{tpu_custom_call.1} parent=5 // pred_fallthru
        _
      %p695 = scmp.le.s32.totalorder 1, %s32
      %p696 = scmp.lt.s32.totalorder %s32, 5
      %p697 = pnand %p695, %p696
      %p698 = pneg %p697
      // Predicated region
      $region97: #{tpu_custom_call.1} parent=5 // pred_check
        _
      $region98: #{tpu_custom_call.1} parent=5 // pred_check_branch
        %700 = sbr.rel (%p697) target = $region100
      $region99: #{tpu_custom_call.1} parent=5 // pred_region
        %s701 = ssub.s32 %s32, 1
        // Predicated region
        $region101: #{tpu_custom_call.1} parent=99 // pred_check
          %p702 = pneg %p477
        $region102: #{tpu_custom_call.1} parent=99 // pred_check_branch
          %704 = sbr.rel (%p702) target = $region104
        $region103: #{tpu_custom_call.1} parent=99 // pred_region
          %705 = dma.done [#allocation7], 16
        $region104: #{tpu_custom_call.1} parent=99 // pred_fallthru
          _
        // Predicated region
        $region105: #{tpu_custom_call.1} parent=99 // pred_check
          %p706 = pneg %p498
        $region106: #{tpu_custom_call.1} parent=99 // pred_check_branch
          %708 = sbr.rel (%p706) target = $region108
        $region107: #{tpu_custom_call.1} parent=99 // pred_region
          %709 = dma.done [#allocation9], 16
        $region108: #{tpu_custom_call.1} parent=99 // pred_fallthru
          _
        %710 = sfence
        %p711 = scmp.lt.s32.totalorder %s41, 1
        %s712 = scalar_select %p711, %s41, 1
        %s713 = smul.addr %s712, 2
        %s714 = smul.addr %s713, 8
        %s715 = scalar_lea.vmem %s0, %s714
        %p716 = pneg %p70
        %p717 = pneg %p67
        %p718 = pneg %p91
        %p719 = pneg %p88
        %p720 = pneg %p112
        %p721 = pneg %p109
        %p722 = pneg %p133
        %p723 = pneg %p130
        %p724 = pneg %p154
        %p725 = pneg %p151
        %p726 = scmp.lt.s32.totalorder %s42, 1
        %s727 = scalar_select %p726, %s42, 1
        %s728 = smul.addr %s727, 8
        %s729 = smul.addr %s728, 8
        %s730 = scalar_lea.vmem %s5, %s729
        %p731 = pneg %p180
        %p732 = pneg %p177
        %p733 = scmp.lt.s32.totalorder %s42, 1
        %s734 = scalar_select %p733, %s42, 1
        %s735 = smul.addr %s734, 8
        %s736 = smul.addr %s735, 8
        %s737 = scalar_lea.vmem %s6, %s736
        %p738 = pneg %p206
        %p739 = pneg %p203
        %p740 = scmp.lt.s32.totalorder %s42, 1
        %s741 = scalar_select %p740, %s42, 1
        %s742 = smul.addr %s741, 8
        %s743 = smul.addr %s742, 8
        %s744 = scalar_lea.vmem %s7, %s743
        %p745 = pneg %p232
        %p746 = pneg %p229
        %p747 = scmp.lt.s32.totalorder %s42, 1
        %s748 = scalar_select %p747, %s42, 1
        %s749 = smul.addr %s748, 8
        %s750 = smul.addr %s749, 8
        %s751 = scalar_lea.vmem %s8, %s750
        %p752 = pneg %p258
        %p753 = pneg %p255
        %p754 = scmp.lt.s32.totalorder %s42, 1
        %s755 = scalar_select %p754, %s42, 1
        %s756 = smul.addr %s755, 8
        %s757 = smul.addr %s756, 8
        %s758 = scalar_lea.vmem %s9, %s757
        %p759 = pneg %p284
        %p760 = pneg %p281
        %p761 = scmp.lt.s32.totalorder %s42, 1
        %s762 = scalar_select %p761, %s42, 1
        %s763 = smul.addr %s762, 8
        %s764 = smul.addr %s763, 8
        %s765 = scalar_lea.vmem %s10, %s764
        %p766 = pneg %p310
        %p767 = pneg %p307
        %p768 = scmp.lt.s32.totalorder %s42, 1
        %s769 = scalar_select %p768, %s42, 1
        %s770 = smul.addr %s769, 8
        %s771 = smul.addr %s770, 8
        %s772 = scalar_lea.vmem %s11, %s771
        %p773 = pneg %p336
        %p774 = pneg %p333
        %p775 = scmp.lt.s32.totalorder %s42, 1
        %s776 = scalar_select %p775, %s42, 1
        %s777 = smul.addr %s776, 8
        %s778 = smul.addr %s777, 8
        %s779 = scalar_lea.vmem %s12, %s778
        %p780 = pneg %p362
        %p781 = pneg %p359
        %p782 = scmp.lt.s32.totalorder %s42, 1
        %s783 = scalar_select %p782, %s42, 1
        %s784 = smul.addr %s783, 8
        %s785 = smul.addr %s784, 8
        %s786 = scalar_lea.vmem %s13, %s785
        %p787 = pneg %p388
        %p788 = pneg %p385
        %p789 = scmp.lt.s32.totalorder %s42, 1
        %s790 = scalar_select %p789, %s42, 1
        %s791 = smul.addr %s790, 8
        %s792 = smul.addr %s791, 8
        %s793 = scalar_lea.vmem %s14, %s792
        %p794 = pneg %p414
        %p795 = pneg %p411
        %p796 = pneg %p435
        %p797 = pneg %p432
        %p798 = pneg %p456
        %p799 = pneg %p453
        %p800 = pneg %p477
        %p801 = pneg %p474
        %p802 = pneg %p498
        %p803 = pneg %p495
        %p804 = pneg %p519
        %p805 = pneg %p516
        %p806 = pneg %p545
        %p807 = pneg %p542
        %s808 = sand.u32 %s532, 1
        %s809 = scalar_lea.sflag [#allocation6], %s808
        %s810 = sand.u32 %s532, 1
        %s811 = smul.addr %s810, 32
        %s812 = scalar_lea.vmem [#allocation10], %s811
        %p813 = scmp.lt.s32.totalorder %s41, 1
        %s814 = scalar_select %p813, %s41, 1
        %s815 = smul.addr %s814, 2
        %s816 = smul.addr %s815, 8
        %s817 = scalar_lea.vmem %s0, %s816
        %p818 = scmp.lt.s32.totalorder %s42, 1
        %s819 = scalar_select %p818, %s42, 1
        %s820 = smul.addr %s819, 8
        %s821 = smul.addr %s820, 8
        %s822 = scalar_lea.vmem %s5, %s821
        %p823 = scmp.lt.s32.totalorder %s42, 1
        %s824 = scalar_select %p823, %s42, 1
        %s825 = smul.addr %s824, 8
        %s826 = smul.addr %s825, 8
        %s827 = scalar_lea.vmem %s6, %s826
        %p828 = scmp.lt.s32.totalorder %s42, 1
        %s829 = scalar_select %p828, %s42, 1
        %s830 = smul.addr %s829, 8
        %s831 = smul.addr %s830, 8
        %s832 = scalar_lea.vmem %s7, %s831
        %p833 = scmp.lt.s32.totalorder %s42, 1
        %s834 = scalar_select %p833, %s42, 1
        %s835 = smul.addr %s834, 8
        %s836 = smul.addr %s835, 8
        %s837 = scalar_lea.vmem %s8, %s836
        %p838 = scmp.lt.s32.totalorder %s42, 1
        %s839 = scalar_select %p838, %s42, 1
        %s840 = smul.addr %s839, 8
        %s841 = smul.addr %s840, 8
        %s842 = scalar_lea.vmem %s9, %s841
        %p843 = scmp.lt.s32.totalorder %s42, 1
        %s844 = scalar_select %p843, %s42, 1
        %s845 = smul.addr %s844, 8
        %s846 = smul.addr %s845, 8
        %s847 = scalar_lea.vmem %s10, %s846
        %p848 = scmp.lt.s32.totalorder %s42, 1
        %s849 = scalar_select %p848, %s42, 1
        %s850 = smul.addr %s849, 8
        %s851 = smul.addr %s850, 8
        %s852 = scalar_lea.vmem %s11, %s851
        %p853 = scmp.lt.s32.totalorder %s42, 1
        %s854 = scalar_select %p853, %s42, 1
        %s855 = smul.addr %s854, 8
        %s856 = smul.addr %s855, 8
        %s857 = scalar_lea.vmem %s12, %s856
        %p858 = scmp.lt.s32.totalorder %s42, 1
        %s859 = scalar_select %p858, %s42, 1
        %s860 = smul.addr %s859, 8
        %s861 = smul.addr %s860, 8
        %s862 = scalar_lea.vmem %s13, %s861
        %p863 = scmp.lt.s32.totalorder %s42, 1
        %s864 = scalar_select %p863, %s42, 1
        %s865 = smul.addr %s864, 8
        %s866 = smul.addr %s865, 8
        %s867 = scalar_lea.vmem %s14, %s866
        %v868 = vlaneseq
        %v869 = vand.u32 %v868, 127
        %p870 = scmp.eq.s32.totalorder %s42, 0
        // Predicated region
        $region109: #{tpu_custom_call.1} parent=99 // pred_check
          %p871 = pneg %p870
        $region110: #{tpu_custom_call.1} parent=99 // pred_check_branch
          %873 = sbr.rel (%p871) target = $region112
        $region111: #{tpu_custom_call.1} parent=99 // pred_region
          %v874 = vld [vmem:[%s817] sm:$0xff]
          %v875 = vld [vmem:[%s817 + $0x8] sm:$0xff]
          %v876 = vld [vmem:[%s1] sm:$0xff]
          %v877 = vld [vmem:[%s1 + $0x8] sm:$0xff]
          %v878 = vld [vmem:[%s2] sm:$0xff]
          %v879 = vld [vmem:[%s2 + $0x8] sm:$0xff]
          %v880 = vadd.f32 %v874, %v875
          %881 = vadd.xlane.f32.xlu0 %v880
          %v882 = vpop.xlane.xlu0 %881
          %v883 = vrot.slane %v882, 4
          %v884 = vadd.f32 %v882, %v883
          %v885 = vrot.slane %v884, 2
          %v886 = vadd.f32 %v884, %v885
          %v887 = vrot.slane %v886, 1
          %v888 = vadd.f32 %v886, %v887
          %s889 = vtos %v888
          %v890 = vmul.f32 %v874, %v874
          %v891 = vmul.f32 %v875, %v875
          %v892 = vadd.f32 %v890, %v891
          %893 = vadd.xlane.f32.xlu0 %v892
          %v894 = vpop.xlane.xlu0 %893
          %v895 = vrot.slane %v894, 4
          %v896 = vadd.f32 %v894, %v895
          %v897 = vrot.slane %v896, 2
          %v898 = vadd.f32 %v896, %v897
          %v899 = vrot.slane %v898, 1
          %v900 = vadd.f32 %v898, %v899
          %s901 = vtos %v900
          %s902 = smul.f32 %s889, 0.00048828125
          %s903 = smul.f32 %s901, 0.00048828125
          %s904 = smul.f32 %s902, %s902
          %s905 = ssub.f32 %s903, %s904
          %s906 = sadd.f32 %s905, 1e-08
          %v907 = vstv %s906
          %v908 = vrsqrt.pop %v907
          %s909 = vtos %v908
          %v910 = vstv %s909
          %v911 = vmul.f32 %v910, %v876
          %v912 = vmul.f32 %v910, %v877
          %v913 = vstv %s902
          %v914 = vsub.f32 %v874, %v913
          %v915 = vsub.f32 %v875, %v913
          %917 = vset.pattern.permute.xlu0 0
          %918 = vperm.xlu0 %917, %v911
          %v919 = vpop.permute.xlu0 %918
          %922 = vset.pattern.permute.xlu0 0
          %923 = vperm.xlu0 %922, %v912
          %v924 = vpop.permute.xlu0 %923
          %v926 = vmul.f32 %v914, %v919
          %v927 = vmul.f32 %v915, %v924
          %929 = vset.pattern.permute.xlu0 0
          %930 = vperm.xlu0 %929, %v878
          %v931 = vpop.permute.xlu0 %930
          %934 = vset.pattern.permute.xlu0 0
          %935 = vperm.xlu0 %934, %v879
          %v936 = vpop.permute.xlu0 %935
          %v938 = vadd.f32 %v926, %v931
          %v939 = vadd.f32 %v927, %v936
          %v940 = vld [vmem:[%s3] sm:$0xff]
          %v941 = vld [vmem:[%s3 + $0x8] sm:$0xff]
          %v942 = vld [vmem:[%s4] sm:$0xff]
          %v943 = vld [vmem:[%s4 + $0x8] sm:$0xff]
          %945 = vset.pattern.permute.xlu0 0
          %946 = vperm.xlu0 %945, %v942
          %v947 = vpop.permute.xlu0 %946
          %950 = vset.pattern.permute.xlu0 0
          %951 = vperm.xlu0 %950, %v943
          %v952 = vpop.permute.xlu0 %951
          %vm954 = vcmask 130048
          %v956 = vsel %vm954, %v940, 0
          %v959 = vsel %vm954, %v941, 0
          %961 = vmatprep.subr.mxu0 0.0
          %962 = vmatpush1.msra.mxu0 %v938
          %963 = vmatprep.subr.mxu0 0.0
          %964 = vmatpush1.msra.mxu0 %v939
          %965 = vmatprep.subr.mxu0 0.0
          %966 = vmatpush1.msra.mxu0 0.0
          %967 = vmatprep.subr.mxu0 0.0
          %968 = vmatpush1.msra.mxu0 0.0
          %969 = vmatprep.subr.mxu0 0.0
          %970 = vmatpush1.msra.mxu0 0.0
          %971 = vmatprep.subr.mxu0 0.0
          %972 = vmatpush1.msra.mxu0 0.0
          %973 = vmatprep.subr.mxu0 0.0
          %974 = vmatpush1.msra.mxu0 0.0
          %975 = vmatprep.subr.mxu0 0.0
          %976 = vmatpush1.msra.mxu0 0.0
          %977 = vmatprep.subr.mxu0 0.0
          %978 = vmatpush1.msra.mxu0 0.0
          %979 = vmatprep.subr.mxu0 0.0
          %980 = vmatpush1.msra.mxu0 0.0
          %981 = vmatprep.subr.mxu0 0.0
          %982 = vmatpush1.msra.mxu0 0.0
          %983 = vmatprep.subr.mxu0 0.0
          %984 = vmatpush1.msra.mxu0 0.0
          %985 = vmatprep.subr.mxu0 0.0
          %986 = vmatpush1.msra.mxu0 0.0
          %987 = vmatprep.subr.mxu0 0.0
          %988 = vmatpush1.msra.mxu0 0.0
          %989 = vmatprep.subr.mxu0 0.0
          %990 = vmatpush1.msra.mxu0 0.0
          %991 = vmatprep.subr.mxu0 0.0
          %992 = vmatpush1.msra.mxu0 0.0
          %993 = vmatprep.subr.mxu0 0.0
          %994 = vmatpush1.msra.mxu0 0.0
          %995 = vmatprep.subr.mxu0 0.0
          %996 = vmatpush1.msra.mxu0 0.0
          %997 = vmatprep.subr.mxu0 0.0
          %998 = vmatpush1.msra.mxu0 0.0
          %999 = vmatprep.subr.mxu0 0.0
          %1000 = vmatpush1.msra.mxu0 0.0
          %1001 = vmatprep.subr.mxu0 0.0
          %1002 = vmatpush1.msra.mxu0 0.0
          %1003 = vmatprep.subr.mxu0 0.0
          %1004 = vmatpush1.msra.mxu0 0.0
          %1005 = vmatprep.subr.mxu0 0.0
          %1006 = vmatpush1.msra.mxu0 0.0
          %1007 = vmatprep.subr.mxu0 0.0
          %1008 = vmatpush1.msra.mxu0 0.0
          %1009 = vmatprep.subr.mxu0 0.0
          %1010 = vmatpush1.msra.mxu0 0.0
          %1011 = vmatprep.subr.mxu0 0.0
          %1012 = vmatpush1.msra.mxu0 0.0
          %1013 = vmatprep.subr.mxu0 0.0
          %1014 = vmatpush1.msra.mxu0 0.0
          %1015 = vmatprep.subr.mxu0 0.0
          %1016 = vmatpush1.msra.mxu0 0.0
          %1017 = vmatprep.subr.mxu0 0.0
          %1018 = vmatpush1.msra.mxu0 0.0
          %1019 = vmatprep.subr.mxu0 0.0
          %1020 = vmatpush1.msra.mxu0 0.0
          %1021 = vmatprep.subr.mxu0 0.0
          %1022 = vmatpush1.msra.mxu0 0.0
          %1023 = vmatprep.subr.mxu0 0.0
          %1024 = vmatpush1.msra.mxu0 0.0
          %1025 = vmatprep.mubr.f32.mxu0 0.0
          %1026 = vmatmul.mubr.f32.gmra.mrb[0].mxu0 %v956
          %v1027 = vpop.f32.mrb[0].mxu0
          %v1028 = vadd.f32 %v947, %v1027
          %v1029 = vpop.f32.mrb[0].mxu0
          %1030 = vmatprep.mubr.f32.mxu0 0.0
          %1031 = vmatmul.mubr.f32.gmra.mrb[0].mxu0 %v959
          %v1032 = vpop.f32.mrb[0].mxu0
          %v1033 = vadd.f32 %v952, %v1032
          %v1034 = vpop.f32.mrb[0].mxu0
          %1035 = vdwg.mxu0
          %1036 = vst [vmem:[#allocation2] sm:$0xff] %v1028
          %1037 = vst [vmem:[#allocation2 + $0x8] sm:$0xff] %v1033
          %1038 = vst [vmem:[#allocation3] sm:$0xff] 0.0
          %1039 = vst [vmem:[#allocation3 + $0x8] sm:$0xff] 0.0
        $region112: #{tpu_custom_call.1} parent=99 // pred_fallthru
          _
        %s1040 = smul.u32 %s42, 2
        %s1041 = sld [smem:[#allocation5 + %s1040]]
        %s1042 = sld [smem:[#allocation8 + %s1040]]
        %v1043 = vld [vmem:[#allocation2] sm:$0xff]
        %v1044 = vld [vmem:[#allocation2 + $0x8] sm:$0xff]
        %v1045 = vld [vmem:[%s822] sm:$0xff]
        %v1046 = vld [vmem:[%s822 + $0x8] sm:$0xff]
        %v1047 = vld [vmem:[%s822 + $0x10] sm:$0xff]
        %v1048 = vld [vmem:[%s822 + $0x18] sm:$0xff]
        %v1049 = vld [vmem:[%s827] sm:$0xff]
        %v1050 = vld [vmem:[%s827 + $0x8] sm:$0xff]
        %v1051 = vld [vmem:[%s827 + $0x10] sm:$0xff]
        %v1052 = vld [vmem:[%s827 + $0x18] sm:$0xff]
        %1054 = vset.pattern.permute.xlu0 0
        %1055 = vperm.xlu0 %1054, %v1049
        %v1056 = vpop.permute.xlu0 %1055
        %1059 = vset.pattern.permute.xlu0 0
        %1060 = vperm.xlu0 %1059, %v1050
        %v1061 = vpop.permute.xlu0 %1060
        %1064 = vset.pattern.permute.xlu0 0
        %1065 = vperm.xlu0 %1064, %v1051
        %v1066 = vpop.permute.xlu0 %1065
        %1069 = vset.pattern.permute.xlu0 0
        %1070 = vperm.xlu0 %1069, %v1052
        %v1071 = vpop.permute.xlu0 %1070
        %vm1073 = vcmask 130048
        %v1075 = vsel %vm1073, %v1045, 0
        %v1078 = vsel %vm1073, %v1046, 0
        %v1081 = vsel %vm1073, %v1047, 0
        %v1084 = vsel %vm1073, %v1048, 0
        %1086 = vmatprep.subr.mxu0 0.0
        %1087 = vmatpush1.msra.mxu0 %v1043
        %1088 = vmatprep.subr.mxu0 0.0
        %1089 = vmatpush1.msra.mxu0 %v1044
        %1090 = vmatprep.subr.mxu0 0.0
        %1091 = vmatpush1.msra.mxu0 0.0
        %1092 = vmatprep.subr.mxu0 0.0
        %1093 = vmatpush1.msra.mxu0 0.0
        %1094 = vmatprep.subr.mxu0 0.0
        %1095 = vmatpush1.msra.mxu0 0.0
        %1096 = vmatprep.subr.mxu0 0.0
        %1097 = vmatpush1.msra.mxu0 0.0
        %1098 = vmatprep.subr.mxu0 0.0
        %1099 = vmatpush1.msra.mxu0 0.0
        %1100 = vmatprep.subr.mxu0 0.0
        %1101 = vmatpush1.msra.mxu0 0.0
        %1102 = vmatprep.subr.mxu0 0.0
        %1103 = vmatpush1.msra.mxu0 0.0
        %1104 = vmatprep.subr.mxu0 0.0
        %1105 = vmatpush1.msra.mxu0 0.0
        %1106 = vmatprep.subr.mxu0 0.0
        %1107 = vmatpush1.msra.mxu0 0.0
        %1108 = vmatprep.subr.mxu0 0.0
        %1109 = vmatpush1.msra.mxu0 0.0
        %1110 = vmatprep.subr.mxu0 0.0
        %1111 = vmatpush1.msra.mxu0 0.0
        %1112 = vmatprep.subr.mxu0 0.0
        %1113 = vmatpush1.msra.mxu0 0.0
        %1114 = vmatprep.subr.mxu0 0.0
        %1115 = vmatpush1.msra.mxu0 0.0
        %1116 = vmatprep.subr.mxu0 0.0
        %1117 = vmatpush1.msra.mxu0 0.0
        %1118 = vmatprep.subr.mxu0 0.0
        %1119 = vmatpush1.msra.mxu0 0.0
        %1120 = vmatprep.subr.mxu0 0.0
        %1121 = vmatpush1.msra.mxu0 0.0
        %1122 = vmatprep.subr.mxu0 0.0
        %1123 = vmatpush1.msra.mxu0 0.0
        %1124 = vmatprep.subr.mxu0 0.0
        %1125 = vmatpush1.msra.mxu0 0.0
        %1126 = vmatprep.subr.mxu0 0.0
        %1127 = vmatpush1.msra.mxu0 0.0
        %1128 = vmatprep.subr.mxu0 0.0
        %1129 = vmatpush1.msra.mxu0 0.0
        %1130 = vmatprep.subr.mxu0 0.0
        %1131 = vmatpush1.msra.mxu0 0.0
        %1132 = vmatprep.subr.mxu0 0.0
        %1133 = vmatpush1.msra.mxu0 0.0
        %1134 = vmatprep.subr.mxu0 0.0
        %1135 = vmatpush1.msra.mxu0 0.0
        %1136 = vmatprep.subr.mxu0 0.0
        %1137 = vmatpush1.msra.mxu0 0.0
        %1138 = vmatprep.subr.mxu0 0.0
        %1139 = vmatpush1.msra.mxu0 0.0
        %1140 = vmatprep.subr.mxu0 0.0
        %1141 = vmatpush1.msra.mxu0 0.0
        %1142 = vmatprep.subr.mxu0 0.0
        %1143 = vmatpush1.msra.mxu0 0.0
        %1144 = vmatprep.subr.mxu0 0.0
        %1145 = vmatpush1.msra.mxu0 0.0
        %1146 = vmatprep.subr.mxu0 0.0
        %1147 = vmatpush1.msra.mxu0 0.0
        %1148 = vmatprep.subr.mxu0 0.0
        %1149 = vmatpush1.msra.mxu0 0.0
        %1150 = vmatprep.mubr.f32.mxu0 0.0
        %1151 = vmatmul.mubr.f32.gmra.mrb[0].mxu0 %v1075
        %v1152 = vpop.f32.mrb[0].mxu0
        %v1153 = vadd.f32 %v1056, %v1152
        %v1154 = vpop.f32.mrb[0].mxu0
        %1155 = vmatprep.mubr.f32.mxu0 0.0
        %1156 = vmatmul.mubr.f32.gmra.mrb[0].mxu0 %v1078
        %v1157 = vpop.f32.mrb[0].mxu0
        %v1158 = vadd.f32 %v1061, %v1157
        %v1159 = vpop.f32.mrb[0].mxu0
        %1160 = vmatprep.mubr.f32.mxu0 0.0
        %1161 = vmatmul.mubr.f32.gmra.mrb[0].mxu0 %v1081
        %v1162 = vpop.f32.mrb[0].mxu0
        %v1163 = vadd.f32 %v1066, %v1162
        %v1164 = vpop.f32.mrb[0].mxu0
        %1165 = vmatprep.mubr.f32.mxu0 0.0
        %1166 = vmatmul.mubr.f32.gmra.mrb[0].mxu0 %v1084
        %v1167 = vpop.f32.mrb[0].mxu0
        %v1168 = vadd.f32 %v1071, %v1167
        %v1169 = vpop.f32.mrb[0].mxu0
        %1170 = vdwg.mxu0
        %vm1171 = vcmp.ge.f32.partialorder %v1153, 0.0
        %vm1172 = vcmp.ge.f32.partialorder %v1158, 0.0
        %vm1173 = vcmp.ge.f32.partialorder %v1163, 0.0
        %vm1174 = vcmp.ge.f32.partialorder %v1168, 0.0
        %v1175 = vstv %s1041
        %v1176 = vmul.f32 %v1175, %v1153
        %v1177 = vmul.f32 %v1175, %v1158
        %v1178 = vmul.f32 %v1175, %v1163
        %v1179 = vmul.f32 %v1175, %v1168
        %v1180 = vsel %vm1171, %v1153, %v1176
        %v1181 = vsel %vm1172, %v1158, %v1177
        %v1182 = vsel %vm1173, %v1163, %v1178
        %v1183 = vsel %vm1174, %v1168, %v1179
        %v1184 = vld [vmem:[%s832] sm:$0xff]
        %v1185 = vld [vmem:[%s832 + $0x8] sm:$0xff]
        %v1186 = vld [vmem:[%s832 + $0x10] sm:$0xff]
        %v1187 = vld [vmem:[%s832 + $0x18] sm:$0xff]
        %v1188 = vld [vmem:[%s837] sm:$0xff]
        %v1189 = vld [vmem:[%s837 + $0x8] sm:$0xff]
        %v1190 = vld [vmem:[%s837 + $0x10] sm:$0xff]
        %v1191 = vld [vmem:[%s837 + $0x18] sm:$0xff]
        %v1192 = vadd.f32 %v1180, %v1181
        %v1193 = vadd.f32 %v1192, %v1182
        %v1194 = vadd.f32 %v1193, %v1183
        %1195 = vadd.xlane.f32.xlu0 %v1194
        %v1196 = vpop.xlane.xlu0 %1195
        %v1197 = vrot.slane %v1196, 4
        %v1198 = vadd.f32 %v1196, %v1197
        %v1199 = vrot.slane %v1198, 2
        %v1200 = vadd.f32 %v1198, %v1199
        %v1201 = vrot.slane %v1200, 1
        %v1202 = vadd.f32 %v1200, %v1201
        %s1203 = vtos %v1202
        %v1204 = vmul.f32 %v1180, %v1180
        %v1205 = vmul.f32 %v1181, %v1181
        %v1206 = vmul.f32 %v1182, %v1182
        %v1207 = vmul.f32 %v1183, %v1183
        %v1208 = vadd.f32 %v1204, %v1205
        %v1209 = vadd.f32 %v1208, %v1206
        %v1210 = vadd.f32 %v1209, %v1207
        %1211 = vadd.xlane.f32.xlu0 %v1210
        %v1212 = vpop.xlane.xlu0 %1211
        %v1213 = vrot.slane %v1212, 4
        %v1214 = vadd.f32 %v1212, %v1213
        %v1215 = vrot.slane %v1214, 2
        %v1216 = vadd.f32 %v1214, %v1215
        %v1217 = vrot.slane %v1216, 1
        %v1218 = vadd.f32 %v1216, %v1217
        %s1219 = vtos %v1218
        %s1220 = smul.f32 %s1203, 0.00024414063
        %s1221 = smul.f32 %s1219, 0.00024414063
        %s1222 = smul.f32 %s1220, %s1220
        %s1223 = ssub.f32 %s1221, %s1222
        %s1224 = sadd.f32 %s1223, 1e-08
        %v1225 = vstv %s1224
        %v1226 = vrsqrt.pop %v1225
        %s1227 = vtos %v1226
        %v1228 = vstv %s1227
        %v1229 = vmul.f32 %v1228, %v1184
        %v1230 = vmul.f32 %v1228, %v1185
        %v1231 = vmul.f32 %v1228, %v1186
        %v1232 = vmul.f32 %v1228, %v1187
        %v1233 = vstv %s1220
        %v1234 = vsub.f32 %v1180, %v1233
        %v1235 = vsub.f32 %v1181, %v1233
        %v1236 = vsub.f32 %v1182, %v1233
        %v1237 = vsub.f32 %v1183, %v1233
        %1239 = vset.pattern.permute.xlu0 0
        %1240 = vperm.xlu0 %1239, %v1229
        %v1241 = vpop.permute.xlu0 %1240
        %1244 = vset.pattern.permute.xlu0 0
        %1245 = vperm.xlu0 %1244, %v1230
        %v1246 = vpop.permute.xlu0 %1245
        %1249 = vset.pattern.permute.xlu0 0
        %1250 = vperm.xlu0 %1249, %v1231
        %v1251 = vpop.permute.xlu0 %1250
        %1254 = vset.pattern.permute.xlu0 0
        %1255 = vperm.xlu0 %1254, %v1232
        %v1256 = vpop.permute.xlu0 %1255
        %v1258 = vmul.f32 %v1234, %v1241
        %v1259 = vmul.f32 %v1235, %v1246
        %v1260 = vmul.f32 %v1236, %v1251
        %v1261 = vmul.f32 %v1237, %v1256
        %1263 = vset.pattern.permute.xlu0 0
        %1264 = vperm.xlu0 %1263, %v1188
        %v1265 = vpop.permute.xlu0 %1264
        %1268 = vset.pattern.permute.xlu0 0
        %1269 = vperm.xlu0 %1268, %v1189
        %v1270 = vpop.permute.xlu0 %1269
        %1273 = vset.pattern.permute.xlu0 0
        %1274 = vperm.xlu0 %1273, %v1190
        %v1275 = vpop.permute.xlu0 %1274
        %1278 = vset.pattern.permute.xlu0 0
        %1279 = vperm.xlu0 %1278, %v1191
        %v1280 = vpop.permute.xlu0 %1279
        %v1282 = vadd.f32 %v1258, %v1265
        %v1283 = vadd.f32 %v1259, %v1270
        %v1284 = vadd.f32 %v1260, %v1275
        %v1285 = vadd.f32 %v1261, %v1280
        %v1286 = vld [vmem:[%s842] sm:$0xff]
        %v1287 = vld [vmem:[%s842 + $0x8] sm:$0xff]
        %v1288 = vld [vmem:[%s842 + $0x10] sm:$0xff]
        %v1289 = vld [vmem:[%s842 + $0x18] sm:$0xff]
        %vm1290 = vcmp.ge.s32.totalorder %v869, 1
        %1291 = vrot.lane.b32.xlu0 %v1282, 1
        %v1292 = vpop.permute.xlu0 %1291
        %1293 = vrot.lane.b32.xlu0 %v1283, 1
        %v1294 = vpop.permute.xlu0 %1293
        %1295 = vrot.lane.b32.xlu0 %v1284, 1
        %v1296 = vpop.permute.xlu0 %1295
        %1297 = vrot.lane.b32.xlu0 %v1285, 1
        %v1298 = vpop.permute.xlu0 %1297
        %v1299 = vsel %vm1290, 1, 0
        %vm1300 = vcmp.eq.s32.totalorder %v1299, 1
        %v1301 = vsel %vm1300, %v1292, 0.0
        %v1302 = vsel %vm1300, %v1294, 0.0
        %v1303 = vsel %vm1300, %v1296, 0.0
        %v1304 = vsel %vm1300, %v1298, 0.0
        %vm1305 = vcmp.lt.s32.totalorder %v869, 127
        %1306 = vrot.lane.b32.xlu0 %v1282, 127
        %v1307 = vpop.permute.xlu0 %1306
        %1308 = vrot.lane.b32.xlu0 %v1283, 127
        %v1309 = vpop.permute.xlu0 %1308
        %1310 = vrot.lane.b32.xlu0 %v1284, 127
        %v1311 = vpop.permute.xlu0 %1310
        %1312 = vrot.lane.b32.xlu0 %v1285, 127
        %v1313 = vpop.permute.xlu0 %1312
        %v1314 = vsel %vm1305, 1, 0
        %vm1315 = vcmp.eq.s32.totalorder %v1314, 1
        %v1316 = vsel %vm1315, %v1307, 0.0
        %v1317 = vsel %vm1315, %v1309, 0.0
        %v1318 = vsel %vm1315, %v1311, 0.0
        %v1319 = vsel %vm1315, %v1313, 0.0
        %1321 = vset.pattern.permute.xlu0 0
        %1322 = vperm.xlu0 %1321, %v1286
        %v1323 = vpop.permute.xlu0 %1322
        %1326 = vset.pattern.permute.xlu0 0
        %1327 = vperm.xlu0 %1326, %v1287
        %v1328 = vpop.permute.xlu0 %1327
        %1331 = vset.pattern.permute.xlu0 0
        %1332 = vperm.xlu0 %1331, %v1288
        %v1333 = vpop.permute.xlu0 %1332
        %1336 = vset.pattern.permute.xlu0 0
        %1337 = vperm.xlu0 %1336, %v1289
        %v1338 = vpop.permute.xlu0 %1337
        %v1340 = vmul.f32 %v1323, %v1301
        %v1341 = vmul.f32 %v1328, %v1302
        %v1342 = vmul.f32 %v1333, %v1303
        %v1343 = vmul.f32 %v1338, %v1304
        %1344 = vset.pattern.permute.xlu0 1
        %1345 = vperm.xlu0 %1344, %v1286
        %v1346 = vpop.permute.xlu0 %1345
        %1348 = vset.pattern.permute.xlu0 1
        %1349 = vperm.xlu0 %1348, %v1287
        %v1350 = vpop.permute.xlu0 %1349
        %1352 = vset.pattern.permute.xlu0 1
        %1353 = vperm.xlu0 %1352, %v1288
        %v1354 = vpop.permute.xlu0 %1353
        %1356 = vset.pattern.permute.xlu0 1
        %1357 = vperm.xlu0 %1356, %v1289
        %v1358 = vpop.permute.xlu0 %1357
        %v1360 = vmul.f32 %v1346, %v1282
        %v1361 = vmul.f32 %v1350, %v1283
        %v1362 = vmul.f32 %v1354, %v1284
        %v1363 = vmul.f32 %v1358, %v1285
        %v1364 = vadd.f32 %v1340, %v1360
        %v1365 = vadd.f32 %v1341, %v1361
        %v1366 = vadd.f32 %v1342, %v1362
        %v1367 = vadd.f32 %v1343, %v1363
        %1368 = vset.pattern.permute.xlu0 2
        %1369 = vperm.xlu0 %1368, %v1286
        %v1370 = vpop.permute.xlu0 %1369
        %1372 = vset.pattern.permute.xlu0 2
        %1373 = vperm.xlu0 %1372, %v1287
        %v1374 = vpop.permute.xlu0 %1373
        %1376 = vset.pattern.permute.xlu0 2
        %1377 = vperm.xlu0 %1376, %v1288
        %v1378 = vpop.permute.xlu0 %1377
        %1380 = vset.pattern.permute.xlu0 2
        %1381 = vperm.xlu0 %1380, %v1289
        %v1382 = vpop.permute.xlu0 %1381
        %v1384 = vmul.f32 %v1370, %v1316
        %v1385 = vmul.f32 %v1374, %v1317
        %v1386 = vmul.f32 %v1378, %v1318
        %v1387 = vmul.f32 %v1382, %v1319
        %v1388 = vadd.f32 %v1364, %v1384
        %v1389 = vadd.f32 %v1365, %v1385
        %v1390 = vadd.f32 %v1366, %v1386
        %v1391 = vadd.f32 %v1367, %v1387
        %v1392 = vld [vmem:[%s847] sm:$0xff]
        %v1393 = vld [vmem:[%s847 + $0x8] sm:$0xff]
        %v1394 = vld [vmem:[%s847 + $0x10] sm:$0xff]
        %v1395 = vld [vmem:[%s847 + $0x18] sm:$0xff]
        %1397 = vset.pattern.permute.xlu0 0
        %1398 = vperm.xlu0 %1397, %v1392
        %v1399 = vpop.permute.xlu0 %1398
        %1402 = vset.pattern.permute.xlu0 0
        %1403 = vperm.xlu0 %1402, %v1393
        %v1404 = vpop.permute.xlu0 %1403
        %1407 = vset.pattern.permute.xlu0 0
        %1408 = vperm.xlu0 %1407, %v1394
        %v1409 = vpop.permute.xlu0 %1408
        %1412 = vset.pattern.permute.xlu0 0
        %1413 = vperm.xlu0 %1412, %v1395
        %v1414 = vpop.permute.xlu0 %1413
        %v1416 = vadd.f32 %v1388, %v1399
        %v1417 = vadd.f32 %v1389, %v1404
        %v1418 = vadd.f32 %v1390, %v1409
        %v1419 = vadd.f32 %v1391, %v1414
        %vm1420 = vcmp.ge.f32.partialorder %v1416, 0.0
        %vm1421 = vcmp.ge.f32.partialorder %v1417, 0.0
        %vm1422 = vcmp.ge.f32.partialorder %v1418, 0.0
        %vm1423 = vcmp.ge.f32.partialorder %v1419, 0.0
        %v1424 = vstv %s1042
        %v1425 = vmul.f32 %v1424, %v1416
        %v1426 = vmul.f32 %v1424, %v1417
        %v1427 = vmul.f32 %v1424, %v1418
        %v1428 = vmul.f32 %v1424, %v1419
        %v1429 = vsel %vm1420, %v1416, %v1425
        %v1430 = vsel %vm1421, %v1417, %v1426
        %v1431 = vsel %vm1422, %v1418, %v1427
        %v1432 = vsel %vm1423, %v1419, %v1428
        %v1433 = vld [vmem:[%s852] sm:$0xff]
        %v1434 = vld [vmem:[%s852 + $0x8] sm:$0xff]
        %v1435 = vld [vmem:[%s852 + $0x10] sm:$0xff]
        %v1436 = vld [vmem:[%s852 + $0x18] sm:$0xff]
        %v1437 = vld [vmem:[%s857] sm:$0xff]
        %v1438 = vld [vmem:[%s857 + $0x8] sm:$0xff]
        %v1439 = vld [vmem:[%s857 + $0x10] sm:$0xff]
        %v1440 = vld [vmem:[%s857 + $0x18] sm:$0xff]
        %v1441 = vadd.f32 %v1429, %v1430
        %v1442 = vadd.f32 %v1441, %v1431
        %v1443 = vadd.f32 %v1442, %v1432
        %1444 = vadd.xlane.f32.xlu0 %v1443
        %v1445 = vpop.xlane.xlu0 %1444
        %v1446 = vrot.slane %v1445, 4
        %v1447 = vadd.f32 %v1445, %v1446
        %v1448 = vrot.slane %v1447, 2
        %v1449 = vadd.f32 %v1447, %v1448
        %v1450 = vrot.slane %v1449, 1
        %v1451 = vadd.f32 %v1449, %v1450
        %s1452 = vtos %v1451
        %v1453 = vmul.f32 %v1429, %v1429
        %v1454 = vmul.f32 %v1430, %v1430
        %v1455 = vmul.f32 %v1431, %v1431
        %v1456 = vmul.f32 %v1432, %v1432
        %v1457 = vadd.f32 %v1453, %v1454
        %v1458 = vadd.f32 %v1457, %v1455
        %v1459 = vadd.f32 %v1458, %v1456
        %1460 = vadd.xlane.f32.xlu0 %v1459
        %v1461 = vpop.xlane.xlu0 %1460
        %v1462 = vrot.slane %v1461, 4
        %v1463 = vadd.f32 %v1461, %v1462
        %v1464 = vrot.slane %v1463, 2
        %v1465 = vadd.f32 %v1463, %v1464
        %v1466 = vrot.slane %v1465, 1
        %v1467 = vadd.f32 %v1465, %v1466
        %s1468 = vtos %v1467
        %s1469 = smul.f32 %s1452, 0.00024414063
        %s1470 = smul.f32 %s1468, 0.00024414063
        %s1471 = smul.f32 %s1469, %s1469
        %s1472 = ssub.f32 %s1470, %s1471
        %s1473 = sadd.f32 %s1472, 1e-08
        %v1474 = vstv %s1473
        %v1475 = vrsqrt.pop %v1474
        %s1476 = vtos %v1475
        %v1477 = vstv %s1476
        %v1478 = vmul.f32 %v1477, %v1433
        %v1479 = vmul.f32 %v1477, %v1434
        %v1480 = vmul.f32 %v1477, %v1435
        %v1481 = vmul.f32 %v1477, %v1436
        %v1482 = vstv %s1469
        %v1483 = vsub.f32 %v1429, %v1482
        %v1484 = vsub.f32 %v1430, %v1482
        %v1485 = vsub.f32 %v1431, %v1482
        %v1486 = vsub.f32 %v1432, %v1482
        %1488 = vset.pattern.permute.xlu0 0
        %1489 = vperm.xlu0 %1488, %v1478
        %v1490 = vpop.permute.xlu0 %1489
        %1493 = vset.pattern.permute.xlu0 0
        %1494 = vperm.xlu0 %1493, %v1479
        %v1495 = vpop.permute.xlu0 %1494
        %1498 = vset.pattern.permute.xlu0 0
        %1499 = vperm.xlu0 %1498, %v1480
        %v1500 = vpop.permute.xlu0 %1499
        %1503 = vset.pattern.permute.xlu0 0
        %1504 = vperm.xlu0 %1503, %v1481
        %v1505 = vpop.permute.xlu0 %1504
        %v1507 = vmul.f32 %v1483, %v1490
        %v1508 = vmul.f32 %v1484, %v1495
        %v1509 = vmul.f32 %v1485, %v1500
        %v1510 = vmul.f32 %v1486, %v1505
        %1512 = vset.pattern.permute.xlu0 0
        %1513 = vperm.xlu0 %1512, %v1437
        %v1514 = vpop.permute.xlu0 %1513
        %1517 = vset.pattern.permute.xlu0 0
        %1518 = vperm.xlu0 %1517, %v1438
        %v1519 = vpop.permute.xlu0 %1518
        %1522 = vset.pattern.permute.xlu0 0
        %1523 = vperm.xlu0 %1522, %v1439
        %v1524 = vpop.permute.xlu0 %1523
        %1527 = vset.pattern.permute.xlu0 0
        %1528 = vperm.xlu0 %1527, %v1440
        %v1529 = vpop.permute.xlu0 %1528
        %v1531 = vadd.f32 %v1507, %v1514
        %v1532 = vadd.f32 %v1508, %v1519
        %v1533 = vadd.f32 %v1509, %v1524
        %v1534 = vadd.f32 %v1510, %v1529
        %v1535 = vld [vmem:[%s862] sm:$0xff]
        %v1536 = vld [vmem:[%s862 + $0x8] sm:$0xff]
        %v1537 = vld [vmem:[%s862 + $0x10] sm:$0xff]
        %v1538 = vld [vmem:[%s862 + $0x18] sm:$0xff]
        %v1539 = vld [vmem:[%s867] sm:$0xff]
        %v1540 = vld [vmem:[%s867 + $0x8] sm:$0xff]
        %v1541 = vld [vmem:[%s867 + $0x10] sm:$0xff]
        %v1542 = vld [vmem:[%s867 + $0x18] sm:$0xff]
        %1544 = vset.pattern.permute.xlu0 0
        %1545 = vperm.xlu0 %1544, %v1539
        %v1546 = vpop.permute.xlu0 %1545
        %1549 = vset.pattern.permute.xlu0 0
        %1550 = vperm.xlu0 %1549, %v1540
        %v1551 = vpop.permute.xlu0 %1550
        %1554 = vset.pattern.permute.xlu0 0
        %1555 = vperm.xlu0 %1554, %v1541
        %v1556 = vpop.permute.xlu0 %1555
        %1559 = vset.pattern.permute.xlu0 0
        %1560 = vperm.xlu0 %1559, %v1542
        %v1561 = vpop.permute.xlu0 %1560
        %vm1563 = vcmask 261120
        %v1565 = vsel %vm1563, %v1535, 0
        %v1568 = vsel %vm1563, %v1536, 0
        %v1571 = vsel %vm1563, %v1537, 0
        %v1574 = vsel %vm1563, %v1538, 0
        %1576 = vmatprep.subr.mxu0 0.0
        %1577 = vmatpush1.msra.mxu0 %v1531
        %1578 = vmatprep.subr.mxu0 0.0
        %1579 = vmatpush1.msra.mxu0 %v1532
        %1580 = vmatprep.subr.mxu0 0.0
        %1581 = vmatpush1.msra.mxu0 %v1533
        %1582 = vmatprep.subr.mxu0 0.0
        %1583 = vmatpush1.msra.mxu0 %v1534
        %1584 = vmatprep.subr.mxu0 0.0
        %1585 = vmatpush1.msra.mxu0 0.0
        %1586 = vmatprep.subr.mxu0 0.0
        %1587 = vmatpush1.msra.mxu0 0.0
        %1588 = vmatprep.subr.mxu0 0.0
        %1589 = vmatpush1.msra.mxu0 0.0
        %1590 = vmatprep.subr.mxu0 0.0
        %1591 = vmatpush1.msra.mxu0 0.0
        %1592 = vmatprep.subr.mxu0 0.0
        %1593 = vmatpush1.msra.mxu0 0.0
        %1594 = vmatprep.subr.mxu0 0.0
        %1595 = vmatpush1.msra.mxu0 0.0
        %1596 = vmatprep.subr.mxu0 0.0
        %1597 = vmatpush1.msra.mxu0 0.0
        %1598 = vmatprep.subr.mxu0 0.0
        %1599 = vmatpush1.msra.mxu0 0.0
        %1600 = vmatprep.subr.mxu0 0.0
        %1601 = vmatpush1.msra.mxu0 0.0
        %1602 = vmatprep.subr.mxu0 0.0
        %1603 = vmatpush1.msra.mxu0 0.0
        %1604 = vmatprep.subr.mxu0 0.0
        %1605 = vmatpush1.msra.mxu0 0.0
        %1606 = vmatprep.subr.mxu0 0.0
        %1607 = vmatpush1.msra.mxu0 0.0
        %1608 = vmatprep.subr.mxu0 0.0
        %1609 = vmatpush1.msra.mxu0 0.0
        %1610 = vmatprep.subr.mxu0 0.0
        %1611 = vmatpush1.msra.mxu0 0.0
        %1612 = vmatprep.subr.mxu0 0.0
        %1613 = vmatpush1.msra.mxu0 0.0
        %1614 = vmatprep.subr.mxu0 0.0
        %1615 = vmatpush1.msra.mxu0 0.0
        %1616 = vmatprep.subr.mxu0 0.0
        %1617 = vmatpush1.msra.mxu0 0.0
        %1618 = vmatprep.subr.mxu0 0.0
        %1619 = vmatpush1.msra.mxu0 0.0
        %1620 = vmatprep.subr.mxu0 0.0
        %1621 = vmatpush1.msra.mxu0 0.0
        %1622 = vmatprep.subr.mxu0 0.0
        %1623 = vmatpush1.msra.mxu0 0.0
        %1624 = vmatprep.subr.mxu0 0.0
        %1625 = vmatpush1.msra.mxu0 0.0
        %1626 = vmatprep.subr.mxu0 0.0
        %1627 = vmatpush1.msra.mxu0 0.0
        %1628 = vmatprep.subr.mxu0 0.0
        %1629 = vmatpush1.msra.mxu0 0.0
        %1630 = vmatprep.subr.mxu0 0.0
        %1631 = vmatpush1.msra.mxu0 0.0
        %1632 = vmatprep.subr.mxu0 0.0
        %1633 = vmatpush1.msra.mxu0 0.0
        %1634 = vmatprep.subr.mxu0 0.0
        %1635 = vmatpush1.msra.mxu0 0.0
        %1636 = vmatprep.subr.mxu0 0.0
        %1637 = vmatpush1.msra.mxu0 0.0
        %1638 = vmatprep.subr.mxu0 0.0
        %1639 = vmatpush1.msra.mxu0 0.0
        %1640 = vmatprep.mubr.f32.mxu0 0.0
        %1641 = vmatmul.mubr.f32.gmra.mrb[0].mxu0 %v1565
        %v1642 = vpop.f32.mrb[0].mxu0
        %v1643 = vadd.f32 %v1546, %v1642
        %v1644 = vpop.f32.mrb[0].mxu0
        %1645 = vmatprep.mubr.f32.mxu0 0.0
        %1646 = vmatmul.mubr.f32.gmra.mrb[0].mxu0 %v1568
        %v1647 = vpop.f32.mrb[0].mxu0
        %v1648 = vadd.f32 %v1551, %v1647
        %v1649 = vpop.f32.mrb[0].mxu0
        %1650 = vmatprep.mubr.f32.mxu0 0.0
        %1651 = vmatmul.mubr.f32.gmra.mrb[0].mxu0 %v1571
        %v1652 = vpop.f32.mrb[0].mxu0
        %v1653 = vadd.f32 %v1556, %v1652
        %v1654 = vpop.f32.mrb[0].mxu0
        %1655 = vmatprep.mubr.f32.mxu0 0.0
        %1656 = vmatmul.mubr.f32.gmra.mrb[0].mxu0 %v1574
        %v1657 = vpop.f32.mrb[0].mxu0
        %v1658 = vadd.f32 %v1561, %v1657
        %v1659 = vpop.f32.mrb[0].mxu0
        %1660 = vdwg.mxu0
        %v1661 = vadd.f32 %v1043, %v1643
        %v1662 = vadd.f32 %v1044, %v1648
        %1663 = vst [vmem:[#allocation2] sm:$0xff] %v1661
        %1664 = vst [vmem:[#allocation2 + $0x8] sm:$0xff] %v1662
        %v1665 = vld [vmem:[#allocation3] sm:$0xff]
        %v1666 = vld [vmem:[#allocation3 + $0x8] sm:$0xff]
        %v1667 = vadd.f32 %v1665, %v1653
        %v1668 = vadd.f32 %v1666, %v1658
        %1669 = vst [vmem:[#allocation3] sm:$0xff] %v1667
        %1670 = vst [vmem:[#allocation3 + $0x8] sm:$0xff] %v1668
        %s1671 = sadd.s32 %s1040, 1
        %s1672 = sld [smem:[#allocation5 + %s1671]]
        %s1673 = sld [smem:[#allocation8 + %s1671]]
        %v1674 = vld [vmem:[#allocation2] sm:$0xff]
        %v1675 = vld [vmem:[#allocation2 + $0x8] sm:$0xff]
        %s1676 = scalar_lea.vmem %s822, 32
        %v1677 = vld [vmem:[%s1676] sm:$0xff]
        %v1678 = vld [vmem:[%s1676 + $0x8] sm:$0xff]
        %v1679 = vld [vmem:[%s1676 + $0x10] sm:$0xff]
        %v1680 = vld [vmem:[%s1676 + $0x18] sm:$0xff]
        %s1681 = scalar_lea.vmem %s827, 32
        %v1682 = vld [vmem:[%s1681] sm:$0xff]
        %v1683 = vld [vmem:[%s1681 + $0x8] sm:$0xff]
        %v1684 = vld [vmem:[%s1681 + $0x10] sm:$0xff]
        %v1685 = vld [vmem:[%s1681 + $0x18] sm:$0xff]
        %1687 = vset.pattern.permute.xlu0 0
        %1688 = vperm.xlu0 %1687, %v1682
        %v1689 = vpop.permute.xlu0 %1688
        %1692 = vset.pattern.permute.xlu0 0
        %1693 = vperm.xlu0 %1692, %v1683
        %v1694 = vpop.permute.xlu0 %1693
        %1697 = vset.pattern.permute.xlu0 0
        %1698 = vperm.xlu0 %1697, %v1684
        %v1699 = vpop.permute.xlu0 %1698
        %1702 = vset.pattern.permute.xlu0 0
        %1703 = vperm.xlu0 %1702, %v1685
        %v1704 = vpop.permute.xlu0 %1703
        %v1707 = vsel %vm1073, %v1677, 0
        %v1710 = vsel %vm1073, %v1678, 0
        %v1713 = vsel %vm1073, %v1679, 0
        %v1716 = vsel %vm1073, %v1680, 0
        %1718 = vmatprep.subr.mxu0 0.0
        %1719 = vmatpush1.msra.mxu0 %v1674
        %1720 = vmatprep.subr.mxu0 0.0
        %1721 = vmatpush1.msra.mxu0 %v1675
        %1722 = vmatprep.subr.mxu0 0.0
        %1723 = vmatpush1.msra.mxu0 0.0
        %1724 = vmatprep.subr.mxu0 0.0
        %1725 = vmatpush1.msra.mxu0 0.0
        %1726 = vmatprep.subr.mxu0 0.0
        %1727 = vmatpush1.msra.mxu0 0.0
        %1728 = vmatprep.subr.mxu0 0.0
        %1729 = vmatpush1.msra.mxu0 0.0
        %1730 = vmatprep.subr.mxu0 0.0
        %1731 = vmatpush1.msra.mxu0 0.0
        %1732 = vmatprep.subr.mxu0 0.0
        %1733 = vmatpush1.msra.mxu0 0.0
        %1734 = vmatprep.subr.mxu0 0.0
        %1735 = vmatpush1.msra.mxu0 0.0
        %1736 = vmatprep.subr.mxu0 0.0
        %1737 = vmatpush1.msra.mxu0 0.0
        %1738 = vmatprep.subr.mxu0 0.0
        %1739 = vmatpush1.msra.mxu0 0.0
        %1740 = vmatprep.subr.mxu0 0.0
        %1741 = vmatpush1.msra.mxu0 0.0
        %1742 = vmatprep.subr.mxu0 0.0
        %1743 = vmatpush1.msra.mxu0 0.0
        %1744 = vmatprep.subr.mxu0 0.0
        %1745 = vmatpush1.msra.mxu0 0.0
        %1746 = vmatprep.subr.mxu0 0.0
        %1747 = vmatpush1.msra.mxu0 0.0
        %1748 = vmatprep.subr.mxu0 0.0
        %1749 = vmatpush1.msra.mxu0 0.0
        %1750 = vmatprep.subr.mxu0 0.0
        %1751 = vmatpush1.msra.mxu0 0.0
        %1752 = vmatprep.subr.mxu0 0.0
        %1753 = vmatpush1.msra.mxu0 0.0
        %1754 = vmatprep.subr.mxu0 0.0
        %1755 = vmatpush1.msra.mxu0 0.0
        %1756 = vmatprep.subr.mxu0 0.0
        %1757 = vmatpush1.msra.mxu0 0.0
        %1758 = vmatprep.subr.mxu0 0.0
        %1759 = vmatpush1.msra.mxu0 0.0
        %1760 = vmatprep.subr.mxu0 0.0
        %1761 = vmatpush1.msra.mxu0 0.0
        %1762 = vmatprep.subr.mxu0 0.0
        %1763 = vmatpush1.msra.mxu0 0.0
        %1764 = vmatprep.subr.mxu0 0.0
        %1765 = vmatpush1.msra.mxu0 0.0
        %1766 = vmatprep.subr.mxu0 0.0
        %1767 = vmatpush1.msra.mxu0 0.0
        %1768 = vmatprep.subr.mxu0 0.0
        %1769 = vmatpush1.msra.mxu0 0.0
        %1770 = vmatprep.subr.mxu0 0.0
        %1771 = vmatpush1.msra.mxu0 0.0
        %1772 = vmatprep.subr.mxu0 0.0
        %1773 = vmatpush1.msra.mxu0 0.0
        %1774 = vmatprep.subr.mxu0 0.0
        %1775 = vmatpush1.msra.mxu0 0.0
        %1776 = vmatprep.subr.mxu0 0.0
        %1777 = vmatpush1.msra.mxu0 0.0
        %1778 = vmatprep.subr.mxu0 0.0
        %1779 = vmatpush1.msra.mxu0 0.0
        %1780 = vmatprep.subr.mxu0 0.0
        %1781 = vmatpush1.msra.mxu0 0.0
        %1782 = vmatprep.mubr.f32.mxu0 0.0
        %1783 = vmatmul.mubr.f32.gmra.mrb[0].mxu0 %v1707
        %v1784 = vpop.f32.mrb[0].mxu0
        %v1785 = vadd.f32 %v1689, %v1784
        %v1786 = vpop.f32.mrb[0].mxu0
        %1787 = vmatprep.mubr.f32.mxu0 0.0
        %1788 = vmatmul.mubr.f32.gmra.mrb[0].mxu0 %v1710
        %v1789 = vpop.f32.mrb[0].mxu0
        %v1790 = vadd.f32 %v1694, %v1789
        %v1791 = vpop.f32.mrb[0].mxu0
        %1792 = vmatprep.mubr.f32.mxu0 0.0
        %1793 = vmatmul.mubr.f32.gmra.mrb[0].mxu0 %v1713
        %v1794 = vpop.f32.mrb[0].mxu0
        %v1795 = vadd.f32 %v1699, %v1794
        %v1796 = vpop.f32.mrb[0].mxu0
        %1797 = vmatprep.mubr.f32.mxu0 0.0
        %1798 = vmatmul.mubr.f32.gmra.mrb[0].mxu0 %v1716
        %v1799 = vpop.f32.mrb[0].mxu0
        %v1800 = vadd.f32 %v1704, %v1799
        %v1801 = vpop.f32.mrb[0].mxu0
        %1802 = vdwg.mxu0
        %vm1803 = vcmp.ge.f32.partialorder %v1785, 0.0
        %vm1804 = vcmp.ge.f32.partialorder %v1790, 0.0
        %vm1805 = vcmp.ge.f32.partialorder %v1795, 0.0
        %vm1806 = vcmp.ge.f32.partialorder %v1800, 0.0
        %v1807 = vstv %s1672
        %v1808 = vmul.f32 %v1807, %v1785
        %v1809 = vmul.f32 %v1807, %v1790
        %v1810 = vmul.f32 %v1807, %v1795
        %v1811 = vmul.f32 %v1807, %v1800
        %v1812 = vsel %vm1803, %v1785, %v1808
        %v1813 = vsel %vm1804, %v1790, %v1809
        %v1814 = vsel %vm1805, %v1795, %v1810
        %v1815 = vsel %vm1806, %v1800, %v1811
        %s1816 = scalar_lea.vmem %s832, 32
        %v1817 = vld [vmem:[%s1816] sm:$0xff]
        %v1818 = vld [vmem:[%s1816 + $0x8] sm:$0xff]
        %v1819 = vld [vmem:[%s1816 + $0x10] sm:$0xff]
        %v1820 = vld [vmem:[%s1816 + $0x18] sm:$0xff]
        %s1821 = scalar_lea.vmem %s837, 32
        %v1822 = vld [vmem:[%s1821] sm:$0xff]
        %v1823 = vld [vmem:[%s1821 + $0x8] sm:$0xff]
        %v1824 = vld [vmem:[%s1821 + $0x10] sm:$0xff]
        %v1825 = vld [vmem:[%s1821 + $0x18] sm:$0xff]
        %v1826 = vadd.f32 %v1812, %v1813
        %v1827 = vadd.f32 %v1826, %v1814
        %v1828 = vadd.f32 %v1827, %v1815
        %1829 = vadd.xlane.f32.xlu0 %v1828
        %v1830 = vpop.xlane.xlu0 %1829
        %v1831 = vrot.slane %v1830, 4
        %v1832 = vadd.f32 %v1830, %v1831
        %v1833 = vrot.slane %v1832, 2
        %v1834 = vadd.f32 %v1832, %v1833
        %v1835 = vrot.slane %v1834, 1
        %v1836 = vadd.f32 %v1834, %v1835
        %s1837 = vtos %v1836
        %v1838 = vmul.f32 %v1812, %v1812
        %v1839 = vmul.f32 %v1813, %v1813
        %v1840 = vmul.f32 %v1814, %v1814
        %v1841 = vmul.f32 %v1815, %v1815
        %v1842 = vadd.f32 %v1838, %v1839
        %v1843 = vadd.f32 %v1842, %v1840
        %v1844 = vadd.f32 %v1843, %v1841
        %1845 = vadd.xlane.f32.xlu0 %v1844
        %v1846 = vpop.xlane.xlu0 %1845
        %v1847 = vrot.slane %v1846, 4
        %v1848 = vadd.f32 %v1846, %v1847
        %v1849 = vrot.slane %v1848, 2
        %v1850 = vadd.f32 %v1848, %v1849
        %v1851 = vrot.slane %v1850, 1
        %v1852 = vadd.f32 %v1850, %v1851
        %s1853 = vtos %v1852
        %s1854 = smul.f32 %s1837, 0.00024414063
        %s1855 = smul.f32 %s1853, 0.00024414063
        %s1856 = smul.f32 %s1854, %s1854
        %s1857 = ssub.f32 %s1855, %s1856
        %s1858 = sadd.f32 %s1857, 1e-08
        %v1859 = vstv %s1858
        %v1860 = vrsqrt.pop %v1859
        %s1861 = vtos %v1860
        %v1862 = vstv %s1861
        %v1863 = vmul.f32 %v1862, %v1817
        %v1864 = vmul.f32 %v1862, %v1818
        %v1865 = vmul.f32 %v1862, %v1819
        %v1866 = vmul.f32 %v1862, %v1820
        %v1867 = vstv %s1854
        %v1868 = vsub.f32 %v1812, %v1867
        %v1869 = vsub.f32 %v1813, %v1867
        %v1870 = vsub.f32 %v1814, %v1867
        %v1871 = vsub.f32 %v1815, %v1867
        %1873 = vset.pattern.permute.xlu0 0
        %1874 = vperm.xlu0 %1873, %v1863
        %v1875 = vpop.permute.xlu0 %1874
        %1878 = vset.pattern.permute.xlu0 0
        %1879 = vperm.xlu0 %1878, %v1864
        %v1880 = vpop.permute.xlu0 %1879
        %1883 = vset.pattern.permute.xlu0 0
        %1884 = vperm.xlu0 %1883, %v1865
        %v1885 = vpop.permute.xlu0 %1884
        %1888 = vset.pattern.permute.xlu0 0
        %1889 = vperm.xlu0 %1888, %v1866
        %v1890 = vpop.permute.xlu0 %1889
        %v1892 = vmul.f32 %v1868, %v1875
        %v1893 = vmul.f32 %v1869, %v1880
        %v1894 = vmul.f32 %v1870, %v1885
        %v1895 = vmul.f32 %v1871, %v1890
        %1897 = vset.pattern.permute.xlu0 0
        %1898 = vperm.xlu0 %1897, %v1822
        %v1899 = vpop.permute.xlu0 %1898
        %1902 = vset.pattern.permute.xlu0 0
        %1903 = vperm.xlu0 %1902, %v1823
        %v1904 = vpop.permute.xlu0 %1903
        %1907 = vset.pattern.permute.xlu0 0
        %1908 = vperm.xlu0 %1907, %v1824
        %v1909 = vpop.permute.xlu0 %1908
        %1912 = vset.pattern.permute.xlu0 0
        %1913 = vperm.xlu0 %1912, %v1825
        %v1914 = vpop.permute.xlu0 %1913
        %v1916 = vadd.f32 %v1892, %v1899
        %v1917 = vadd.f32 %v1893, %v1904
        %v1918 = vadd.f32 %v1894, %v1909
        %v1919 = vadd.f32 %v1895, %v1914
        %s1920 = scalar_lea.vmem %s842, 32
        %v1921 = vld [vmem:[%s1920] sm:$0xff]
        %v1922 = vld [vmem:[%s1920 + $0x8] sm:$0xff]
        %v1923 = vld [vmem:[%s1920 + $0x10] sm:$0xff]
        %v1924 = vld [vmem:[%s1920 + $0x18] sm:$0xff]
        %vm1925 = vcmp.ge.s32.totalorder %v869, 2
        %1926 = vrot.lane.b32.xlu0 %v1916, 2
        %v1927 = vpop.permute.xlu0 %1926
        %1928 = vrot.lane.b32.xlu0 %v1917, 2
        %v1929 = vpop.permute.xlu0 %1928
        %1930 = vrot.lane.b32.xlu0 %v1918, 2
        %v1931 = vpop.permute.xlu0 %1930
        %1932 = vrot.lane.b32.xlu0 %v1919, 2
        %v1933 = vpop.permute.xlu0 %1932
        %v1934 = vsel %vm1925, 1, 0
        %vm1935 = vcmp.eq.s32.totalorder %v1934, 1
        %v1936 = vsel %vm1935, %v1927, 0.0
        %v1937 = vsel %vm1935, %v1929, 0.0
        %v1938 = vsel %vm1935, %v1931, 0.0
        %v1939 = vsel %vm1935, %v1933, 0.0
        %vm1940 = vcmp.lt.s32.totalorder %v869, 126
        %1941 = vrot.lane.b32.xlu0 %v1916, 126
        %v1942 = vpop.permute.xlu0 %1941
        %1943 = vrot.lane.b32.xlu0 %v1917, 126
        %v1944 = vpop.permute.xlu0 %1943
        %1945 = vrot.lane.b32.xlu0 %v1918, 126
        %v1946 = vpop.permute.xlu0 %1945
        %1947 = vrot.lane.b32.xlu0 %v1919, 126
        %v1948 = vpop.permute.xlu0 %1947
        %v1949 = vsel %vm1940, 1, 0
        %vm1950 = vcmp.eq.s32.totalorder %v1949, 1
        %v1951 = vsel %vm1950, %v1942, 0.0
        %v1952 = vsel %vm1950, %v1944, 0.0
        %v1953 = vsel %vm1950, %v1946, 0.0
        %v1954 = vsel %vm1950, %v1948, 0.0
        %1956 = vset.pattern.permute.xlu0 0
        %1957 = vperm.xlu0 %1956, %v1921
        %v1958 = vpop.permute.xlu0 %1957
        %1961 = vset.pattern.permute.xlu0 0
        %1962 = vperm.xlu0 %1961, %v1922
        %v1963 = vpop.permute.xlu0 %1962
        %1966 = vset.pattern.permute.xlu0 0
        %1967 = vperm.xlu0 %1966, %v1923
        %v1968 = vpop.permute.xlu0 %1967
        %1971 = vset.pattern.permute.xlu0 0
        %1972 = vperm.xlu0 %1971, %v1924
        %v1973 = vpop.permute.xlu0 %1972
        %v1975 = vmul.f32 %v1958, %v1936
        %v1976 = vmul.f32 %v1963, %v1937
        %v1977 = vmul.f32 %v1968, %v1938
        %v1978 = vmul.f32 %v1973, %v1939
        %1979 = vset.pattern.permute.xlu0 1
        %1980 = vperm.xlu0 %1979, %v1921
        %v1981 = vpop.permute.xlu0 %1980
        %1983 = vset.pattern.permute.xlu0 1
        %1984 = vperm.xlu0 %1983, %v1922
        %v1985 = vpop.permute.xlu0 %1984
        %1987 = vset.pattern.permute.xlu0 1
        %1988 = vperm.xlu0 %1987, %v1923
        %v1989 = vpop.permute.xlu0 %1988
        %1991 = vset.pattern.permute.xlu0 1
        %1992 = vperm.xlu0 %1991, %v1924
        %v1993 = vpop.permute.xlu0 %1992
        %v1995 = vmul.f32 %v1981, %v1916
        %v1996 = vmul.f32 %v1985, %v1917
        %v1997 = vmul.f32 %v1989, %v1918
        %v1998 = vmul.f32 %v1993, %v1919
        %v1999 = vadd.f32 %v1975, %v1995
        %v2000 = vadd.f32 %v1976, %v1996
        %v2001 = vadd.f32 %v1977, %v1997
        %v2002 = vadd.f32 %v1978, %v1998
        %2003 = vset.pattern.permute.xlu0 2
        %2004 = vperm.xlu0 %2003, %v1921
        %v2005 = vpop.permute.xlu0 %2004
        %2007 = vset.pattern.permute.xlu0 2
        %2008 = vperm.xlu0 %2007, %v1922
        %v2009 = vpop.permute.xlu0 %2008
        %2011 = vset.pattern.permute.xlu0 2
        %2012 = vperm.xlu0 %2011, %v1923
        %v2013 = vpop.permute.xlu0 %2012
        %2015 = vset.pattern.permute.xlu0 2
        %2016 = vperm.xlu0 %2015, %v1924
        %v2017 = vpop.permute.xlu0 %2016
        %v2019 = vmul.f32 %v2005, %v1951
        %v2020 = vmul.f32 %v2009, %v1952
        %v2021 = vmul.f32 %v2013, %v1953
        %v2022 = vmul.f32 %v2017, %v1954
        %v2023 = vadd.f32 %v1999, %v2019
        %v2024 = vadd.f32 %v2000, %v2020
        %v2025 = vadd.f32 %v2001, %v2021
        %v2026 = vadd.f32 %v2002, %v2022
        %s2027 = scalar_lea.vmem %s847, 32
        %v2028 = vld [vmem:[%s2027] sm:$0xff]
        %v2029 = vld [vmem:[%s2027 + $0x8] sm:$0xff]
        %v2030 = vld [vmem:[%s2027 + $0x10] sm:$0xff]
        %v2031 = vld [vmem:[%s2027 + $0x18] sm:$0xff]
        %2033 = vset.pattern.permute.xlu0 0
        %2034 = vperm.xlu0 %2033, %v2028
        %v2035 = vpop.permute.xlu0 %2034
        %2038 = vset.pattern.permute.xlu0 0
        %2039 = vperm.xlu0 %2038, %v2029
        %v2040 = vpop.permute.xlu0 %2039
        %2043 = vset.pattern.permute.xlu0 0
        %2044 = vperm.xlu0 %2043, %v2030
        %v2045 = vpop.permute.xlu0 %2044
        %2048 = vset.pattern.permute.xlu0 0
        %2049 = vperm.xlu0 %2048, %v2031
        %v2050 = vpop.permute.xlu0 %2049
        %v2052 = vadd.f32 %v2023, %v2035
        %v2053 = vadd.f32 %v2024, %v2040
        %v2054 = vadd.f32 %v2025, %v2045
        %v2055 = vadd.f32 %v2026, %v2050
        %vm2056 = vcmp.ge.f32.partialorder %v2052, 0.0
        %vm2057 = vcmp.ge.f32.partialorder %v2053, 0.0
        %vm2058 = vcmp.ge.f32.partialorder %v2054, 0.0
        %vm2059 = vcmp.ge.f32.partialorder %v2055, 0.0
        %v2060 = vstv %s1673
        %v2061 = vmul.f32 %v2060, %v2052
        %v2062 = vmul.f32 %v2060, %v2053
        %v2063 = vmul.f32 %v2060, %v2054
        %v2064 = vmul.f32 %v2060, %v2055
        %v2065 = vsel %vm2056, %v2052, %v2061
        %v2066 = vsel %vm2057, %v2053, %v2062
        %v2067 = vsel %vm2058, %v2054, %v2063
        %v2068 = vsel %vm2059, %v2055, %v2064
        %s2069 = scalar_lea.vmem %s852, 32
        %v2070 = vld [vmem:[%s2069] sm:$0xff]
        %v2071 = vld [vmem:[%s2069 + $0x8] sm:$0xff]
        %v2072 = vld [vmem:[%s2069 + $0x10] sm:$0xff]
        %v2073 = vld [vmem:[%s2069 + $0x18] sm:$0xff]
        %s2074 = scalar_lea.vmem %s857, 32
        %v2075 = vld [vmem:[%s2074] sm:$0xff]
        %v2076 = vld [vmem:[%s2074 + $0x8] sm:$0xff]
        %v2077 = vld [vmem:[%s2074 + $0x10] sm:$0xff]
        %v2078 = vld [vmem:[%s2074 + $0x18] sm:$0xff]
        %v2079 = vadd.f32 %v2065, %v2066
        %v2080 = vadd.f32 %v2079, %v2067
        %v2081 = vadd.f32 %v2080, %v2068
        %2082 = vadd.xlane.f32.xlu0 %v2081
        %v2083 = vpop.xlane.xlu0 %2082
        %v2084 = vrot.slane %v2083, 4
        %v2085 = vadd.f32 %v2083, %v2084
        %v2086 = vrot.slane %v2085, 2
        %v2087 = vadd.f32 %v2085, %v2086
        %v2088 = vrot.slane %v2087, 1
        %v2089 = vadd.f32 %v2087, %v2088
        %s2090 = vtos %v2089
        %v2091 = vmul.f32 %v2065, %v2065
        %v2092 = vmul.f32 %v2066, %v2066
        %v2093 = vmul.f32 %v2067, %v2067
        %v2094 = vmul.f32 %v2068, %v2068
        %v2095 = vadd.f32 %v2091, %v2092
        %v2096 = vadd.f32 %v2095, %v2093
        %v2097 = vadd.f32 %v2096, %v2094
        %2098 = vadd.xlane.f32.xlu0 %v2097
        %v2099 = vpop.xlane.xlu0 %2098
        %v2100 = vrot.slane %v2099, 4
        %v2101 = vadd.f32 %v2099, %v2100
        %v2102 = vrot.slane %v2101, 2
        %v2103 = vadd.f32 %v2101, %v2102
        %v2104 = vrot.slane %v2103, 1
        %v2105 = vadd.f32 %v2103, %v2104
        %s2106 = vtos %v2105
        %s2107 = smul.f32 %s2090, 0.00024414063
        %s2108 = smul.f32 %s2106, 0.00024414063
        %s2109 = smul.f32 %s2107, %s2107
        %s2110 = ssub.f32 %s2108, %s2109
        %s2111 = sadd.f32 %s2110, 1e-08
        %v2112 = vstv %s2111
        %v2113 = vrsqrt.pop %v2112
        %s2114 = vtos %v2113
        %v2115 = vstv %s2114
        %v2116 = vmul.f32 %v2115, %v2070
        %v2117 = vmul.f32 %v2115, %v2071
        %v2118 = vmul.f32 %v2115, %v2072
        %v2119 = vmul.f32 %v2115, %v2073
        %v2120 = vstv %s2107
        %v2121 = vsub.f32 %v2065, %v2120
        %v2122 = vsub.f32 %v2066, %v2120
        %v2123 = vsub.f32 %v2067, %v2120
        %v2124 = vsub.f32 %v2068, %v2120
        %2126 = vset.pattern.permute.xlu0 0
        %2127 = vperm.xlu0 %2126, %v2116
        %v2128 = vpop.permute.xlu0 %2127
        %2131 = vset.pattern.permute.xlu0 0
        %2132 = vperm.xlu0 %2131, %v2117
        %v2133 = vpop.permute.xlu0 %2132
        %2136 = vset.pattern.permute.xlu0 0
        %2137 = vperm.xlu0 %2136, %v2118
        %v2138 = vpop.permute.xlu0 %2137
        %2141 = vset.pattern.permute.xlu0 0
        %2142 = vperm.xlu0 %2141, %v2119
        %v2143 = vpop.permute.xlu0 %2142
        %v2145 = vmul.f32 %v2121, %v2128
        %v2146 = vmul.f32 %v2122, %v2133
        %v2147 = vmul.f32 %v2123, %v2138
        %v2148 = vmul.f32 %v2124, %v2143
        %2150 = vset.pattern.permute.xlu0 0
        %2151 = vperm.xlu0 %2150, %v2075
        %v2152 = vpop.permute.xlu0 %2151
        %2155 = vset.pattern.permute.xlu0 0
        %2156 = vperm.xlu0 %2155, %v2076
        %v2157 = vpop.permute.xlu0 %2156
        %2160 = vset.pattern.permute.xlu0 0
        %2161 = vperm.xlu0 %2160, %v2077
        %v2162 = vpop.permute.xlu0 %2161
        %2165 = vset.pattern.permute.xlu0 0
        %2166 = vperm.xlu0 %2165, %v2078
        %v2167 = vpop.permute.xlu0 %2166
        %v2169 = vadd.f32 %v2145, %v2152
        %v2170 = vadd.f32 %v2146, %v2157
        %v2171 = vadd.f32 %v2147, %v2162
        %v2172 = vadd.f32 %v2148, %v2167
        %s2173 = scalar_lea.vmem %s862, 32
        %v2174 = vld [vmem:[%s2173] sm:$0xff]
        %v2175 = vld [vmem:[%s2173 + $0x8] sm:$0xff]
        %v2176 = vld [vmem:[%s2173 + $0x10] sm:$0xff]
        %v2177 = vld [vmem:[%s2173 + $0x18] sm:$0xff]
        %s2178 = scalar_lea.vmem %s867, 32
        %v2179 = vld [vmem:[%s2178] sm:$0xff]
        %v2180 = vld [vmem:[%s2178 + $0x8] sm:$0xff]
        %v2181 = vld [vmem:[%s2178 + $0x10] sm:$0xff]
        %v2182 = vld [vmem:[%s2178 + $0x18] sm:$0xff]
        %2184 = vset.pattern.permute.xlu0 0
        %2185 = vperm.xlu0 %2184, %v2179
        %v2186 = vpop.permute.xlu0 %2185
        %2189 = vset.pattern.permute.xlu0 0
        %2190 = vperm.xlu0 %2189, %v2180
        %v2191 = vpop.permute.xlu0 %2190
        %2194 = vset.pattern.permute.xlu0 0
        %2195 = vperm.xlu0 %2194, %v2181
        %v2196 = vpop.permute.xlu0 %2195
        %2199 = vset.pattern.permute.xlu0 0
        %2200 = vperm.xlu0 %2199, %v2182
        %v2201 = vpop.permute.xlu0 %2200
        %v2204 = vsel %vm1563, %v2174, 0
        %v2207 = vsel %vm1563, %v2175, 0
        %v2210 = vsel %vm1563, %v2176, 0
        %v2213 = vsel %vm1563, %v2177, 0
        %2215 = vmatprep.subr.mxu0 0.0
        %2216 = vmatpush1.msra.mxu0 %v2169
        %2217 = vmatprep.subr.mxu0 0.0
        %2218 = vmatpush1.msra.mxu0 %v2170
        %2219 = vmatprep.subr.mxu0 0.0
        %2220 = vmatpush1.msra.mxu0 %v2171
        %2221 = vmatprep.subr.mxu0 0.0
        %2222 = vmatpush1.msra.mxu0 %v2172
        %2223 = vmatprep.subr.mxu0 0.0
        %2224 = vmatpush1.msra.mxu0 0.0
        %2225 = vmatprep.subr.mxu0 0.0
        %2226 = vmatpush1.msra.mxu0 0.0
        %2227 = vmatprep.subr.mxu0 0.0
        %2228 = vmatpush1.msra.mxu0 0.0
        %2229 = vmatprep.subr.mxu0 0.0
        %2230 = vmatpush1.msra.mxu0 0.0
        %2231 = vmatprep.subr.mxu0 0.0
        %2232 = vmatpush1.msra.mxu0 0.0
        %2233 = vmatprep.subr.mxu0 0.0
        %2234 = vmatpush1.msra.mxu0 0.0
        %2235 = vmatprep.subr.mxu0 0.0
        %2236 = vmatpush1.msra.mxu0 0.0
        %2237 = vmatprep.subr.mxu0 0.0
        %2238 = vmatpush1.msra.mxu0 0.0
        %2239 = vmatprep.subr.mxu0 0.0
        %2240 = vmatpush1.msra.mxu0 0.0
        %2241 = vmatprep.subr.mxu0 0.0
        %2242 = vmatpush1.msra.mxu0 0.0
        %2243 = vmatprep.subr.mxu0 0.0
        %2244 = vmatpush1.msra.mxu0 0.0
        %2245 = vmatprep.subr.mxu0 0.0
        %2246 = vmatpush1.msra.mxu0 0.0
        %2247 = vmatprep.subr.mxu0 0.0
        %2248 = vmatpush1.msra.mxu0 0.0
        %2249 = vmatprep.subr.mxu0 0.0
        %2250 = vmatpush1.msra.mxu0 0.0
        %2251 = vmatprep.subr.mxu0 0.0
        %2252 = vmatpush1.msra.mxu0 0.0
        %2253 = vmatprep.subr.mxu0 0.0
        %2254 = vmatpush1.msra.mxu0 0.0
        %2255 = vmatprep.subr.mxu0 0.0
        %2256 = vmatpush1.msra.mxu0 0.0
        %2257 = vmatprep.subr.mxu0 0.0
        %2258 = vmatpush1.msra.mxu0 0.0
        %2259 = vmatprep.subr.mxu0 0.0
        %2260 = vmatpush1.msra.mxu0 0.0
        %2261 = vmatprep.subr.mxu0 0.0
        %2262 = vmatpush1.msra.mxu0 0.0
        %2263 = vmatprep.subr.mxu0 0.0
        %2264 = vmatpush1.msra.mxu0 0.0
        %2265 = vmatprep.subr.mxu0 0.0
        %2266 = vmatpush1.msra.mxu0 0.0
        %2267 = vmatprep.subr.mxu0 0.0
        %2268 = vmatpush1.msra.mxu0 0.0
        %2269 = vmatprep.subr.mxu0 0.0
        %2270 = vmatpush1.msra.mxu0 0.0
        %2271 = vmatprep.subr.mxu0 0.0
        %2272 = vmatpush1.msra.mxu0 0.0
        %2273 = vmatprep.subr.mxu0 0.0
        %2274 = vmatpush1.msra.mxu0 0.0
        %2275 = vmatprep.subr.mxu0 0.0
        %2276 = vmatpush1.msra.mxu0 0.0
        %2277 = vmatprep.subr.mxu0 0.0
        %2278 = vmatpush1.msra.mxu0 0.0
        %2279 = vmatprep.mubr.f32.mxu0 0.0
        %2280 = vmatmul.mubr.f32.gmra.mrb[0].mxu0 %v2204
        %v2281 = vpop.f32.mrb[0].mxu0
        %v2282 = vadd.f32 %v2186, %v2281
        %v2283 = vpop.f32.mrb[0].mxu0
        %2284 = vmatprep.mubr.f32.mxu0 0.0
        %2285 = vmatmul.mubr.f32.gmra.mrb[0].mxu0 %v2207
        %v2286 = vpop.f32.mrb[0].mxu0
        %v2287 = vadd.f32 %v2191, %v2286
        %v2288 = vpop.f32.mrb[0].mxu0
        %2289 = vmatprep.mubr.f32.mxu0 0.0
        %2290 = vmatmul.mubr.f32.gmra.mrb[0].mxu0 %v2210
        %v2291 = vpop.f32.mrb[0].mxu0
        %v2292 = vadd.f32 %v2196, %v2291
        %v2293 = vpop.f32.mrb[0].mxu0
        %2294 = vmatprep.mubr.f32.mxu0 0.0
        %2295 = vmatmul.mubr.f32.gmra.mrb[0].mxu0 %v2213
        %v2296 = vpop.f32.mrb[0].mxu0
        %v2297 = vadd.f32 %v2201, %v2296
        %v2298 = vpop.f32.mrb[0].mxu0
        %2299 = vdwg.mxu0
        %v2300 = vadd.f32 %v1674, %v2282
        %v2301 = vadd.f32 %v1675, %v2287
        %2302 = vst [vmem:[#allocation2] sm:$0xff] %v2300
        %2303 = vst [vmem:[#allocation2 + $0x8] sm:$0xff] %v2301
        %v2304 = vld [vmem:[#allocation3] sm:$0xff]
        %v2305 = vld [vmem:[#allocation3 + $0x8] sm:$0xff]
        %v2306 = vadd.f32 %v2304, %v2292
        %v2307 = vadd.f32 %v2305, %v2297
        %2308 = vst [vmem:[#allocation3] sm:$0xff] %v2306
        %2309 = vst [vmem:[#allocation3 + $0x8] sm:$0xff] %v2307
        %p2310 = scmp.eq.s32.totalorder %s42, 1
        // Predicated region
        $region113: #{tpu_custom_call.1} parent=99 // pred_check
          %p2311 = pneg %p2310
        $region114: #{tpu_custom_call.1} parent=99 // pred_check_branch
          %2313 = sbr.rel (%p2311) target = $region116
        $region115: #{tpu_custom_call.1} parent=99 // pred_region
          %v2314 = vld [vmem:[#allocation3] sm:$0xff]
          %v2315 = vld [vmem:[#allocation3 + $0x8] sm:$0xff]
          %vm2316 = vcmp.ge.f32.partialorder %v2314, 0.0
          %vm2317 = vcmp.ge.f32.partialorder %v2315, 0.0
          %s2318 = sld [smem:[#allocation4]]
          %v2319 = vstv %s2318
          %v2320 = vmul.f32 %v2319, %v2314
          %v2321 = vmul.f32 %v2319, %v2315
          %v2322 = vsel %vm2316, %v2314, %v2320
          %v2323 = vsel %vm2317, %v2315, %v2321
          %v2324 = vld [vmem:[%s15] sm:$0xff]
          %v2325 = vld [vmem:[%s15 + $0x8] sm:$0xff]
          %v2326 = vld [vmem:[%s15 + $0x10] sm:$0xff]
          %v2327 = vld [vmem:[%s15 + $0x18] sm:$0xff]
          %v2328 = vld [vmem:[%s16] sm:$0xff]
          %v2329 = vld [vmem:[%s16 + $0x8] sm:$0xff]
          %v2330 = vld [vmem:[%s16 + $0x10] sm:$0xff]
          %v2331 = vld [vmem:[%s16 + $0x18] sm:$0xff]
          %2333 = vset.pattern.permute.xlu0 0
          %2334 = vperm.xlu0 %2333, %v2328
          %v2335 = vpop.permute.xlu0 %2334
          %2338 = vset.pattern.permute.xlu0 0
          %2339 = vperm.xlu0 %2338, %v2329
          %v2340 = vpop.permute.xlu0 %2339
          %2343 = vset.pattern.permute.xlu0 0
          %2344 = vperm.xlu0 %2343, %v2330
          %v2345 = vpop.permute.xlu0 %2344
          %2348 = vset.pattern.permute.xlu0 0
          %2349 = vperm.xlu0 %2348, %v2331
          %v2350 = vpop.permute.xlu0 %2349
          %v2353 = vsel %vm1073, %v2324, 0
          %v2356 = vsel %vm1073, %v2325, 0
          %v2359 = vsel %vm1073, %v2326, 0
          %v2362 = vsel %vm1073, %v2327, 0
          %2364 = vmatprep.subr.mxu0 0.0
          %2365 = vmatpush1.msra.mxu0 %v2322
          %2366 = vmatprep.subr.mxu0 0.0
          %2367 = vmatpush1.msra.mxu0 %v2323
          %2368 = vmatprep.subr.mxu0 0.0
          %2369 = vmatpush1.msra.mxu0 0.0
          %2370 = vmatprep.subr.mxu0 0.0
          %2371 = vmatpush1.msra.mxu0 0.0
          %2372 = vmatprep.subr.mxu0 0.0
          %2373 = vmatpush1.msra.mxu0 0.0
          %2374 = vmatprep.subr.mxu0 0.0
          %2375 = vmatpush1.msra.mxu0 0.0
          %2376 = vmatprep.subr.mxu0 0.0
          %2377 = vmatpush1.msra.mxu0 0.0
          %2378 = vmatprep.subr.mxu0 0.0
          %2379 = vmatpush1.msra.mxu0 0.0
          %2380 = vmatprep.subr.mxu0 0.0
          %2381 = vmatpush1.msra.mxu0 0.0
          %2382 = vmatprep.subr.mxu0 0.0
          %2383 = vmatpush1.msra.mxu0 0.0
          %2384 = vmatprep.subr.mxu0 0.0
          %2385 = vmatpush1.msra.mxu0 0.0
          %2386 = vmatprep.subr.mxu0 0.0
          %2387 = vmatpush1.msra.mxu0 0.0
          %2388 = vmatprep.subr.mxu0 0.0
          %2389 = vmatpush1.msra.mxu0 0.0
          %2390 = vmatprep.subr.mxu0 0.0
          %2391 = vmatpush1.msra.mxu0 0.0
          %2392 = vmatprep.subr.mxu0 0.0
          %2393 = vmatpush1.msra.mxu0 0.0
          %2394 = vmatprep.subr.mxu0 0.0
          %2395 = vmatpush1.msra.mxu0 0.0
          %2396 = vmatprep.subr.mxu0 0.0
          %2397 = vmatpush1.msra.mxu0 0.0
          %2398 = vmatprep.subr.mxu0 0.0
          %2399 = vmatpush1.msra.mxu0 0.0
          %2400 = vmatprep.subr.mxu0 0.0
          %2401 = vmatpush1.msra.mxu0 0.0
          %2402 = vmatprep.subr.mxu0 0.0
          %2403 = vmatpush1.msra.mxu0 0.0
          %2404 = vmatprep.subr.mxu0 0.0
          %2405 = vmatpush1.msra.mxu0 0.0
          %2406 = vmatprep.subr.mxu0 0.0
          %2407 = vmatpush1.msra.mxu0 0.0
          %2408 = vmatprep.subr.mxu0 0.0
          %2409 = vmatpush1.msra.mxu0 0.0
          %2410 = vmatprep.subr.mxu0 0.0
          %2411 = vmatpush1.msra.mxu0 0.0
          %2412 = vmatprep.subr.mxu0 0.0
          %2413 = vmatpush1.msra.mxu0 0.0
          %2414 = vmatprep.subr.mxu0 0.0
          %2415 = vmatpush1.msra.mxu0 0.0
          %2416 = vmatprep.subr.mxu0 0.0
          %2417 = vmatpush1.msra.mxu0 0.0
          %2418 = vmatprep.subr.mxu0 0.0
          %2419 = vmatpush1.msra.mxu0 0.0
          %2420 = vmatprep.subr.mxu0 0.0
          %2421 = vmatpush1.msra.mxu0 0.0
          %2422 = vmatprep.subr.mxu0 0.0
          %2423 = vmatpush1.msra.mxu0 0.0
          %2424 = vmatprep.subr.mxu0 0.0
          %2425 = vmatpush1.msra.mxu0 0.0
          %2426 = vmatprep.subr.mxu0 0.0
          %2427 = vmatpush1.msra.mxu0 0.0
          %2428 = vmatprep.mubr.f32.mxu0 0.0
          %2429 = vmatmul.mubr.f32.gmra.mrb[0].mxu0 %v2353
          %v2430 = vpop.f32.mrb[0].mxu0
          %v2431 = vadd.f32 %v2335, %v2430
          %v2432 = vpop.f32.mrb[0].mxu0
          %2433 = vmatprep.mubr.f32.mxu0 0.0
          %2434 = vmatmul.mubr.f32.gmra.mrb[0].mxu0 %v2356
          %v2435 = vpop.f32.mrb[0].mxu0
          %v2436 = vadd.f32 %v2340, %v2435
          %v2437 = vpop.f32.mrb[0].mxu0
          %2438 = vmatprep.mubr.f32.mxu0 0.0
          %2439 = vmatmul.mubr.f32.gmra.mrb[0].mxu0 %v2359
          %v2440 = vpop.f32.mrb[0].mxu0
          %v2441 = vadd.f32 %v2345, %v2440
          %v2442 = vpop.f32.mrb[0].mxu0
          %2443 = vmatprep.mubr.f32.mxu0 0.0
          %2444 = vmatmul.mubr.f32.gmra.mrb[0].mxu0 %v2362
          %v2445 = vpop.f32.mrb[0].mxu0
          %v2446 = vadd.f32 %v2350, %v2445
          %v2447 = vpop.f32.mrb[0].mxu0
          %2448 = vdwg.mxu0
          %v2449 = vmax.f32 %v2431, 0.0
          %v2450 = vmax.f32 %v2436, 0.0
          %v2451 = vmax.f32 %v2441, 0.0
          %v2452 = vmax.f32 %v2446, 0.0
          %2453 = vst [vmem:[%s812] sm:$0xff] %v2449
          %2454 = vst [vmem:[%s812 + $0x8] sm:$0xff] %v2450
          %2455 = vst [vmem:[%s812 + $0x10] sm:$0xff] %v2451
          %2456 = vst [vmem:[%s812 + $0x18] sm:$0xff] %v2452
        $region116: #{tpu_custom_call.1} parent=99 // pred_fallthru
          _
        %s2457 = sand.u32 %s532, 1
        %s2458 = scalar_lea.sflag [#allocation6], %s2457
        %s2459 = sand.u32 %s532, 1
        %s2460 = smul.addr %s2459, 32
        %s2461 = scalar_lea.vmem [#allocation10], %s2460
        // Predicated region
        $region117: #{tpu_custom_call.1} parent=99 // pred_check
          %p2462 = pneg %p542
        $region118: #{tpu_custom_call.1} parent=99 // pred_check_branch
          %2464 = sbr.rel (%p2462) target = $region120
        $region119: #{tpu_custom_call.1} parent=99 // pred_region
          %s2466 = ssub.s32 512, 512
          %2467 = vsyncadd %s2458, %s2466
          %s2468 = smul.addr %s41, 4
          %s2469 = smul.addr %s2468, 128
          %s2470 = scalar_lea.hbm %s20, %s2469
          %s2471 = sshll.u32 %s2461, 4
          %s2472 = int_to_ptr.vmem [resolvable:$true] %s2471
          %2477 = dma.vmem_to_hbm [thread:$0]  %s2472, 512, %s2470, %s2458, 128, 128, 8
        $region120: #{tpu_custom_call.1} parent=99 // pred_fallthru
          _
      $region100: #{tpu_custom_call.1} parent=5 // pred_fallthru
        _
      %p2478 = scmp.le.s32.totalorder 2, %s32
      // Predicated region
      $region121: #{tpu_custom_call.1} parent=5 // pred_check
        %p2479 = pneg %p2478
      $region122: #{tpu_custom_call.1} parent=5 // pred_check_branch
        %2481 = sbr.rel (%p2479) target = $region124
      $region123: #{tpu_custom_call.1} parent=5 // pred_region
        %s2482 = ssub.s32 %s32, 2
        // Predicated region
        $region125: #{tpu_custom_call.1} parent=123 // pred_check
          %p2483 = pneg %p548
        $region126: #{tpu_custom_call.1} parent=123 // pred_check_branch
          %2485 = sbr.rel (%p2483) target = $region128
        $region127: #{tpu_custom_call.1} parent=123 // pred_region
          %s2486 = sand.u32 %s533, 1
          %s2487 = scalar_lea.sflag [#allocation6], %s2486
          %s2488 = sand.u32 %s533, 1
          %s2489 = smul.addr %s2488, 32
          %s2490 = scalar_lea.vmem [#allocation10], %s2489
          %2491 = dma.done %s2487, 512
        $region128: #{tpu_custom_call.1} parent=123 // pred_fallthru
          _
      $region124: #{tpu_custom_call.1} parent=5 // pred_fallthru
        _
    $region6: #{tpu_custom_call.1} parent=1 // loop_footer
      %s36 = sadd.s32 1, %s32
    $region7: #{tpu_custom_call.1} parent=1 // loop_footer_branch
      %31 = sbr.rel target = $region3
    $region8: #{tpu_custom_call.1} parent=1 // loop_exit
      _
    %2492 = vsyncpa [#allocation6], 1
    %s2493 = scalar_lea.sflag [#allocation6], 1
    %2494 = vsyncpa %s2493, 1
    %2495 = vsyncpa [#allocation7], 1
    %s2496 = scalar_lea.sflag [#allocation7], 1
    %2497 = vsyncpa %s2496, 1
    %2498 = vsyncpa [#allocation9], 1

</llo_original>
